<compile_context>
chip_gen: v6e
topology: v6e:2x2x1
jax: 0.10.0
libtpu: 0.0.40
codegen_flags: <defaults>
</compile_context>

<pallas_src>
import functools

import jax
import jax.numpy as jnp
from jax.experimental import pallas as pl
from jax.experimental.pallas import tpu as pltpu


def _round_up(x, m):
    return ((x + m - 1) // m) * m


def _lstm_block_kernel(emb_ref, wih_ref, whh_ref, bias_ref, lens_ref,
                       out_ref, hn_ref, cn_ref, pre_sc,
                       *, hidden_dim, block_t, batch_block, unroll):
    """One grid step == `block_t` time steps for one batch block.

    emb_ref : (block_t, Bb, E)     embedded tokens (compute dtype, streamed)
    wih_ref : (E, 4*Hp)            input weights   (compute dtype, resident)
    whh_ref : (Hp, 4*Hp)           recurrent weights (compute dtype, resident)
    bias_ref: (1, 4*Hp) f32        b_ih + b_hh
    lens_ref: (Bb, 1) int32        valid lengths
    out_ref : (block_t, Bb, Hp)    zero-padded outputs
    hn_ref / cn_ref : (Bb, Hp) f32 final state; ALSO the carried recurrent state
                                   (resident: constant index map over the time axis)
    pre_sc  : (block_t*Bb, 4*Hp) f32 scratch holding this block's pre-gates
    """
    Hp = hidden_dim
    Bb = batch_block
    tc = pl.program_id(1)          # time-block axis (sequential / "arbitrary")

    # hidden=None in the PyTorch call -> zero initial state.  Keyed on the *time*
    # program id so every batch block (parallel axis 0) resets its own state.
    @pl.when(tc == 0)
    def _():
        hn_ref[...] = jnp.zeros_like(hn_ref)
        cn_ref[...] = jnp.zeros_like(cn_ref)

    lens = lens_ref[...]           # (Bb, 1) int32, loaded once per block
    whh = whh_ref[...]             # (Hp, 4Hp), hoisted out of the loop
    cdt = whh.dtype

    # --- fused input projection: one big MXU matmul per block, off the serial
    # dependence chain ----------------------------------------------------------
    emb = emb_ref[...].reshape(block_t * Bb, emb_ref.shape[-1])
    pre_sc[...] = (jnp.dot(emb, wih_ref[...],
                           preferred_element_type=jnp.float32)
                   + bias_ref[...])

    def step(i, _):
        t = tc * block_t + i                       # global time index
        h_prev = hn_ref[...]                       # f32 state (resident output)
        c_prev = cn_ref[...]

        row = pl.multiple_of(i * Bb, Bb)
        # Only the recurrent matmul remains on the sequential dependence chain.
        gates = pre_sc[pl.ds(row, Bb), :] + jnp.dot(
            h_prev.astype(cdt), whh, preferred_element_type=jnp.float32)

        # Hp is a multiple of 128 -> whole, lane-aligned gate slices (i, f, g, o).
        i_g = jax.nn.sigmoid(gates[:, 0 * Hp:1 * Hp])
        f_g = jax.nn.sigmoid(gates[:, 1 * Hp:2 * Hp])
        g_g = jnp.tanh(gates[:, 2 * Hp:3 * Hp])
        o_g = jax.nn.sigmoid(gates[:, 3 * Hp:4 * Hp])

        c_new = f_g * c_prev + i_g * g_g
        h_new = o_g * jnp.tanh(c_new)

        # pack_padded_sequence semantics: steps t >= lens[b] do not update the
        # state (so h_n/c_n end up at t = lens[b]-1); pad_packed_sequence zeros
        # the outputs.
        valid = t < lens                           # (Bb, 1) bool
        hn_ref[...] = jnp.where(valid, h_new, h_prev)
        cn_ref[...] = jnp.where(valid, c_new, c_prev)
        out_ref[i] = jnp.where(valid, h_new, 0.0).astype(out_ref.dtype)
        return 0

    # Bounded unroll: keeps LLO scheduler visibility without blowing up vreg
    # live ranges once (Bb, Hp) tiles get large.
    jax.lax.fori_loop(0, block_t, step, 0, unroll=unroll)


def predictor_forward(params, x_tokens, lens, *, block_t=32, batch_block=None,
                      compute_dtype=jnp.bfloat16, out_dtype=None, unroll=8):
    """JAX/Pallas equivalent of Predictor.forward (eval mode, LSTM, n_layers=1).

    x_tokens: (B, T) int32 token ids
    lens:     (B,)   int32 valid lengths (max(lens) <= T)
    returns:  outputs (B, T, H), hidden = (h_n, c_n) each (1, B, H) float32
    """
    B, T = x_tokens.shape
    E = params["emb"].shape[1]
    H = params["w_hh"].shape[1]
    f32 = jnp.float32
    cdt = jnp.dtype(compute_dtype)
    odt = jnp.dtype(out_dtype) if out_dtype is not None else jnp.dtype(f32)

    # --- TPU-friendly padding ---------------------------------------------------
    Bp = _round_up(B, 8)                   # sublane alignment
    Hp = _round_up(H, 128)                 # lane alignment
    block_t = max(1, min(block_t, T))
    T_pad = _round_up(T, block_t)
    Bb = Bp if batch_block is None else int(batch_block)
    assert Bb % 8 == 0 and Bp % Bb == 0, "batch_block must be a multiple of 8 dividing padded B"
    n_bb = Bp // Bb
    unroll = max(1, min(int(unroll), block_t))

    # Gate-wise zero-padding of PyTorch-layout LSTM weights (gate order i, f, g, o).
    w_ih = params["w_ih"].astype(f32).reshape(4, H, E)
    w_hh = params["w_hh"].astype(f32).reshape(4, H, H)
    b = (params["b_ih"] + params["b_hh"]).astype(f32).reshape(4, H)

    wih_t = (jnp.zeros((4, Hp, E), f32).at[:, :H, :].set(w_ih)
             .reshape(4 * Hp, E).T.astype(cdt))                     # (E, 4Hp)
    whh_t = (jnp.zeros((4, Hp, Hp), f32).at[:, :H, :H].set(w_hh)
             .reshape(4 * Hp, Hp).T.astype(cdt))                    # (Hp, 4Hp)
    bias = jnp.zeros((4, Hp), f32).at[:, :H].set(b).reshape(1, 4 * Hp)   # f32

    # --- embedding gathered directly in time-major, padded layout ----------------
    # (self.dp1 / self.dp2 are identity in eval mode.)
    tok_p = jnp.zeros((Bp, T_pad), jnp.int32).at[:B, :T].set(x_tokens)
    emb_tm = jnp.take(params["emb"].astype(cdt), tok_p.T, axis=0)   # (T_pad, Bp, E)

    # Padded batch rows get lens = 0 -> their state stays zero and outputs are zero.
    lens_p = jnp.zeros((Bp, 1), jnp.int32).at[:B, 0].set(lens.astype(jnp.int32))

    kernel = functools.partial(_lstm_block_kernel, hidden_dim=Hp, block_t=block_t,
                               batch_block=Bb, unroll=unroll)

    # --- explicit VMEM budget (v7x has only 64 MiB per TensorCore) ---------------
    est = (2 * block_t * Bb * E * cdt.itemsize        # streamed emb (double buffer)
           + 2 * block_t * Bb * Hp * odt.itemsize     # streamed out
           + 2 * E * 4 * Hp * cdt.itemsize            # W_ih^T
           + 2 * Hp * 4 * Hp * cdt.itemsize           # W_hh^T
           + 2 * 4 * Hp * 4 + 2 * Bb * 4              # bias, lens
           + 4 * Bb * Hp * 4                          # h_n, c_n (resident outputs)
           + block_t * Bb * 4 * Hp * 4)               # pre-gate scratch
    vmem_limit = int(min(56 * 2 ** 20, max(16 * 2 ** 20, 2 * est)))

    grid = (n_bb, T_pad // block_t)
    out_shape = (
        jax.ShapeDtypeStruct((T_pad, Bp, Hp), odt),   # padded outputs (time-major)
        jax.ShapeDtypeStruct((Bp, Hp), f32),          # h_n (also the state carry)
        jax.ShapeDtypeStruct((Bp, Hp), f32),          # c_n
    )
    out_specs = [
        pl.BlockSpec((block_t, Bb, Hp), lambda bb, tc: (tc, bb, 0)),
        pl.BlockSpec((Bb, Hp), lambda bb, tc: (bb, 0)),
        pl.BlockSpec((Bb, Hp), lambda bb, tc: (bb, 0)),
    ]
    scratch = [pltpu.VMEM((block_t * Bb, 4 * Hp), f32)]   # per-block pre-gates

    def build(single_buffer_consts):
        def const_spec(shape, imap):
            # Constant-index blocks never change across the time sweep, so the
            # second pipeline buffer is wasted VMEM; request single buffering
            # when the installed JAX exposes pipeline_mode.
            if single_buffer_consts:
                return pl.BlockSpec(shape, imap, pipeline_mode=pl.Buffered(1))
            return pl.BlockSpec(shape, imap)

        in_specs = [
            pl.BlockSpec((block_t, Bb, E), lambda bb, tc: (tc, bb, 0)),   # emb stream
            const_spec((E, 4 * Hp), lambda bb, tc: (0, 0)),               # W_ih^T
            const_spec((Hp, 4 * Hp), lambda bb, tc: (0, 0)),              # W_hh^T
            const_spec((1, 4 * Hp), lambda bb, tc: (0, 0)),               # bias
            const_spec((Bb, 1), lambda bb, tc: (bb, 0)),                  # lens
        ]
        return pl.pallas_call(
            kernel,
            out_shape=out_shape,
            grid_spec=pltpu.PrefetchScalarGridSpec(
                num_scalar_prefetch=0, grid=grid,
                in_specs=in_specs, out_specs=out_specs,
                scratch_shapes=scratch),
            compiler_params=pltpu.CompilerParams(
                # batch blocks are independent (v7x 2-TC megacore);
                # the time recurrence is strictly sequential.
                dimension_semantics=("parallel", "arbitrary"),
                vmem_limit_bytes=vmem_limit),
        )

    try:
        out_tm, h_n, c_n = build(True)(emb_tm, wih_t, whh_t, bias, lens_p)
    except Exception:
        # pipeline_mode=pl.Buffered(1) not supported by this JAX/Mosaic build;
        # double-buffered constants are still correct, just cost extra VMEM.
        out_tm, h_n, c_n = build(False)(emb_tm, wih_t, whh_t, bias, lens_p)

    outputs = jnp.swapaxes(out_tm[:T, :B, :H], 0, 1)      # (B, T, H) batch-first
    hidden = (h_n[None, :B, :H], c_n[None, :B, :H])       # (n_layers=1, B, H) f32
    return outputs, hidden


def _reference_forward(params, x_tokens, lens):
    """Pure-JAX f32 reference of Predictor.forward (eval mode, 1-layer LSTM)."""
    B, T = x_tokens.shape
    H = params["w_hh"].shape[1]
    emb_x = jnp.take(params["emb"].astype(jnp.float32), x_tokens, axis=0)  # (B, T, E)
    wih_t = params["w_ih"].astype(jnp.float32).T
    whh_t = params["w_hh"].astype(jnp.float32).T
    bias = (params["b_ih"] + params["b_hh"]).astype(jnp.float32)

    def step(carry, xt_t):
        h, c = carry
        x_t, t = xt_t
        gates = x_t @ wih_t + h @ whh_t + bias
        i_g = jax.nn.sigmoid(gates[:, 0 * H:1 * H])
        f_g = jax.nn.sigmoid(gates[:, 1 * H:2 * H])
        g_g = jnp.tanh(gates[:, 2 * H:3 * H])
        o_g = jax.nn.sigmoid(gates[:, 3 * H:4 * H])
        c_new = f_g * c + i_g * g_g
        h_new = o_g * jnp.tanh(c_new)
        valid = (t < lens)[:, None]
        h = jnp.where(valid, h_new, h)
        c = jnp.where(valid, c_new, c)
        out = jnp.where(valid, h_new, jnp.zeros_like(h_new))
        return (h, c), out

    h0 = jnp.zeros((B, H), jnp.float32)
    c0 = jnp.zeros((B, H), jnp.float32)
    x_tm = jnp.swapaxes(emb_x, 0, 1)
    (h_n, c_n), out_tm = jax.lax.scan(step, (h0, c0), (x_tm, jnp.arange(T)))
    return jnp.swapaxes(out_tm, 0, 1), (h_n[None], c_n[None])


def init_params(key, vocab_size, emb_dim, hidden_dim):
    """Deterministic synthetic parameters with PyTorch LSTM shapes."""
    k_emb, k_wih, k_whh, k_bih, k_bhh = jax.random.split(key, 5)
    s = 1.0 / jnp.sqrt(hidden_dim)
    return {
        "emb": jax.random.normal(k_emb, (vocab_size, emb_dim), jnp.float32) * 0.1,
        "w_ih": jax.random.uniform(k_wih, (4 * hidden_dim, emb_dim), jnp.float32, -s, s),
        "w_hh": jax.random.uniform(k_whh, (4 * hidden_dim, hidden_dim), jnp.float32, -s, s),
        "b_ih": jax.random.uniform(k_bih, (4 * hidden_dim,), jnp.float32, -s, s),
        "b_hh": jax.random.uniform(k_bhh, (4 * hidden_dim,), jnp.float32, -s, s),
    }


if __name__ == "__main__":
    # Small config: vocab=16, emb_tying=True (emb_dim == dim), module='lstm',
    # dim=32, n_layers=1, dropout -> identity in eval mode.
    VOCAB, EMB, HID = 16, 32, 32
    B, T = 2, 8

    key = jax.random.PRNGKey(0)
    k_params, k_tok = jax.random.split(key)
    params = init_params(k_params, VOCAB, EMB, HID)

    x_tokens = jax.random.randint(k_tok, (B, T), 0, VOCAB, dtype=jnp.int32)
    lens = jnp.array([8, 5], dtype=jnp.int32)
    assert int(jnp.max(lens)) <= T, "lens must satisfy max(lens) <= T"

    ref_out, (ref_h, ref_c) = _reference_forward(params, x_tokens, lens)

    # 1) exactness path (f32 everywhere); block_t=4 exercises the cross-block carry.
    out32, (h32, c32) = predictor_forward(
        params, x_tokens, lens, block_t=4,
        compute_dtype=jnp.float32, out_dtype=jnp.float32)
    jax.block_until_ready((out32, h32, c32))
    assert out32.shape == (B, T, HID)
    assert h32.shape == (1, B, HID) and c32.shape == (1, B, HID)
    assert float(jnp.abs(out32[1, 5:]).max()) == 0.0        # pad_packed_sequence zeros
    assert float(jnp.abs(out32 - ref_out).max()) < 1e-4
    assert float(jnp.abs(h32 - ref_h).max()) < 1e-4
    assert float(jnp.abs(c32 - ref_c).max()) < 1e-4

    # 2) fast path: bf16 streamed activations / resident weights (f32 accumulation
    #    and f32 state/elementwise), bf16 output stream.
    outbf, (hbf, cbf) = predictor_forward(
        params, x_tokens, lens, block_t=4,
        compute_dtype=jnp.bfloat16, out_dtype=jnp.bfloat16)
    jax.block_until_ready((outbf, hbf, cbf))
    assert outbf.dtype == jnp.bfloat16
    assert float(jnp.abs(outbf.astype(jnp.float32)[1, 5:]).max()) == 0.0
    assert float(jnp.abs(outbf.astype(jnp.float32) - ref_out).max()) < 3e-2
    assert float(jnp.abs(hbf - ref_h).max()) < 3e-2
    assert float(jnp.abs(cbf - ref_c).max()) < 3e-2

    # 3) batch-block "parallel" grid axis (two batch blocks -> v7x megacore path).
    B2 = 10
    k_tok2, k_len2 = jax.random.split(jax.random.PRNGKey(1))
    x2 = jax.random.randint(k_tok2, (B2, T), 0, VOCAB, dtype=jnp.int32)
    lens2 = jax.random.randint(k_len2, (B2,), 1, T + 1, dtype=jnp.int32)
    ref2_out, (ref2_h, ref2_c) = _reference_forward(params, x2, lens2)
    out2, (h2, c2) = predictor_forward(
        params, x2, lens2, block_t=4, batch_block=8,
        compute_dtype=jnp.float32, out_dtype=jnp.float32)
    jax.block_until_ready((out2, h2, c2))
    assert float(jnp.abs(out2 - ref2_out).max()) < 1e-4
    assert float(jnp.abs(h2 - ref2_h).max()) < 1e-4
    assert float(jnp.abs(c2 - ref2_c).max()) < 1e-4

    print("KERNEL_OK")
</pallas_src>

<mosaic_0001>
module attributes {stable_mosaic.version = 11 : i64} {
  func.func @_lstm_block_kernel(%arg0: i32, %arg1: i32, %arg2: memref<4x8x32xf32, #tpu.memory_space<vmem>>, %arg3: memref<32x512xf32, #tpu.memory_space<vmem>>, %arg4: memref<128x512xf32, #tpu.memory_space<vmem>>, %arg5: memref<1x512xf32, #tpu.memory_space<vmem>>, %arg6: memref<8x1xi32, #tpu.memory_space<vmem>>, %arg7: memref<4x8x128xf32, #tpu.memory_space<vmem>>, %arg8: memref<8x128xf32, #tpu.memory_space<vmem>>, %arg9: memref<8x128xf32, #tpu.memory_space<vmem>>, %arg10: memref<32x512xf32, #tpu.memory_space<vmem>>) attributes {dimension_semantics = [#tpu.dimension_semantics<parallel>, #tpu.dimension_semantics<arbitrary>], iteration_bounds = array<i64: 1, 2>, scalar_prefetch = 0 : i64, scratch_operands = 1 : i64, tpu.core_type = #tpu.core_type<tc>, window_params = [{transform_indices = @transform_0, window_bounds = array<i64: 4, 8, 32>}, {pipeline_mode = #tpu.pipeline_mode<synchronous>, transform_indices = @transform_1, window_bounds = array<i64: 32, 512>}, {pipeline_mode = #tpu.pipeline_mode<synchronous>, transform_indices = @transform_2, window_bounds = array<i64: 128, 512>}, {pipeline_mode = #tpu.pipeline_mode<synchronous>, transform_indices = @transform_3, window_bounds = array<i64: 1, 512>}, {pipeline_mode = #tpu.pipeline_mode<synchronous>, transform_indices = @transform_4, window_bounds = array<i64: 8, 1>}, {transform_indices = @transform_5, window_bounds = array<i64: 4, 8, 128>}, {transform_indices = @transform_6, window_bounds = array<i64: 8, 128>}, {transform_indices = @transform_7, window_bounds = array<i64: 8, 128>}]} {
    %c0_i32 = arith.constant 0 : i32
    %0 = arith.cmpi eq, %arg1, %c0_i32 : i32
    %1 = arith.extui %0 : i1 to i32
    %c0_i32_0 = arith.constant 0 : i32
    %2 = arith.cmpi ne, %1, %c0_i32_0 : i32
    scf.if %2 {
      %cst_85 = arith.constant 0.000000e+00 : f32
      %225 = vector.broadcast %cst_85 : f32 to vector<8x128xf32>
      %c0_86 = arith.constant 0 : index
      %c0_87 = arith.constant 0 : index
      %226 = vector.load %arg8[%c0_86, %c0_87] : memref<8x128xf32, #tpu.memory_space<vmem>>, vector<8x128xf32>
      tpu.vector_store %arg8[%c0_86, %c0_87], %225 {strides = array<i32>} : memref<8x128xf32, #tpu.memory_space<vmem>>, vector<8x128xf32>,
      %cst_88 = arith.constant 0.000000e+00 : f32
      %227 = vector.broadcast %cst_88 : f32 to vector<8x128xf32>
      %c0_89 = arith.constant 0 : index
      %c0_90 = arith.constant 0 : index
      %228 = vector.load %arg9[%c0_89, %c0_90] : memref<8x128xf32, #tpu.memory_space<vmem>>, vector<8x128xf32>
      tpu.vector_store %arg9[%c0_89, %c0_90], %227 {strides = array<i32>} : memref<8x128xf32, #tpu.memory_space<vmem>>, vector<8x128xf32>,
    } else {
    }
    %c0 = arith.constant 0 : index
    %c0_1 = arith.constant 0 : index
    %3 = vector.load %arg6[%c0, %c0_1] : memref<8x1xi32, #tpu.memory_space<vmem>>, vector<8x1xi32>
    %c0_2 = arith.constant 0 : index
    %c0_3 = arith.constant 0 : index
    %4 = vector.load %arg4[%c0_2, %c0_3] : memref<128x512xf32, #tpu.memory_space<vmem>>, vector<128x512xf32>
    %c0_4 = arith.constant 0 : index
    %c0_5 = arith.constant 0 : index
    %c0_6 = arith.constant 0 : index
    %5 = vector.load %arg2[%c0_4, %c0_5, %c0_6] : memref<4x8x32xf32, #tpu.memory_space<vmem>>, vector<4x8x32xf32>
    %6 = vector.shape_cast %5 : vector<4x8x32xf32> to vector<32x32xf32>
    %c0_7 = arith.constant 0 : index
    %c0_8 = arith.constant 0 : index
    %7 = vector.load %arg3[%c0_7, %c0_8] : memref<32x512xf32, #tpu.memory_space<vmem>>, vector<32x512xf32>
    %cst = arith.constant dense<0.000000e+00> : vector<32x512xf32>
    %8 = tpu.matmul %6, %7, %cst {dimension_numbers = #tpu.dot_dimension_numbers<[1], [0], [0], [1], [0, 0, 1, 1], [], []>} : vector<32x32xf32>, vector<32x512xf32>, vector<32x512xf32> -> vector<32x512xf32>
    %c0_9 = arith.constant 0 : index
    %c0_10 = arith.constant 0 : index
    %9 = vector.load %arg5[%c0_9, %c0_10] : memref<1x512xf32, #tpu.memory_space<vmem>>, vector<1x512xf32>
    %10 = vector.broadcast %9 : vector<1x512xf32> to vector<32x512xf32>
    %11 = arith.addf %8, %10 : vector<32x512xf32>
    %c0_11 = arith.constant 0 : index
    %c0_12 = arith.constant 0 : index
    %12 = vector.load %arg10[%c0_11, %c0_12] : memref<32x512xf32, #tpu.memory_space<vmem>>, vector<32x512xf32>
    tpu.vector_store %arg10[%c0_11, %c0_12], %11 {strides = array<i32>} : memref<32x512xf32, #tpu.memory_space<vmem>>, vector<32x512xf32>,
    %c0_i32_13 = arith.constant 0 : i32
    %c4_i32 = arith.constant 4 : i32
    %13 = arith.muli %arg1, %c4_i32 : i32
    %14 = arith.addi %13, %c0_i32_13 : i32
    %c0_14 = arith.constant 0 : index
    %c0_15 = arith.constant 0 : index
    %15 = vector.load %arg8[%c0_14, %c0_15] : memref<8x128xf32, #tpu.memory_space<vmem>>, vector<8x128xf32>
    %c0_16 = arith.constant 0 : index
    %c0_17 = arith.constant 0 : index
    %16 = vector.load %arg9[%c0_16, %c0_17] : memref<8x128xf32, #tpu.memory_space<vmem>>, vector<8x128xf32>
    %c8_i32 = arith.constant 8 : i32
    %17 = arith.muli %c0_i32_13, %c8_i32 : i32
    %18 = tpu.assume_multiple %17, 8 : i32
    %19 = arith.index_cast %18 : i32 to index
    %c0_18 = arith.constant 0 : index
    %20 = vector.load %arg10[%19, %c0_18] : memref<32x512xf32, #tpu.memory_space<vmem>>, vector<8x512xf32>
    %cst_19 = arith.constant dense<0.000000e+00> : vector<8x512xf32>
    %21 = tpu.matmul %15, %4, %cst_19 {dimension_numbers = #tpu.dot_dimension_numbers<[1], [0], [0], [1], [0, 0, 1, 1], [], []>} : vector<8x128xf32>, vector<128x512xf32>, vector<8x512xf32> -> vector<8x512xf32>
    %22 = arith.addf %20, %21 : vector<8x512xf32>
    %23 = vector.extract_strided_slice %22 {offsets = [0, 0], sizes = [8, 128], strides = [1, 1]} : vector<8x512xf32> to vector<8x128xf32>
    %24 = arith.negf %23 : vector<8x128xf32>
    %25 = math.exp %24 : vector<8x128xf32>
    %cst_20 = arith.constant 1.000000e+00 : f32
    %26 = vector.broadcast %cst_20 : f32 to vector<8x128xf32>
    %27 = arith.addf %26, %25 : vector<8x128xf32>
    %28 = arith.divf %26, %27 : vector<8x128xf32>
    %29 = vector.extract_strided_slice %22 {offsets = [0, 128], sizes = [8, 128], strides = [1, 1]} : vector<8x512xf32> to vector<8x128xf32>
    %30 = arith.negf %29 : vector<8x128xf32>
    %31 = math.exp %30 : vector<8x128xf32>
    %cst_21 = arith.constant 1.000000e+00 : f32
    %32 = vector.broadcast %cst_21 : f32 to vector<8x128xf32>
    %33 = arith.addf %32, %31 : vector<8x128xf32>
    %34 = arith.divf %32, %33 : vector<8x128xf32>
    %35 = vector.extract_strided_slice %22 {offsets = [0, 256], sizes = [8, 128], strides = [1, 1]} : vector<8x512xf32> to vector<8x128xf32>
    %36 = math.tanh %35 : vector<8x128xf32>
    %37 = vector.extract_strided_slice %22 {offsets = [0, 384], sizes = [8, 128], strides = [1, 1]} : vector<8x512xf32> to vector<8x128xf32>
    %38 = arith.negf %37 : vector<8x128xf32>
    %39 = math.exp %38 : vector<8x128xf32>
    %cst_22 = arith.constant 1.000000e+00 : f32
    %40 = vector.broadcast %cst_22 : f32 to vector<8x128xf32>
    %41 = arith.addf %40, %39 : vector<8x128xf32>
    %42 = arith.divf %40, %41 : vector<8x128xf32>
    %43 = arith.mulf %34, %16 : vector<8x128xf32>
    %44 = arith.mulf %28, %36 : vector<8x128xf32>
    %45 = arith.addf %43, %44 : vector<8x128xf32>
    %46 = math.tanh %45 : vector<8x128xf32>
    %47 = arith.mulf %42, %46 : vector<8x128xf32>
    %48 = vector.broadcast %14 : i32 to vector<8x1xi32>
    %49 = arith.cmpi slt, %48, %3 : vector<8x1xi32>
    %50 = vector.shape_cast %49 : vector<8x1xi1> to vector<8x1xi1>
    %51 = vector.broadcast %50 : vector<8x1xi1> to vector<8x128xi1>
    %52 = arith.select %51, %47, %15 : vector<8x128xi1>, vector<8x128xf32>
    %c0_23 = arith.constant 0 : index
    %c0_24 = arith.constant 0 : index
    %53 = vector.load %arg8[%c0_23, %c0_24] : memref<8x128xf32, #tpu.memory_space<vmem>>, vector<8x128xf32>
    tpu.vector_store %arg8[%c0_23, %c0_24], %52 {strides = array<i32>} : memref<8x128xf32, #tpu.memory_space<vmem>>, vector<8x128xf32>,
    %54 = vector.shape_cast %49 : vector<8x1xi1> to vector<8x1xi1>
    %55 = vector.broadcast %54 : vector<8x1xi1> to vector<8x128xi1>
    %56 = arith.select %55, %45, %16 : vector<8x128xi1>, vector<8x128xf32>
    %c0_25 = arith.constant 0 : index
    %c0_26 = arith.constant 0 : index
    %57 = vector.load %arg9[%c0_25, %c0_26] : memref<8x128xf32, #tpu.memory_space<vmem>>, vector<8x128xf32>
    tpu.vector_store %arg9[%c0_25, %c0_26], %56 {strides = array<i32>} : memref<8x128xf32, #tpu.memory_space<vmem>>, vector<8x128xf32>,
    %cst_27 = arith.constant 0.000000e+00 : f32
    %58 = vector.shape_cast %49 : vector<8x1xi1> to vector<8x1xi1>
    %59 = vector.broadcast %58 : vector<8x1xi1> to vector<8x128xi1>
    %60 = vector.broadcast %cst_27 : f32 to vector<8x128xf32>
    %61 = arith.select %59, %47, %60 : vector<8x128xi1>, vector<8x128xf32>
    %62 = arith.index_cast %c0_i32_13 : i32 to index
    %c0_28 = arith.constant 0 : index
    %c0_29 = arith.constant 0 : index
    %63 = vector.load %arg7[%62, %c0_28, %c0_29] : memref<4x8x128xf32, #tpu.memory_space<vmem>>, vector<1x8x128xf32>
    %64 = vector.shape_cast %63 : vector<1x8x128xf32> to vector<8x128xf32>
    %65 = vector.shape_cast %61 : vector<8x128xf32> to vector<1x8x128xf32>
    tpu.vector_store %arg7[%62, %c0_28, %c0_29], %65 {strides = array<i32>} : memref<4x8x128xf32, #tpu.memory_space<vmem>>, vector<1x8x128xf32>,
    %c1_i32 = arith.constant 1 : i32
    %c4_i32_30 = arith.constant 4 : i32
    %66 = arith.muli %arg1, %c4_i32_30 : i32
    %67 = arith.addi %66, %c1_i32 : i32
    %c0_31 = arith.constant 0 : index
    %c0_32 = arith.constant 0 : index
    %68 = vector.load %arg8[%c0_31, %c0_32] : memref<8x128xf32, #tpu.memory_space<vmem>>, vector<8x128xf32>
    %c0_33 = arith.constant 0 : index
    %c0_34 = arith.constant 0 : index
    %69 = vector.load %arg9[%c0_33, %c0_34] : memref<8x128xf32, #tpu.memory_space<vmem>>, vector<8x128xf32>
    %c8_i32_35 = arith.constant 8 : i32
    %70 = arith.muli %c1_i32, %c8_i32_35 : i32
    %71 = tpu.assume_multiple %70, 8 : i32
    %72 = arith.index_cast %71 : i32 to index
    %c0_36 = arith.constant 0 : index
    %73 = vector.load %arg10[%72, %c0_36] : memref<32x512xf32, #tpu.memory_space<vmem>>, vector<8x512xf32>
    %cst_37 = arith.constant dense<0.000000e+00> : vector<8x512xf32>
    %74 = tpu.matmul %68, %4, %cst_37 {dimension_numbers = #tpu.dot_dimension_numbers<[1], [0], [0], [1], [0, 0, 1, 1], [], []>} : vector<8x128xf32>, vector<128x512xf32>, vector<8x512xf32> -> vector<8x512xf32>
    %75 = arith.addf %73, %74 : vector<8x512xf32>
    %76 = vector.extract_strided_slice %75 {offsets = [0, 0], sizes = [8, 128], strides = [1, 1]} : vector<8x512xf32> to vector<8x128xf32>
    %77 = arith.negf %76 : vector<8x128xf32>
    %78 = math.exp %77 : vector<8x128xf32>
    %cst_38 = arith.constant 1.000000e+00 : f32
    %79 = vector.broadcast %cst_38 : f32 to vector<8x128xf32>
    %80 = arith.addf %79, %78 : vector<8x128xf32>
    %81 = arith.divf %79, %80 : vector<8x128xf32>
    %82 = vector.extract_strided_slice %75 {offsets = [0, 128], sizes = [8, 128], strides = [1, 1]} : vector<8x512xf32> to vector<8x128xf32>
    %83 = arith.negf %82 : vector<8x128xf32>
    %84 = math.exp %83 : vector<8x128xf32>
    %cst_39 = arith.constant 1.000000e+00 : f32
    %85 = vector.broadcast %cst_39 : f32 to vector<8x128xf32>
    %86 = arith.addf %85, %84 : vector<8x128xf32>
    %87 = arith.divf %85, %86 : vector<8x128xf32>
    %88 = vector.extract_strided_slice %75 {offsets = [0, 256], sizes = [8, 128], strides = [1, 1]} : vector<8x512xf32> to vector<8x128xf32>
    %89 = math.tanh %88 : vector<8x128xf32>
    %90 = vector.extract_strided_slice %75 {offsets = [0, 384], sizes = [8, 128], strides = [1, 1]} : vector<8x512xf32> to vector<8x128xf32>
    %91 = arith.negf %90 : vector<8x128xf32>
    %92 = math.exp %91 : vector<8x128xf32>
    %cst_40 = arith.constant 1.000000e+00 : f32
    %93 = vector.broadcast %cst_40 : f32 to vector<8x128xf32>
    %94 = arith.addf %93, %92 : vector<8x128xf32>
    %95 = arith.divf %93, %94 : vector<8x128xf32>
    %96 = arith.mulf %87, %69 : vector<8x128xf32>
    %97 = arith.mulf %81, %89 : vector<8x128xf32>
    %98 = arith.addf %96, %97 : vector<8x128xf32>
    %99 = math.tanh %98 : vector<8x128xf32>
    %100 = arith.mulf %95, %99 : vector<8x128xf32>
    %101 = vector.broadcast %67 : i32 to vector<8x1xi32>
    %102 = arith.cmpi slt, %101, %3 : vector<8x1xi32>
    %103 = vector.shape_cast %102 : vector<8x1xi1> to vector<8x1xi1>
    %104 = vector.broadcast %103 : vector<8x1xi1> to vector<8x128xi1>
    %105 = arith.select %104, %100, %68 : vector<8x128xi1>, vector<8x128xf32>
    %c0_41 = arith.constant 0 : index
    %c0_42 = arith.constant 0 : index
    %106 = vector.load %arg8[%c0_41, %c0_42] : memref<8x128xf32, #tpu.memory_space<vmem>>, vector<8x128xf32>
    tpu.vector_store %arg8[%c0_41, %c0_42], %105 {strides = array<i32>} : memref<8x128xf32, #tpu.memory_space<vmem>>, vector<8x128xf32>,
    %107 = vector.shape_cast %102 : vector<8x1xi1> to vector<8x1xi1>
    %108 = vector.broadcast %107 : vector<8x1xi1> to vector<8x128xi1>
    %109 = arith.select %108, %98, %69 : vector<8x128xi1>, vector<8x128xf32>
    %c0_43 = arith.constant 0 : index
    %c0_44 = arith.constant 0 : index
    %110 = vector.load %arg9[%c0_43, %c0_44] : memref<8x128xf32, #tpu.memory_space<vmem>>, vector<8x128xf32>
    tpu.vector_store %arg9[%c0_43, %c0_44], %109 {strides = array<i32>} : memref<8x128xf32, #tpu.memory_space<vmem>>, vector<8x128xf32>,
    %cst_45 = arith.constant 0.000000e+00 : f32
    %111 = vector.shape_cast %102 : vector<8x1xi1> to vector<8x1xi1>
    %112 = vector.broadcast %111 : vector<8x1xi1> to vector<8x128xi1>
    %113 = vector.broadcast %cst_45 : f32 to vector<8x128xf32>
    %114 = arith.select %112, %100, %113 : vector<8x128xi1>, vector<8x128xf32>
    %115 = arith.index_cast %c1_i32 : i32 to index
    %c0_46 = arith.constant 0 : index
    %c0_47 = arith.constant 0 : index
    %116 = vector.load %arg7[%115, %c0_46, %c0_47] : memref<4x8x128xf32, #tpu.memory_space<vmem>>, vector<1x8x128xf32>
    %117 = vector.shape_cast %116 : vector<1x8x128xf32> to vector<8x128xf32>
    %118 = vector.shape_cast %114 : vector<8x128xf32> to vector<1x8x128xf32>
    tpu.vector_store %arg7[%115, %c0_46, %c0_47], %118 {strides = array<i32>} : memref<4x8x128xf32, #tpu.memory_space<vmem>>, vector<1x8x128xf32>,
    %c2_i32 = arith.constant 2 : i32
    %c4_i32_48 = arith.constant 4 : i32
    %119 = arith.muli %arg1, %c4_i32_48 : i32
    %120 = arith.addi %119, %c2_i32 : i32
    %c0_49 = arith.constant 0 : index
    %c0_50 = arith.constant 0 : index
    %121 = vector.load %arg8[%c0_49, %c0_50] : memref<8x128xf32, #tpu.memory_space<vmem>>, vector<8x128xf32>
    %c0_51 = arith.constant 0 : index
    %c0_52 = arith.constant 0 : index
    %122 = vector.load %arg9[%c0_51, %c0_52] : memref<8x128xf32, #tpu.memory_space<vmem>>, vector<8x128xf32>
    %c8_i32_53 = arith.constant 8 : i32
    %123 = arith.muli %c2_i32, %c8_i32_53 : i32
    %124 = tpu.assume_multiple %123, 8 : i32
    %125 = arith.index_cast %124 : i32 to index
    %c0_54 = arith.constant 0 : index
    %126 = vector.load %arg10[%125, %c0_54] : memref<32x512xf32, #tpu.memory_space<vmem>>, vector<8x512xf32>
    %cst_55 = arith.constant dense<0.000000e+00> : vector<8x512xf32>
    %127 = tpu.matmul %121, %4, %cst_55 {dimension_numbers = #tpu.dot_dimension_numbers<[1], [0], [0], [1], [0, 0, 1, 1], [], []>} : vector<8x128xf32>, vector<128x512xf32>, vector<8x512xf32> -> vector<8x512xf32>
    %128 = arith.addf %126, %127 : vector<8x512xf32>
    %129 = vector.extract_strided_slice %128 {offsets = [0, 0], sizes = [8, 128], strides = [1, 1]} : vector<8x512xf32> to vector<8x128xf32>
    %130 = arith.negf %129 : vector<8x128xf32>
    %131 = math.exp %130 : vector<8x128xf32>
    %cst_56 = arith.constant 1.000000e+00 : f32
    %132 = vector.broadcast %cst_56 : f32 to vector<8x128xf32>
    %133 = arith.addf %132, %131 : vector<8x128xf32>
    %134 = arith.divf %132, %133 : vector<8x128xf32>
    %135 = vector.extract_strided_slice %128 {offsets = [0, 128], sizes = [8, 128], strides = [1, 1]} : vector<8x512xf32> to vector<8x128xf32>
    %136 = arith.negf %135 : vector<8x128xf32>
    %137 = math.exp %136 : vector<8x128xf32>
    %cst_57 = arith.constant 1.000000e+00 : f32
    %138 = vector.broadcast %cst_57 : f32 to vector<8x128xf32>
    %139 = arith.addf %138, %137 : vector<8x128xf32>
    %140 = arith.divf %138, %139 : vector<8x128xf32>
    %141 = vector.extract_strided_slice %128 {offsets = [0, 256], sizes = [8, 128], strides = [1, 1]} : vector<8x512xf32> to vector<8x128xf32>
    %142 = math.tanh %141 : vector<8x128xf32>
    %143 = vector.extract_strided_slice %128 {offsets = [0, 384], sizes = [8, 128], strides = [1, 1]} : vector<8x512xf32> to vector<8x128xf32>
    %144 = arith.negf %143 : vector<8x128xf32>
    %145 = math.exp %144 : vector<8x128xf32>
    %cst_58 = arith.constant 1.000000e+00 : f32
    %146 = vector.broadcast %cst_58 : f32 to vector<8x128xf32>
    %147 = arith.addf %146, %145 : vector<8x128xf32>
    %148 = arith.divf %146, %147 : vector<8x128xf32>
    %149 = arith.mulf %140, %122 : vector<8x128xf32>
    %150 = arith.mulf %134, %142 : vector<8x128xf32>
    %151 = arith.addf %149, %150 : vector<8x128xf32>
    %152 = math.tanh %151 : vector<8x128xf32>
    %153 = arith.mulf %148, %152 : vector<8x128xf32>
    %154 = vector.broadcast %120 : i32 to vector<8x1xi32>
    %155 = arith.cmpi slt, %154, %3 : vector<8x1xi32>
    %156 = vector.shape_cast %155 : vector<8x1xi1> to vector<8x1xi1>
    %157 = vector.broadcast %156 : vector<8x1xi1> to vector<8x128xi1>
    %158 = arith.select %157, %153, %121 : vector<8x128xi1>, vector<8x128xf32>
    %c0_59 = arith.constant 0 : index
    %c0_60 = arith.constant 0 : index
    %159 = vector.load %arg8[%c0_59, %c0_60] : memref<8x128xf32, #tpu.memory_space<vmem>>, vector<8x128xf32>
    tpu.vector_store %arg8[%c0_59, %c0_60], %158 {strides = array<i32>} : memref<8x128xf32, #tpu.memory_space<vmem>>, vector<8x128xf32>,
    %160 = vector.shape_cast %155 : vector<8x1xi1> to vector<8x1xi1>
    %161 = vector.broadcast %160 : vector<8x1xi1> to vector<8x128xi1>
    %162 = arith.select %161, %151, %122 : vector<8x128xi1>, vector<8x128xf32>
    %c0_61 = arith.constant 0 : index
    %c0_62 = arith.constant 0 : index
    %163 = vector.load %arg9[%c0_61, %c0_62] : memref<8x128xf32, #tpu.memory_space<vmem>>, vector<8x128xf32>
    tpu.vector_store %arg9[%c0_61, %c0_62], %162 {strides = array<i32>} : memref<8x128xf32, #tpu.memory_space<vmem>>, vector<8x128xf32>,
    %cst_63 = arith.constant 0.000000e+00 : f32
    %164 = vector.shape_cast %155 : vector<8x1xi1> to vector<8x1xi1>
    %165 = vector.broadcast %164 : vector<8x1xi1> to vector<8x128xi1>
    %166 = vector.broadcast %cst_63 : f32 to vector<8x128xf32>
    %167 = arith.select %165, %153, %166 : vector<8x128xi1>, vector<8x128xf32>
    %168 = arith.index_cast %c2_i32 : i32 to index
    %c0_64 = arith.constant 0 : index
    %c0_65 = arith.constant 0 : index
    %169 = vector.load %arg7[%168, %c0_64, %c0_65] : memref<4x8x128xf32, #tpu.memory_space<vmem>>, vector<1x8x128xf32>
    %170 = vector.shape_cast %169 : vector<1x8x128xf32> to vector<8x128xf32>
    %171 = vector.shape_cast %167 : vector<8x128xf32> to vector<1x8x128xf32>
    tpu.vector_store %arg7[%168, %c0_64, %c0_65], %171 {strides = array<i32>} : memref<4x8x128xf32, #tpu.memory_space<vmem>>, vector<1x8x128xf32>,
    %c3_i32 = arith.constant 3 : i32
    %c4_i32_66 = arith.constant 4 : i32
    %172 = arith.muli %arg1, %c4_i32_66 : i32
    %173 = arith.addi %172, %c3_i32 : i32
    %c0_67 = arith.constant 0 : index
    %c0_68 = arith.constant 0 : index
    %174 = vector.load %arg8[%c0_67, %c0_68] : memref<8x128xf32, #tpu.memory_space<vmem>>, vector<8x128xf32>
    %c0_69 = arith.constant 0 : index
    %c0_70 = arith.constant 0 : index
    %175 = vector.load %arg9[%c0_69, %c0_70] : memref<8x128xf32, #tpu.memory_space<vmem>>, vector<8x128xf32>
    %c8_i32_71 = arith.constant 8 : i32
    %176 = arith.muli %c3_i32, %c8_i32_71 : i32
    %177 = tpu.assume_multiple %176, 8 : i32
    %178 = arith.index_cast %177 : i32 to index
    %c0_72 = arith.constant 0 : index
    %179 = vector.load %arg10[%178, %c0_72] : memref<32x512xf32, #tpu.memory_space<vmem>>, vector<8x512xf32>
    %cst_73 = arith.constant dense<0.000000e+00> : vector<8x512xf32>
    %180 = tpu.matmul %174, %4, %cst_73 {dimension_numbers = #tpu.dot_dimension_numbers<[1], [0], [0], [1], [0, 0, 1, 1], [], []>} : vector<8x128xf32>, vector<128x512xf32>, vector<8x512xf32> -> vector<8x512xf32>
    %181 = arith.addf %179, %180 : vector<8x512xf32>
    %182 = vector.extract_strided_slice %181 {offsets = [0, 0], sizes = [8, 128], strides = [1, 1]} : vector<8x512xf32> to vector<8x128xf32>
    %183 = arith.negf %182 : vector<8x128xf32>
    %184 = math.exp %183 : vector<8x128xf32>
    %cst_74 = arith.constant 1.000000e+00 : f32
    %185 = vector.broadcast %cst_74 : f32 to vector<8x128xf32>
    %186 = arith.addf %185, %184 : vector<8x128xf32>
    %187 = arith.divf %185, %186 : vector<8x128xf32>
    %188 = vector.extract_strided_slice %181 {offsets = [0, 128], sizes = [8, 128], strides = [1, 1]} : vector<8x512xf32> to vector<8x128xf32>
    %189 = arith.negf %188 : vector<8x128xf32>
    %190 = math.exp %189 : vector<8x128xf32>
    %cst_75 = arith.constant 1.000000e+00 : f32
    %191 = vector.broadcast %cst_75 : f32 to vector<8x128xf32>
    %192 = arith.addf %191, %190 : vector<8x128xf32>
    %193 = arith.divf %191, %192 : vector<8x128xf32>
    %194 = vector.extract_strided_slice %181 {offsets = [0, 256], sizes = [8, 128], strides = [1, 1]} : vector<8x512xf32> to vector<8x128xf32>
    %195 = math.tanh %194 : vector<8x128xf32>
    %196 = vector.extract_strided_slice %181 {offsets = [0, 384], sizes = [8, 128], strides = [1, 1]} : vector<8x512xf32> to vector<8x128xf32>
    %197 = arith.negf %196 : vector<8x128xf32>
    %198 = math.exp %197 : vector<8x128xf32>
    %cst_76 = arith.constant 1.000000e+00 : f32
    %199 = vector.broadcast %cst_76 : f32 to vector<8x128xf32>
    %200 = arith.addf %199, %198 : vector<8x128xf32>
    %201 = arith.divf %199, %200 : vector<8x128xf32>
    %202 = arith.mulf %193, %175 : vector<8x128xf32>
    %203 = arith.mulf %187, %195 : vector<8x128xf32>
    %204 = arith.addf %202, %203 : vector<8x128xf32>
    %205 = math.tanh %204 : vector<8x128xf32>
    %206 = arith.mulf %201, %205 : vector<8x128xf32>
    %207 = vector.broadcast %173 : i32 to vector<8x1xi32>
    %208 = arith.cmpi slt, %207, %3 : vector<8x1xi32>
    %209 = vector.shape_cast %208 : vector<8x1xi1> to vector<8x1xi1>
    %210 = vector.broadcast %209 : vector<8x1xi1> to vector<8x128xi1>
    %211 = arith.select %210, %206, %174 : vector<8x128xi1>, vector<8x128xf32>
    %c0_77 = arith.constant 0 : index
    %c0_78 = arith.constant 0 : index
    %212 = vector.load %arg8[%c0_77, %c0_78] : memref<8x128xf32, #tpu.memory_space<vmem>>, vector<8x128xf32>
    tpu.vector_store %arg8[%c0_77, %c0_78], %211 {strides = array<i32>} : memref<8x128xf32, #tpu.memory_space<vmem>>, vector<8x128xf32>,
    %213 = vector.shape_cast %208 : vector<8x1xi1> to vector<8x1xi1>
    %214 = vector.broadcast %213 : vector<8x1xi1> to vector<8x128xi1>
    %215 = arith.select %214, %204, %175 : vector<8x128xi1>, vector<8x128xf32>
    %c0_79 = arith.constant 0 : index
    %c0_80 = arith.constant 0 : index
    %216 = vector.load %arg9[%c0_79, %c0_80] : memref<8x128xf32, #tpu.memory_space<vmem>>, vector<8x128xf32>
    tpu.vector_store %arg9[%c0_79, %c0_80], %215 {strides = array<i32>} : memref<8x128xf32, #tpu.memory_space<vmem>>, vector<8x128xf32>,
    %cst_81 = arith.constant 0.000000e+00 : f32
    %217 = vector.shape_cast %208 : vector<8x1xi1> to vector<8x1xi1>
    %218 = vector.broadcast %217 : vector<8x1xi1> to vector<8x128xi1>
    %219 = vector.broadcast %cst_81 : f32 to vector<8x128xf32>
    %220 = arith.select %218, %206, %219 : vector<8x128xi1>, vector<8x128xf32>
    %221 = arith.index_cast %c3_i32 : i32 to index
    %c0_82 = arith.constant 0 : index
    %c0_83 = arith.constant 0 : index
    %222 = vector.load %arg7[%221, %c0_82, %c0_83] : memref<4x8x128xf32, #tpu.memory_space<vmem>>, vector<1x8x128xf32>
    %223 = vector.shape_cast %222 : vector<1x8x128xf32> to vector<8x128xf32>
    %224 = vector.shape_cast %220 : vector<8x128xf32> to vector<1x8x128xf32>
    tpu.vector_store %arg7[%221, %c0_82, %c0_83], %224 {strides = array<i32>} : memref<4x8x128xf32, #tpu.memory_space<vmem>>, vector<1x8x128xf32>,
    %c4_i32_84 = arith.constant 4 : i32
    return
  }
  func.func @transform_0(%arg0: i32, %arg1: i32) -> (i32, i32, i32) {
    %c0_i32 = arith.constant 0 : i32
    %c0_i32_0 = arith.constant 0 : i32
    return %arg1, %arg0, %c0_i32 : i32, i32, i32
  }
  func.func @transform_1(%arg0: i32, %arg1: i32) -> (i32, i32) {
    %c0_i32 = arith.constant 0 : i32
    %c0_i32_0 = arith.constant 0 : i32
    %c0_i32_1 = arith.constant 0 : i32
    return %c0_i32, %c0_i32_0 : i32, i32
  }
  func.func @transform_2(%arg0: i32, %arg1: i32) -> (i32, i32) {
    %c0_i32 = arith.constant 0 : i32
    %c0_i32_0 = arith.constant 0 : i32
    %c0_i32_1 = arith.constant 0 : i32
    return %c0_i32, %c0_i32_0 : i32, i32
  }
  func.func @transform_3(%arg0: i32, %arg1: i32) -> (i32, i32) {
    %c0_i32 = arith.constant 0 : i32
    %c0_i32_0 = arith.constant 0 : i32
    %c0_i32_1 = arith.constant 0 : i32
    return %c0_i32, %c0_i32_0 : i32, i32
  }
  func.func @transform_4(%arg0: i32, %arg1: i32) -> (i32, i32) {
    %c0_i32 = arith.constant 0 : i32
    %c0_i32_0 = arith.constant 0 : i32
    return %arg0, %c0_i32 : i32, i32
  }
  func.func @transform_5(%arg0: i32, %arg1: i32) -> (i32, i32, i32) {
    %c0_i32 = arith.constant 0 : i32
    %c0_i32_0 = arith.constant 0 : i32
    return %arg1, %arg0, %c0_i32 : i32, i32, i32
  }
  func.func @transform_6(%arg0: i32, %arg1: i32) -> (i32, i32) {
    %c0_i32 = arith.constant 0 : i32
    %c0_i32_0 = arith.constant 0 : i32
    return %arg0, %c0_i32 : i32, i32
  }
  func.func @transform_7(%arg0: i32, %arg1: i32) -> (i32, i32) {
    %c0_i32 = arith.constant 0 : i32
    %c0_i32_0 = arith.constant 0 : i32
    return %arg0, %c0_i32 : i32, i32
  }
}

module attributes {stable_mosaic.version = 11 : i64} {
  func.func @_lstm_block_kernel(%arg0: i32, %arg1: i32, %arg2: memref<4x8x32xf32, #tpu.memory_space<vmem>>, %arg3: memref<32x512xf32, #tpu.memory_space<vmem>>, %arg4: memref<128x512xf32, #tpu.memory_space<vmem>>, %arg5: memref<1x512xf32, #tpu.memory_space<vmem>>, %arg6: memref<8x1xi32, #tpu.memory_space<vmem>>, %arg7: memref<4x8x128xf32, #tpu.memory_space<vmem>>, %arg8: memref<8x128xf32, #tpu.memory_space<vmem>>, %arg9: memref<8x128xf32, #tpu.memory_space<vmem>>, %arg10: memref<32x512xf32, #tpu.memory_space<vmem>>) attributes {dimension_semantics = [#tpu.dimension_semantics<parallel>, #tpu.dimension_semantics<arbitrary>], iteration_bounds = array<i64: 1, 2>, scalar_prefetch = 0 : i64, scratch_operands = 1 : i64, tpu.core_type = #tpu.core_type<tc>, window_params = [{transform_indices = @transform_0, window_bounds = array<i64: 4, 8, 32>}, {pipeline_mode = #tpu.pipeline_mode<synchronous>, transform_indices = @transform_1, window_bounds = array<i64: 32, 512>}, {pipeline_mode = #tpu.pipeline_mode<synchronous>, transform_indices = @transform_2, window_bounds = array<i64: 128, 512>}, {pipeline_mode = #tpu.pipeline_mode<synchronous>, transform_indices = @transform_3, window_bounds = array<i64: 1, 512>}, {transform_indices = @transform_4, window_bounds = array<i64: 8, 1>}, {transform_indices = @transform_5, window_bounds = array<i64: 4, 8, 128>}, {transform_indices = @transform_6, window_bounds = array<i64: 8, 128>}, {transform_indices = @transform_7, window_bounds = array<i64: 8, 128>}]} {
    %c0_i32 = arith.constant 0 : i32
    %0 = arith.cmpi eq, %arg1, %c0_i32 : i32
    %1 = arith.extui %0 : i1 to i32
    %c0_i32_0 = arith.constant 0 : i32
    %2 = arith.cmpi ne, %1, %c0_i32_0 : i32
    scf.if %2 {
      %cst_85 = arith.constant 0.000000e+00 : f32
      %225 = vector.broadcast %cst_85 : f32 to vector<8x128xf32>
      %c0_86 = arith.constant 0 : index
      %c0_87 = arith.constant 0 : index
      %226 = vector.load %arg8[%c0_86, %c0_87] : memref<8x128xf32, #tpu.memory_space<vmem>>, vector<8x128xf32>
      tpu.vector_store %arg8[%c0_86, %c0_87], %225 {strides = array<i32>} : memref<8x128xf32, #tpu.memory_space<vmem>>, vector<8x128xf32>,
      %cst_88 = arith.constant 0.000000e+00 : f32
      %227 = vector.broadcast %cst_88 : f32 to vector<8x128xf32>
      %c0_89 = arith.constant 0 : index
      %c0_90 = arith.constant 0 : index
      %228 = vector.load %arg9[%c0_89, %c0_90] : memref<8x128xf32, #tpu.memory_space<vmem>>, vector<8x128xf32>
      tpu.vector_store %arg9[%c0_89, %c0_90], %227 {strides = array<i32>} : memref<8x128xf32, #tpu.memory_space<vmem>>, vector<8x128xf32>,
    } else {
    }
    %c0 = arith.constant 0 : index
    %c0_1 = arith.constant 0 : index
    %3 = vector.load %arg6[%c0, %c0_1] : memref<8x1xi32, #tpu.memory_space<vmem>>, vector<8x1xi32>
    %c0_2 = arith.constant 0 : index
    %c0_3 = arith.constant 0 : index
    %4 = vector.load %arg4[%c0_2, %c0_3] : memref<128x512xf32, #tpu.memory_space<vmem>>, vector<128x512xf32>
    %c0_4 = arith.constant 0 : index
    %c0_5 = arith.constant 0 : index
    %c0_6 = arith.constant 0 : index
    %5 = vector.load %arg2[%c0_4, %c0_5, %c0_6] : memref<4x8x32xf32, #tpu.memory_space<vmem>>, vector<4x8x32xf32>
    %6 = vector.shape_cast %5 : vector<4x8x32xf32> to vector<32x32xf32>
    %c0_7 = arith.constant 0 : index
    %c0_8 = arith.constant 0 : index
    %7 = vector.load %arg3[%c0_7, %c0_8] : memref<32x512xf32, #tpu.memory_space<vmem>>, vector<32x512xf32>
    %cst = arith.constant dense<0.000000e+00> : vector<32x512xf32>
    %8 = tpu.matmul %6, %7, %cst {dimension_numbers = #tpu.dot_dimension_numbers<[1], [0], [0], [1], [0, 0, 1, 1], [], []>} : vector<32x32xf32>, vector<32x512xf32>, vector<32x512xf32> -> vector<32x512xf32>
    %c0_9 = arith.constant 0 : index
    %c0_10 = arith.constant 0 : index
    %9 = vector.load %arg5[%c0_9, %c0_10] : memref<1x512xf32, #tpu.memory_space<vmem>>, vector<1x512xf32>
    %10 = vector.broadcast %9 : vector<1x512xf32> to vector<32x512xf32>
    %11 = arith.addf %8, %10 : vector<32x512xf32>
    %c0_11 = arith.constant 0 : index
    %c0_12 = arith.constant 0 : index
    %12 = vector.load %arg10[%c0_11, %c0_12] : memref<32x512xf32, #tpu.memory_space<vmem>>, vector<32x512xf32>
    tpu.vector_store %arg10[%c0_11, %c0_12], %11 {strides = array<i32>} : memref<32x512xf32, #tpu.memory_space<vmem>>, vector<32x512xf32>,
    %c0_i32_13 = arith.constant 0 : i32
    %c4_i32 = arith.constant 4 : i32
    %13 = arith.muli %arg1, %c4_i32 : i32
    %14 = arith.addi %13, %c0_i32_13 : i32
    %c0_14 = arith.constant 0 : index
    %c0_15 = arith.constant 0 : index
    %15 = vector.load %arg8[%c0_14, %c0_15] : memref<8x128xf32, #tpu.memory_space<vmem>>, vector<8x128xf32>
    %c0_16 = arith.constant 0 : index
    %c0_17 = arith.constant 0 : index
    %16 = vector.load %arg9[%c0_16, %c0_17] : memref<8x128xf32, #tpu.memory_space<vmem>>, vector<8x128xf32>
    %c8_i32 = arith.constant 8 : i32
    %17 = arith.muli %c0_i32_13, %c8_i32 : i32
    %18 = tpu.assume_multiple %17, 8 : i32
    %19 = arith.index_cast %18 : i32 to index
    %c0_18 = arith.constant 0 : index
    %20 = vector.load %arg10[%19, %c0_18] : memref<32x512xf32, #tpu.memory_space<vmem>>, vector<8x512xf32>
    %cst_19 = arith.constant dense<0.000000e+00> : vector<8x512xf32>
    %21 = tpu.matmul %15, %4, %cst_19 {dimension_numbers = #tpu.dot_dimension_numbers<[1], [0], [0], [1], [0, 0, 1, 1], [], []>} : vector<8x128xf32>, vector<128x512xf32>, vector<8x512xf32> -> vector<8x512xf32>
    %22 = arith.addf %20, %21 : vector<8x512xf32>
    %23 = vector.extract_strided_slice %22 {offsets = [0, 0], sizes = [8, 128], strides = [1, 1]} : vector<8x512xf32> to vector<8x128xf32>
    %24 = arith.negf %23 : vector<8x128xf32>
    %25 = math.exp %24 : vector<8x128xf32>
    %cst_20 = arith.constant 1.000000e+00 : f32
    %26 = vector.broadcast %cst_20 : f32 to vector<8x128xf32>
    %27 = arith.addf %26, %25 : vector<8x128xf32>
    %28 = arith.divf %26, %27 : vector<8x128xf32>
    %29 = vector.extract_strided_slice %22 {offsets = [0, 128], sizes = [8, 128], strides = [1, 1]} : vector<8x512xf32> to vector<8x128xf32>
    %30 = arith.negf %29 : vector<8x128xf32>
    %31 = math.exp %30 : vector<8x128xf32>
    %cst_21 = arith.constant 1.000000e+00 : f32
    %32 = vector.broadcast %cst_21 : f32 to vector<8x128xf32>
    %33 = arith.addf %32, %31 : vector<8x128xf32>
    %34 = arith.divf %32, %33 : vector<8x128xf32>
    %35 = vector.extract_strided_slice %22 {offsets = [0, 256], sizes = [8, 128], strides = [1, 1]} : vector<8x512xf32> to vector<8x128xf32>
    %36 = math.tanh %35 : vector<8x128xf32>
    %37 = vector.extract_strided_slice %22 {offsets = [0, 384], sizes = [8, 128], strides = [1, 1]} : vector<8x512xf32> to vector<8x128xf32>
    %38 = arith.negf %37 : vector<8x128xf32>
    %39 = math.exp %38 : vector<8x128xf32>
    %cst_22 = arith.constant 1.000000e+00 : f32
    %40 = vector.broadcast %cst_22 : f32 to vector<8x128xf32>
    %41 = arith.addf %40, %39 : vector<8x128xf32>
    %42 = arith.divf %40, %41 : vector<8x128xf32>
    %43 = arith.mulf %34, %16 : vector<8x128xf32>
    %44 = arith.mulf %28, %36 : vector<8x128xf32>
    %45 = arith.addf %43, %44 : vector<8x128xf32>
    %46 = math.tanh %45 : vector<8x128xf32>
    %47 = arith.mulf %42, %46 : vector<8x128xf32>
    %48 = vector.broadcast %14 : i32 to vector<8x1xi32>
    %49 = arith.cmpi slt, %48, %3 : vector<8x1xi32>
    %50 = vector.shape_cast %49 : vector<8x1xi1> to vector<8x1xi1>
    %51 = vector.broadcast %50 : vector<8x1xi1> to vector<8x128xi1>
    %52 = arith.select %51, %47, %15 : vector<8x128xi1>, vector<8x128xf32>
    %c0_23 = arith.constant 0 : index
    %c0_24 = arith.constant 0 : index
    %53 = vector.load %arg8[%c0_23, %c0_24] : memref<8x128xf32, #tpu.memory_space<vmem>>, vector<8x128xf32>
    tpu.vector_store %arg8[%c0_23, %c0_24], %52 {strides = array<i32>} : memref<8x128xf32, #tpu.memory_space<vmem>>, vector<8x128xf32>,
    %54 = vector.shape_cast %49 : vector<8x1xi1> to vector<8x1xi1>
    %55 = vector.broadcast %54 : vector<8x1xi1> to vector<8x128xi1>
    %56 = arith.select %55, %45, %16 : vector<8x128xi1>, vector<8x128xf32>
    %c0_25 = arith.constant 0 : index
    %c0_26 = arith.constant 0 : index
    %57 = vector.load %arg9[%c0_25, %c0_26] : memref<8x128xf32, #tpu.memory_space<vmem>>, vector<8x128xf32>
    tpu.vector_store %arg9[%c0_25, %c0_26], %56 {strides = array<i32>} : memref<8x128xf32, #tpu.memory_space<vmem>>, vector<8x128xf32>,
    %cst_27 = arith.constant 0.000000e+00 : f32
    %58 = vector.shape_cast %49 : vector<8x1xi1> to vector<8x1xi1>
    %59 = vector.broadcast %58 : vector<8x1xi1> to vector<8x128xi1>
    %60 = vector.broadcast %cst_27 : f32 to vector<8x128xf32>
    %61 = arith.select %59, %47, %60 : vector<8x128xi1>, vector<8x128xf32>
    %62 = arith.index_cast %c0_i32_13 : i32 to index
    %c0_28 = arith.constant 0 : index
    %c0_29 = arith.constant 0 : index
    %63 = vector.load %arg7[%62, %c0_28, %c0_29] : memref<4x8x128xf32, #tpu.memory_space<vmem>>, vector<1x8x128xf32>
    %64 = vector.shape_cast %63 : vector<1x8x128xf32> to vector<8x128xf32>
    %65 = vector.shape_cast %61 : vector<8x128xf32> to vector<1x8x128xf32>
    tpu.vector_store %arg7[%62, %c0_28, %c0_29], %65 {strides = array<i32>} : memref<4x8x128xf32, #tpu.memory_space<vmem>>, vector<1x8x128xf32>,
    %c1_i32 = arith.constant 1 : i32
    %c4_i32_30 = arith.constant 4 : i32
    %66 = arith.muli %arg1, %c4_i32_30 : i32
    %67 = arith.addi %66, %c1_i32 : i32
    %c0_31 = arith.constant 0 : index
    %c0_32 = arith.constant 0 : index
    %68 = vector.load %arg8[%c0_31, %c0_32] : memref<8x128xf32, #tpu.memory_space<vmem>>, vector<8x128xf32>
    %c0_33 = arith.constant 0 : index
    %c0_34 = arith.constant 0 : index
    %69 = vector.load %arg9[%c0_33, %c0_34] : memref<8x128xf32, #tpu.memory_space<vmem>>, vector<8x128xf32>
    %c8_i32_35 = arith.constant 8 : i32
    %70 = arith.muli %c1_i32, %c8_i32_35 : i32
    %71 = tpu.assume_multiple %70, 8 : i32
    %72 = arith.index_cast %71 : i32 to index
    %c0_36 = arith.constant 0 : index
    %73 = vector.load %arg10[%72, %c0_36] : memref<32x512xf32, #tpu.memory_space<vmem>>, vector<8x512xf32>
    %cst_37 = arith.constant dense<0.000000e+00> : vector<8x512xf32>
    %74 = tpu.matmul %68, %4, %cst_37 {dimension_numbers = #tpu.dot_dimension_numbers<[1], [0], [0], [1], [0, 0, 1, 1], [], []>} : vector<8x128xf32>, vector<128x512xf32>, vector<8x512xf32> -> vector<8x512xf32>
    %75 = arith.addf %73, %74 : vector<8x512xf32>
    %76 = vector.extract_strided_slice %75 {offsets = [0, 0], sizes = [8, 128], strides = [1, 1]} : vector<8x512xf32> to vector<8x128xf32>
    %77 = arith.negf %76 : vector<8x128xf32>
    %78 = math.exp %77 : vector<8x128xf32>
    %cst_38 = arith.constant 1.000000e+00 : f32
    %79 = vector.broadcast %cst_38 : f32 to vector<8x128xf32>
    %80 = arith.addf %79, %78 : vector<8x128xf32>
    %81 = arith.divf %79, %80 : vector<8x128xf32>
    %82 = vector.extract_strided_slice %75 {offsets = [0, 128], sizes = [8, 128], strides = [1, 1]} : vector<8x512xf32> to vector<8x128xf32>
    %83 = arith.negf %82 : vector<8x128xf32>
    %84 = math.exp %83 : vector<8x128xf32>
    %cst_39 = arith.constant 1.000000e+00 : f32
    %85 = vector.broadcast %cst_39 : f32 to vector<8x128xf32>
    %86 = arith.addf %85, %84 : vector<8x128xf32>
    %87 = arith.divf %85, %86 : vector<8x128xf32>
    %88 = vector.extract_strided_slice %75 {offsets = [0, 256], sizes = [8, 128], strides = [1, 1]} : vector<8x512xf32> to vector<8x128xf32>
    %89 = math.tanh %88 : vector<8x128xf32>
    %90 = vector.extract_strided_slice %75 {offsets = [0, 384], sizes = [8, 128], strides = [1, 1]} : vector<8x512xf32> to vector<8x128xf32>
    %91 = arith.negf %90 : vector<8x128xf32>
    %92 = math.exp %91 : vector<8x128xf32>
    %cst_40 = arith.constant 1.000000e+00 : f32
    %93 = vector.broadcast %cst_40 : f32 to vector<8x128xf32>
    %94 = arith.addf %93, %92 : vector<8x128xf32>
    %95 = arith.divf %93, %94 : vector<8x128xf32>
    %96 = arith.mulf %87, %69 : vector<8x128xf32>
    %97 = arith.mulf %81, %89 : vector<8x128xf32>
    %98 = arith.addf %96, %97 : vector<8x128xf32>
    %99 = math.tanh %98 : vector<8x128xf32>
    %100 = arith.mulf %95, %99 : vector<8x128xf32>
    %101 = vector.broadcast %67 : i32 to vector<8x1xi32>
    %102 = arith.cmpi slt, %101, %3 : vector<8x1xi32>
    %103 = vector.shape_cast %102 : vector<8x1xi1> to vector<8x1xi1>
    %104 = vector.broadcast %103 : vector<8x1xi1> to vector<8x128xi1>
    %105 = arith.select %104, %100, %68 : vector<8x128xi1>, vector<8x128xf32>
    %c0_41 = arith.constant 0 : index
    %c0_42 = arith.constant 0 : index
    %106 = vector.load %arg8[%c0_41, %c0_42] : memref<8x128xf32, #tpu.memory_space<vmem>>, vector<8x128xf32>
    tpu.vector_store %arg8[%c0_41, %c0_42], %105 {strides = array<i32>} : memref<8x128xf32, #tpu.memory_space<vmem>>, vector<8x128xf32>,
    %107 = vector.shape_cast %102 : vector<8x1xi1> to vector<8x1xi1>
    %108 = vector.broadcast %107 : vector<8x1xi1> to vector<8x128xi1>
    %109 = arith.select %108, %98, %69 : vector<8x128xi1>, vector<8x128xf32>
    %c0_43 = arith.constant 0 : index
    %c0_44 = arith.constant 0 : index
    %110 = vector.load %arg9[%c0_43, %c0_44] : memref<8x128xf32, #tpu.memory_space<vmem>>, vector<8x128xf32>
    tpu.vector_store %arg9[%c0_43, %c0_44], %109 {strides = array<i32>} : memref<8x128xf32, #tpu.memory_space<vmem>>, vector<8x128xf32>,
    %cst_45 = arith.constant 0.000000e+00 : f32
    %111 = vector.shape_cast %102 : vector<8x1xi1> to vector<8x1xi1>
    %112 = vector.broadcast %111 : vector<8x1xi1> to vector<8x128xi1>
    %113 = vector.broadcast %cst_45 : f32 to vector<8x128xf32>
    %114 = arith.select %112, %100, %113 : vector<8x128xi1>, vector<8x128xf32>
    %115 = arith.index_cast %c1_i32 : i32 to index
    %c0_46 = arith.constant 0 : index
    %c0_47 = arith.constant 0 : index
    %116 = vector.load %arg7[%115, %c0_46, %c0_47] : memref<4x8x128xf32, #tpu.memory_space<vmem>>, vector<1x8x128xf32>
    %117 = vector.shape_cast %116 : vector<1x8x128xf32> to vector<8x128xf32>
    %118 = vector.shape_cast %114 : vector<8x128xf32> to vector<1x8x128xf32>
    tpu.vector_store %arg7[%115, %c0_46, %c0_47], %118 {strides = array<i32>} : memref<4x8x128xf32, #tpu.memory_space<vmem>>, vector<1x8x128xf32>,
    %c2_i32 = arith.constant 2 : i32
    %c4_i32_48 = arith.constant 4 : i32
    %119 = arith.muli %arg1, %c4_i32_48 : i32
    %120 = arith.addi %119, %c2_i32 : i32
    %c0_49 = arith.constant 0 : index
    %c0_50 = arith.constant 0 : index
    %121 = vector.load %arg8[%c0_49, %c0_50] : memref<8x128xf32, #tpu.memory_space<vmem>>, vector<8x128xf32>
    %c0_51 = arith.constant 0 : index
    %c0_52 = arith.constant 0 : index
    %122 = vector.load %arg9[%c0_51, %c0_52] : memref<8x128xf32, #tpu.memory_space<vmem>>, vector<8x128xf32>
    %c8_i32_53 = arith.constant 8 : i32
    %123 = arith.muli %c2_i32, %c8_i32_53 : i32
    %124 = tpu.assume_multiple %123, 8 : i32
    %125 = arith.index_cast %124 : i32 to index
    %c0_54 = arith.constant 0 : index
    %126 = vector.load %arg10[%125, %c0_54] : memref<32x512xf32, #tpu.memory_space<vmem>>, vector<8x512xf32>
    %cst_55 = arith.constant dense<0.000000e+00> : vector<8x512xf32>
    %127 = tpu.matmul %121, %4, %cst_55 {dimension_numbers = #tpu.dot_dimension_numbers<[1], [0], [0], [1], [0, 0, 1, 1], [], []>} : vector<8x128xf32>, vector<128x512xf32>, vector<8x512xf32> -> vector<8x512xf32>
    %128 = arith.addf %126, %127 : vector<8x512xf32>
    %129 = vector.extract_strided_slice %128 {offsets = [0, 0], sizes = [8, 128], strides = [1, 1]} : vector<8x512xf32> to vector<8x128xf32>
    %130 = arith.negf %129 : vector<8x128xf32>
    %131 = math.exp %130 : vector<8x128xf32>
    %cst_56 = arith.constant 1.000000e+00 : f32
    %132 = vector.broadcast %cst_56 : f32 to vector<8x128xf32>
    %133 = arith.addf %132, %131 : vector<8x128xf32>
    %134 = arith.divf %132, %133 : vector<8x128xf32>
    %135 = vector.extract_strided_slice %128 {offsets = [0, 128], sizes = [8, 128], strides = [1, 1]} : vector<8x512xf32> to vector<8x128xf32>
    %136 = arith.negf %135 : vector<8x128xf32>
    %137 = math.exp %136 : vector<8x128xf32>
    %cst_57 = arith.constant 1.000000e+00 : f32
    %138 = vector.broadcast %cst_57 : f32 to vector<8x128xf32>
    %139 = arith.addf %138, %137 : vector<8x128xf32>
    %140 = arith.divf %138, %139 : vector<8x128xf32>
    %141 = vector.extract_strided_slice %128 {offsets = [0, 256], sizes = [8, 128], strides = [1, 1]} : vector<8x512xf32> to vector<8x128xf32>
    %142 = math.tanh %141 : vector<8x128xf32>
    %143 = vector.extract_strided_slice %128 {offsets = [0, 384], sizes = [8, 128], strides = [1, 1]} : vector<8x512xf32> to vector<8x128xf32>
    %144 = arith.negf %143 : vector<8x128xf32>
    %145 = math.exp %144 : vector<8x128xf32>
    %cst_58 = arith.constant 1.000000e+00 : f32
    %146 = vector.broadcast %cst_58 : f32 to vector<8x128xf32>
    %147 = arith.addf %146, %145 : vector<8x128xf32>
    %148 = arith.divf %146, %147 : vector<8x128xf32>
    %149 = arith.mulf %140, %122 : vector<8x128xf32>
    %150 = arith.mulf %134, %142 : vector<8x128xf32>
    %151 = arith.addf %149, %150 : vector<8x128xf32>
    %152 = math.tanh %151 : vector<8x128xf32>
    %153 = arith.mulf %148, %152 : vector<8x128xf32>
    %154 = vector.broadcast %120 : i32 to vector<8x1xi32>
    %155 = arith.cmpi slt, %154, %3 : vector<8x1xi32>
    %156 = vector.shape_cast %155 : vector<8x1xi1> to vector<8x1xi1>
    %157 = vector.broadcast %156 : vector<8x1xi1> to vector<8x128xi1>
    %158 = arith.select %157, %153, %121 : vector<8x128xi1>, vector<8x128xf32>
    %c0_59 = arith.constant 0 : index
    %c0_60 = arith.constant 0 : index
    %159 = vector.load %arg8[%c0_59, %c0_60] : memref<8x128xf32, #tpu.memory_space<vmem>>, vector<8x128xf32>
    tpu.vector_store %arg8[%c0_59, %c0_60], %158 {strides = array<i32>} : memref<8x128xf32, #tpu.memory_space<vmem>>, vector<8x128xf32>,
    %160 = vector.shape_cast %155 : vector<8x1xi1> to vector<8x1xi1>
    %161 = vector.broadcast %160 : vector<8x1xi1> to vector<8x128xi1>
    %162 = arith.select %161, %151, %122 : vector<8x128xi1>, vector<8x128xf32>
    %c0_61 = arith.constant 0 : index
    %c0_62 = arith.constant 0 : index
    %163 = vector.load %arg9[%c0_61, %c0_62] : memref<8x128xf32, #tpu.memory_space<vmem>>, vector<8x128xf32>
    tpu.vector_store %arg9[%c0_61, %c0_62], %162 {strides = array<i32>} : memref<8x128xf32, #tpu.memory_space<vmem>>, vector<8x128xf32>,
    %cst_63 = arith.constant 0.000000e+00 : f32
    %164 = vector.shape_cast %155 : vector<8x1xi1> to vector<8x1xi1>
    %165 = vector.broadcast %164 : vector<8x1xi1> to vector<8x128xi1>
    %166 = vector.broadcast %cst_63 : f32 to vector<8x128xf32>
    %167 = arith.select %165, %153, %166 : vector<8x128xi1>, vector<8x128xf32>
    %168 = arith.index_cast %c2_i32 : i32 to index
    %c0_64 = arith.constant 0 : index
    %c0_65 = arith.constant 0 : index
    %169 = vector.load %arg7[%168, %c0_64, %c0_65] : memref<4x8x128xf32, #tpu.memory_space<vmem>>, vector<1x8x128xf32>
    %170 = vector.shape_cast %169 : vector<1x8x128xf32> to vector<8x128xf32>
    %171 = vector.shape_cast %167 : vector<8x128xf32> to vector<1x8x128xf32>
    tpu.vector_store %arg7[%168, %c0_64, %c0_65], %171 {strides = array<i32>} : memref<4x8x128xf32, #tpu.memory_space<vmem>>, vector<1x8x128xf32>,
    %c3_i32 = arith.constant 3 : i32
    %c4_i32_66 = arith.constant 4 : i32
    %172 = arith.muli %arg1, %c4_i32_66 : i32
    %173 = arith.addi %172, %c3_i32 : i32
    %c0_67 = arith.constant 0 : index
    %c0_68 = arith.constant 0 : index
    %174 = vector.load %arg8[%c0_67, %c0_68] : memref<8x128xf32, #tpu.memory_space<vmem>>, vector<8x128xf32>
    %c0_69 = arith.constant 0 : index
    %c0_70 = arith.constant 0 : index
    %175 = vector.load %arg9[%c0_69, %c0_70] : memref<8x128xf32, #tpu.memory_space<vmem>>, vector<8x128xf32>
    %c8_i32_71 = arith.constant 8 : i32
    %176 = arith.muli %c3_i32, %c8_i32_71 : i32
    %177 = tpu.assume_multiple %176, 8 : i32
    %178 = arith.index_cast %177 : i32 to index
    %c0_72 = arith.constant 0 : index
    %179 = vector.load %arg10[%178, %c0_72] : memref<32x512xf32, #tpu.memory_space<vmem>>, vector<8x512xf32>
    %cst_73 = arith.constant dense<0.000000e+00> : vector<8x512xf32>
    %180 = tpu.matmul %174, %4, %cst_73 {dimension_numbers = #tpu.dot_dimension_numbers<[1], [0], [0], [1], [0, 0, 1, 1], [], []>} : vector<8x128xf32>, vector<128x512xf32>, vector<8x512xf32> -> vector<8x512xf32>
    %181 = arith.addf %179, %180 : vector<8x512xf32>
    %182 = vector.extract_strided_slice %181 {offsets = [0, 0], sizes = [8, 128], strides = [1, 1]} : vector<8x512xf32> to vector<8x128xf32>
    %183 = arith.negf %182 : vector<8x128xf32>
    %184 = math.exp %183 : vector<8x128xf32>
    %cst_74 = arith.constant 1.000000e+00 : f32
    %185 = vector.broadcast %cst_74 : f32 to vector<8x128xf32>
    %186 = arith.addf %185, %184 : vector<8x128xf32>
    %187 = arith.divf %185, %186 : vector<8x128xf32>
    %188 = vector.extract_strided_slice %181 {offsets = [0, 128], sizes = [8, 128], strides = [1, 1]} : vector<8x512xf32> to vector<8x128xf32>
    %189 = arith.negf %188 : vector<8x128xf32>
    %190 = math.exp %189 : vector<8x128xf32>
    %cst_75 = arith.constant 1.000000e+00 : f32
    %191 = vector.broadcast %cst_75 : f32 to vector<8x128xf32>
    %192 = arith.addf %191, %190 : vector<8x128xf32>
    %193 = arith.divf %191, %192 : vector<8x128xf32>
    %194 = vector.extract_strided_slice %181 {offsets = [0, 256], sizes = [8, 128], strides = [1, 1]} : vector<8x512xf32> to vector<8x128xf32>
    %195 = math.tanh %194 : vector<8x128xf32>
    %196 = vector.extract_strided_slice %181 {offsets = [0, 384], sizes = [8, 128], strides = [1, 1]} : vector<8x512xf32> to vector<8x128xf32>
    %197 = arith.negf %196 : vector<8x128xf32>
    %198 = math.exp %197 : vector<8x128xf32>
    %cst_76 = arith.constant 1.000000e+00 : f32
    %199 = vector.broadcast %cst_76 : f32 to vector<8x128xf32>
    %200 = arith.addf %199, %198 : vector<8x128xf32>
    %201 = arith.divf %199, %200 : vector<8x128xf32>
    %202 = arith.mulf %193, %175 : vector<8x128xf32>
    %203 = arith.mulf %187, %195 : vector<8x128xf32>
    %204 = arith.addf %202, %203 : vector<8x128xf32>
    %205 = math.tanh %204 : vector<8x128xf32>
    %206 = arith.mulf %201, %205 : vector<8x128xf32>
    %207 = vector.broadcast %173 : i32 to vector<8x1xi32>
    %208 = arith.cmpi slt, %207, %3 : vector<8x1xi32>
    %209 = vector.shape_cast %208 : vector<8x1xi1> to vector<8x1xi1>
    %210 = vector.broadcast %209 : vector<8x1xi1> to vector<8x128xi1>
    %211 = arith.select %210, %206, %174 : vector<8x128xi1>, vector<8x128xf32>
    %c0_77 = arith.constant 0 : index
    %c0_78 = arith.constant 0 : index
    %212 = vector.load %arg8[%c0_77, %c0_78] : memref<8x128xf32, #tpu.memory_space<vmem>>, vector<8x128xf32>
    tpu.vector_store %arg8[%c0_77, %c0_78], %211 {strides = array<i32>} : memref<8x128xf32, #tpu.memory_space<vmem>>, vector<8x128xf32>,
    %213 = vector.shape_cast %208 : vector<8x1xi1> to vector<8x1xi1>
    %214 = vector.broadcast %213 : vector<8x1xi1> to vector<8x128xi1>
    %215 = arith.select %214, %204, %175 : vector<8x128xi1>, vector<8x128xf32>
    %c0_79 = arith.constant 0 : index
    %c0_80 = arith.constant 0 : index
    %216 = vector.load %arg9[%c0_79, %c0_80] : memref<8x128xf32, #tpu.memory_space<vmem>>, vector<8x128xf32>
    tpu.vector_store %arg9[%c0_79, %c0_80], %215 {strides = array<i32>} : memref<8x128xf32, #tpu.memory_space<vmem>>, vector<8x128xf32>,
    %cst_81 = arith.constant 0.000000e+00 : f32
    %217 = vector.shape_cast %208 : vector<8x1xi1> to vector<8x1xi1>
    %218 = vector.broadcast %217 : vector<8x1xi1> to vector<8x128xi1>
    %219 = vector.broadcast %cst_81 : f32 to vector<8x128xf32>
    %220 = arith.select %218, %206, %219 : vector<8x128xi1>, vector<8x128xf32>
    %221 = arith.index_cast %c3_i32 : i32 to index
    %c0_82 = arith.constant 0 : index
    %c0_83 = arith.constant 0 : index
    %222 = vector.load %arg7[%221, %c0_82, %c0_83] : memref<4x8x128xf32, #tpu.memory_space<vmem>>, vector<1x8x128xf32>
    %223 = vector.shape_cast %222 : vector<1x8x128xf32> to vector<8x128xf32>
    %224 = vector.shape_cast %220 : vector<8x128xf32> to vector<1x8x128xf32>
    tpu.vector_store %arg7[%221, %c0_82, %c0_83], %224 {strides = array<i32>} : memref<4x8x128xf32, #tpu.memory_space<vmem>>, vector<1x8x128xf32>,
    %c4_i32_84 = arith.constant 4 : i32
    return
  }
  func.func @transform_0(%arg0: i32, %arg1: i32) -> (i32, i32, i32) {
    %c0_i32 = arith.constant 0 : i32
    %c0_i32_0 = arith.constant 0 : i32
    return %arg1, %arg0, %c0_i32 : i32, i32, i32
  }
  func.func @transform_1(%arg0: i32, %arg1: i32) -> (i32, i32) {
    %c0_i32 = arith.constant 0 : i32
    %c0_i32_0 = arith.constant 0 : i32
    %c0_i32_1 = arith.constant 0 : i32
    return %c0_i32, %c0_i32_0 : i32, i32
  }
  func.func @transform_2(%arg0: i32, %arg1: i32) -> (i32, i32) {
    %c0_i32 = arith.constant 0 : i32
    %c0_i32_0 = arith.constant 0 : i32
    %c0_i32_1 = arith.constant 0 : i32
    return %c0_i32, %c0_i32_0 : i32, i32
  }
  func.func @transform_3(%arg0: i32, %arg1: i32) -> (i32, i32) {
    %c0_i32 = arith.constant 0 : i32
    %c0_i32_0 = arith.constant 0 : i32
    %c0_i32_1 = arith.constant 0 : i32
    return %c0_i32, %c0_i32_0 : i32, i32
  }
  func.func @transform_4(%arg0: i32, %arg1: i32) -> (i32, i32) {
    %c0_i32 = arith.constant 0 : i32
    %c0_i32_0 = arith.constant 0 : i32
    return %arg0, %c0_i32 : i32, i32
  }
  func.func @transform_5(%arg0: i32, %arg1: i32) -> (i32, i32, i32) {
    %c0_i32 = arith.constant 0 : i32
    %c0_i32_0 = arith.constant 0 : i32
    return %arg1, %arg0, %c0_i32 : i32, i32, i32
  }
  func.func @transform_6(%arg0: i32, %arg1: i32) -> (i32, i32) {
    %c0_i32 = arith.constant 0 : i32
    %c0_i32_0 = arith.constant 0 : i32
    return %arg0, %c0_i32 : i32, i32
  }
  func.func @transform_7(%arg0: i32, %arg1: i32) -> (i32, i32) {
    %c0_i32 = arith.constant 0 : i32
    %c0_i32_0 = arith.constant 0 : i32
    return %arg0, %c0_i32 : i32, i32
  }
}

</mosaic_0001>

<llo_original>
// kernel: tpu_custom_call.1
$region0: #{tpu_custom_call.1}
  #allocation0 [shape = 'u32[]', space=smem, size = 0x4, offset = 0x4, fixed_abs, tag = 'smem constant byte address 0x4 - core index']
  #allocation1 [shape = 'u32[144,128]{1,0:T(1,128)}', space=vmem, size = 0x12000, scoped, tag = 'internal scratch']
  #allocation2 [shape = 'f32[32,512]{1,0:T(8,128)}', space=vmem, size = 0x10000, scoped, tag = 'scratch operand']
  %s0 = inlined_call_operand.hbm [shape: f32[8,8,32], index: 0, kind: input, shape index: {}]
  %s1 = inlined_call_operand.hbm [shape: f32[32,512], index: 1, kind: input, shape index: {}]
  %s2 = inlined_call_operand.hbm [shape: f32[128,512], index: 2, kind: input, shape index: {}]
  %s3 = inlined_call_operand.vmem [shape: f32[1,512], index: 3, kind: input, shape index: {}]
  %s4 = inlined_call_operand.vmem [shape: s32[8,1], index: 4, kind: input, shape index: {}]
  %s5 = inlined_call_operand.hbm [shape: f32[8,8,128], index: 5, kind: output, shape index: {0}]
  %s6 = inlined_call_operand.hbm [shape: f32[8,128], index: 6, kind: output, shape index: {1}]
  %s7 = inlined_call_operand.hbm [shape: f32[8,128], index: 7, kind: output, shape index: {2}]
  %8 = xla_tuple %s5, %s6, %s7
  %s9 = sld [smem:[#allocation0]]
  $region85: #{tpu_custom_call.1} parent=0
    _
  %s11 = ssub.s32 1, %s9
  %s12 = scalar_select 0, %s11, %s9
  $region1: #{tpu_custom_call.1} parent=0
    #allocation3 [shape = 'u8[32768]{0}', space=vmem, size = 0x8000, scoped, tag = 'input window, operand 0']
    #allocation4 [shape = 's32[2]{0}', space=sflag, size = 0x8, scoped, tag = 'scoped memory for tpu_custom_call.1']
    #allocation5 [shape = 's32[2]{0}', space=sflag, size = 0x8, scoped, tag = 'scoped memory for tpu_custom_call.1']
    #allocation6 [shape = 'u8[65536]{0}', space=vmem, size = 0x10000, scoped, tag = 'input window, operand 1, single buffered']
    #allocation7 [shape = 's32[1]{0}', space=sflag, size = 0x4, scoped, tag = 'scoped memory for tpu_custom_call.1']
    #allocation8 [shape = 'u8[262144]{0}', space=vmem, size = 0x40000, scoped, tag = 'input window, operand 2, single buffered']
    #allocation9 [shape = 'u8[32768]{0}', space=vmem, size = 0x8000, scoped, tag = 'output window, operand 0']
    #allocation10 [shape = 'u8[4096]{0}', space=vmem, size = 0x1000, scoped, tag = 'output window, operand 1, single buffered']
    #allocation11 [shape = 's32[1]{0}', space=sflag, size = 0x4, scoped, tag = 'scoped memory for tpu_custom_call.1']
    #allocation12 [shape = 'u8[4096]{0}', space=vmem, size = 0x1000, scoped, tag = 'output window, operand 2, single buffered']
    %13 = vsyncpa [#allocation4], 0
    %s14 = scalar_lea.sflag [#allocation4], 1
    %15 = vsyncpa %s14, 0
    %16 = vsyncpa [#allocation7], 0
    %17 = vsyncpa [#allocation5], 0
    %s18 = scalar_lea.sflag [#allocation5], 1
    %19 = vsyncpa %s18, 0
    %20 = vsyncpa [#allocation11], 0
    loop: start=0, step=1, limit=4
    $region2: #{tpu_custom_call.1} parent=1 // loop_pre_header
      _
    $region3: #{tpu_custom_call.1} parent=1 // loop_header
      %s22 = sphi 0, %s26
      %p23 = scmp.ge.s32.totalorder %s22, 4
      %s29 = sphi 0, %s41
      %s30 = sphi 0, %s37
      %s31 = sphi 0, %s29
      %s32 = sphi 0, %s30
      %s33 = sphi 0, %s31
      %s34 = sphi 0, %s32
      %s46 = sphi 0, %s48
      %s49 = sphi 0, %s46
      %s50 = sphi 0, %s49
      %s66 = sphi 0, %s50
      %s70 = sphi 0, %s70
      %s72 = sphi 0, %s70
      %s73 = sphi 0, %s72
      %s87 = sphi 0, %s73
      %s91 = sphi 0, %s91
      %s93 = sphi 0, %s91
      %s94 = sphi 0, %s93
      %s108 = sphi 0, %s94
      %s112 = sphi 0, %s112
      %s114 = sphi 0, %s112
      %s115 = sphi 0, %s114
      %s129 = sphi 0, %s115
      %s135 = sphi 0, %s137
      %s138 = sphi 0, %s135
      %s139 = sphi 0, %s138
      %s155 = sphi 0, %s139
      %s163 = sphi 0, %s165
      %s166 = sphi 0, %s163
      %s167 = sphi 0, %s166
      %s183 = sphi 0, %s167
      %s189 = sphi 0, %s191
      %s192 = sphi 0, %s189
      %s193 = sphi 0, %s192
      %s209 = sphi 0, %s193
      %s215 = sphi 0, %s217
      %s218 = sphi 0, %s215
      %s219 = sphi 0, %s218
      %s235 = sphi 0, %s219
    $region4: #{tpu_custom_call.1} parent=1 // loop_header_branch
      %25 = sbr.rel (%p23) target = $region8
    $region5: #{tpu_custom_call.1} parent=1 // loop_body
      %s27 = ssub.s32 %s22, 1
      %s28 = ssub.s32 %s22, 2
      %s35 = sadd.s32 1, %s30
      %p36 = scmp.ge.s32.totalorder %s35, 2
      %s37 = scalar_select %p36, 0, %s35
      %s38 = sadd.s32 1, %s29
      %s39 = scalar_select %p36, %s38, %s29
      %p40 = scmp.ge.s32.totalorder %s39, 1
      %s41 = scalar_select %p40, 0, %s39
      %s42 = ssub.s32 %s30, %s37
      %s43 = ssub.s32 %s29, %s41
      %s44 = sor.u32 %s42, %s43
      %p45 = scmp.eq.s32.totalorder %s44, 0
      %s47 = sadd.s32 %s46, 1
      %s48 = scalar_select %p45, %s46, %s47
      %p51 = pneg %p45
      %p52 = scmp.eq.s32.totalorder %s22, 1
      %p53 = por %p51, %p52
      %p54 = scmp.ne.s32.totalorder %s46, %s49
      %p55 = scmp.eq.s32.totalorder %s22, 0
      %p56 = por %p54, %p55
      %p57 = scmp.ne.s32.totalorder %s46, %s49
      %p58 = scmp.eq.s32.totalorder %s27, 1
      %p59 = por %p57, %p58
      %p60 = scmp.ne.s32.totalorder %s49, %s50
      %p61 = scmp.eq.s32.totalorder %s27, 0
      %p62 = por %p60, %p61
      %p63 = scmp.ne.s32.totalorder %s49, %s50
      %p64 = scmp.eq.s32.totalorder %s28, 1
      %p65 = por %p63, %p64
      %p67 = scmp.ne.s32.totalorder %s50, %s66
      %p68 = scmp.eq.s32.totalorder %s28, 0
      %p69 = por %p67, %p68
      %s71 = sadd.s32 %s70, 1
      %p74 = scmp.eq.s32.totalorder %s22, 1
      %p75 = scmp.ne.s32.totalorder %s70, %s72
      %p76 = scmp.eq.s32.totalorder %s22, 0
      %p77 = por %p75, %p76
      %p78 = scmp.ne.s32.totalorder %s70, %s72
      %p79 = scmp.eq.s32.totalorder %s27, 1
      %p80 = por %p78, %p79
      %p81 = scmp.ne.s32.totalorder %s72, %s73
      %p82 = scmp.eq.s32.totalorder %s27, 0
      %p83 = por %p81, %p82
      %p84 = scmp.ne.s32.totalorder %s72, %s73
      %p85 = scmp.eq.s32.totalorder %s28, 1
      %p86 = por %p84, %p85
      %p88 = scmp.ne.s32.totalorder %s73, %s87
      %p89 = scmp.eq.s32.totalorder %s28, 0
      %p90 = por %p88, %p89
      %s92 = sadd.s32 %s91, 1
      %p95 = scmp.eq.s32.totalorder %s22, 1
      %p96 = scmp.ne.s32.totalorder %s91, %s93
      %p97 = scmp.eq.s32.totalorder %s22, 0
      %p98 = por %p96, %p97
      %p99 = scmp.ne.s32.totalorder %s91, %s93
      %p100 = scmp.eq.s32.totalorder %s27, 1
      %p101 = por %p99, %p100
      %p102 = scmp.ne.s32.totalorder %s93, %s94
      %p103 = scmp.eq.s32.totalorder %s27, 0
      %p104 = por %p102, %p103
      %p105 = scmp.ne.s32.totalorder %s93, %s94
      %p106 = scmp.eq.s32.totalorder %s28, 1
      %p107 = por %p105, %p106
      %p109 = scmp.ne.s32.totalorder %s94, %s108
      %p110 = scmp.eq.s32.totalorder %s28, 0
      %p111 = por %p109, %p110
      %s113 = sadd.s32 %s112, 1
      %p116 = scmp.eq.s32.totalorder %s22, 1
      %p117 = scmp.ne.s32.totalorder %s112, %s114
      %p118 = scmp.eq.s32.totalorder %s22, 0
      %p119 = por %p117, %p118
      %p120 = scmp.ne.s32.totalorder %s112, %s114
      %p121 = scmp.eq.s32.totalorder %s27, 1
      %p122 = por %p120, %p121
      %p123 = scmp.ne.s32.totalorder %s114, %s115
      %p124 = scmp.eq.s32.totalorder %s27, 0
      %p125 = por %p123, %p124
      %p126 = scmp.ne.s32.totalorder %s114, %s115
      %p127 = scmp.eq.s32.totalorder %s28, 1
      %p128 = por %p126, %p127
      %p130 = scmp.ne.s32.totalorder %s115, %s129
      %p131 = scmp.eq.s32.totalorder %s28, 0
      %p132 = por %p130, %p131
      %s133 = ssub.s32 %s29, %s41
      %p134 = scmp.eq.s32.totalorder %s133, 0
      %s136 = sadd.s32 %s135, 1
      %s137 = scalar_select %p134, %s135, %s136
      %p140 = pneg %p134
      %p141 = scmp.eq.s32.totalorder %s22, 1
      %p142 = por %p140, %p141
      %p143 = scmp.ne.s32.totalorder %s135, %s138
      %p144 = scmp.eq.s32.totalorder %s22, 0
      %p145 = por %p143, %p144
      %p146 = scmp.ne.s32.totalorder %s135, %s138
      %p147 = scmp.eq.s32.totalorder %s27, 1
      %p148 = por %p146, %p147
      %p149 = scmp.ne.s32.totalorder %s138, %s139
      %p150 = scmp.eq.s32.totalorder %s27, 0
      %p151 = por %p149, %p150
      %p152 = scmp.ne.s32.totalorder %s138, %s139
      %p153 = scmp.eq.s32.totalorder %s28, 1
      %p154 = por %p152, %p153
      %p156 = scmp.ne.s32.totalorder %s139, %s155
      %p157 = scmp.eq.s32.totalorder %s28, 0
      %p158 = por %p156, %p157
      %s159 = ssub.s32 %s30, %s37
      %s160 = ssub.s32 %s29, %s41
      %s161 = sor.u32 %s159, %s160
      %p162 = scmp.eq.s32.totalorder %s161, 0
      %s164 = sadd.s32 %s163, 1
      %s165 = scalar_select %p162, %s163, %s164
      %p168 = pneg %p162
      %p169 = scmp.eq.s32.totalorder %s22, 1
      %p170 = por %p168, %p169
      %p171 = scmp.ne.s32.totalorder %s163, %s166
      %p172 = scmp.eq.s32.totalorder %s22, 0
      %p173 = por %p171, %p172
      %p174 = scmp.ne.s32.totalorder %s163, %s166
      %p175 = scmp.eq.s32.totalorder %s27, 1
      %p176 = por %p174, %p175
      %p177 = scmp.ne.s32.totalorder %s166, %s167
      %p178 = scmp.eq.s32.totalorder %s27, 0
      %p179 = por %p177, %p178
      %p180 = scmp.ne.s32.totalorder %s166, %s167
      %p181 = scmp.eq.s32.totalorder %s28, 1
      %p182 = por %p180, %p181
      %p184 = scmp.ne.s32.totalorder %s167, %s183
      %p185 = scmp.eq.s32.totalorder %s28, 0
      %p186 = por %p184, %p185
      %s187 = ssub.s32 %s29, %s41
      %p188 = scmp.eq.s32.totalorder %s187, 0
      %s190 = sadd.s32 %s189, 1
      %s191 = scalar_select %p188, %s189, %s190
      %p194 = pneg %p188
      %p195 = scmp.eq.s32.totalorder %s22, 1
      %p196 = por %p194, %p195
      %p197 = scmp.ne.s32.totalorder %s189, %s192
      %p198 = scmp.eq.s32.totalorder %s22, 0
      %p199 = por %p197, %p198
      %p200 = scmp.ne.s32.totalorder %s189, %s192
      %p201 = scmp.eq.s32.totalorder %s27, 1
      %p202 = por %p200, %p201
      %p203 = scmp.ne.s32.totalorder %s192, %s193
      %p204 = scmp.eq.s32.totalorder %s27, 0
      %p205 = por %p203, %p204
      %p206 = scmp.ne.s32.totalorder %s192, %s193
      %p207 = scmp.eq.s32.totalorder %s28, 1
      %p208 = por %p206, %p207
      %p210 = scmp.ne.s32.totalorder %s193, %s209
      %p211 = scmp.eq.s32.totalorder %s28, 0
      %p212 = por %p210, %p211
      %s213 = ssub.s32 %s29, %s41
      %p214 = scmp.eq.s32.totalorder %s213, 0
      %s216 = sadd.s32 %s215, 1
      %s217 = scalar_select %p214, %s215, %s216
      %p220 = pneg %p214
      %p221 = scmp.eq.s32.totalorder %s22, 1
      %p222 = por %p220, %p221
      %p223 = scmp.ne.s32.totalorder %s215, %s218
      %p224 = scmp.eq.s32.totalorder %s22, 0
      %p225 = por %p223, %p224
      %p226 = scmp.ne.s32.totalorder %s215, %s218
      %p227 = scmp.eq.s32.totalorder %s27, 1
      %p228 = por %p226, %p227
      %p229 = scmp.ne.s32.totalorder %s218, %s219
      %p230 = scmp.eq.s32.totalorder %s27, 0
      %p231 = por %p229, %p230
      %p232 = scmp.ne.s32.totalorder %s218, %s219
      %p233 = scmp.eq.s32.totalorder %s28, 1
      %p234 = por %p232, %p233
      %p236 = scmp.ne.s32.totalorder %s219, %s235
      %p237 = scmp.eq.s32.totalorder %s28, 0
      %p238 = por %p236, %p237
      %p239 = scmp.le.s32.totalorder 1, %s22
      %p240 = scmp.lt.s32.totalorder %s22, 3
      %p241 = pnand %p239, %p240
      %p242 = pneg %p241
      // Predicated region
      $region9: #{tpu_custom_call.1} parent=5 // pred_check
        _
      $region10: #{tpu_custom_call.1} parent=5 // pred_check_branch
        %244 = sbr.rel (%p241) target = $region12
      $region11: #{tpu_custom_call.1} parent=5 // pred_region
        %s245 = ssub.s32 %s22, 1
        // Predicated region
        $region13: #{tpu_custom_call.1} parent=11 // pred_check
          %p246 = pneg %p83
        $region14: #{tpu_custom_call.1} parent=11 // pred_check_branch
          %248 = sbr.rel (%p246) target = $region16
        $region15: #{tpu_custom_call.1} parent=11 // pred_region
          %s250 = ssub.s32 2048, 2048
          %251 = vsyncadd [#allocation7], %s250
          %s252 = sshll.u32 [#allocation6], 4
          %s253 = int_to_ptr.vmem [resolvable:$true] %s252
          %258 = dma.hbm_to_vmem [thread:$0]  %s1, 2048, %s253, [#allocation7], 512, 512, 32
        $region16: #{tpu_custom_call.1} parent=11 // pred_fallthru
          _
        // Predicated region
        $region17: #{tpu_custom_call.1} parent=11 // pred_check
          %p259 = pneg %p104
        $region18: #{tpu_custom_call.1} parent=11 // pred_check_branch
          %261 = sbr.rel (%p259) target = $region20
        $region19: #{tpu_custom_call.1} parent=11 // pred_region
          %s263 = ssub.s32 8192, 8192
          %264 = vsyncadd [#allocation7], %s263
          %s265 = sshll.u32 [#allocation8], 4
          %s266 = int_to_ptr.vmem [resolvable:$true] %s265
          %271 = dma.hbm_to_vmem [thread:$0]  %s2, 8192, %s266, [#allocation7], 512, 512, 32
        $region20: #{tpu_custom_call.1} parent=11 // pred_fallthru
          _
        // Predicated region
        $region21: #{tpu_custom_call.1} parent=11 // pred_check
          %p272 = pneg %p125
        $region22: #{tpu_custom_call.1} parent=11 // pred_check_branch
          %274 = sbr.rel (%p272) target = $region24
        $region23: #{tpu_custom_call.1} parent=11 // pred_region
          _
        $region24: #{tpu_custom_call.1} parent=11 // pred_fallthru
          _
        // Predicated region
        $region25: #{tpu_custom_call.1} parent=11 // pred_check
          %p275 = pneg %p151
        $region26: #{tpu_custom_call.1} parent=11 // pred_check_branch
          %277 = sbr.rel (%p275) target = $region28
        $region27: #{tpu_custom_call.1} parent=11 // pred_region
          %p278 = scmp.lt.s32.totalorder %s31, 0
          %s279 = scalar_select %p278, %s31, 0
          %s280 = smul.addr %s279, 8
          %s281 = scalar_lea.vmem %s4, %s280
        $region28: #{tpu_custom_call.1} parent=11 // pred_fallthru
          _
      $region12: #{tpu_custom_call.1} parent=5 // pred_fallthru
        _
      %p282 = scmp.lt.s32.totalorder %s22, 2
      // Predicated region
      $region29: #{tpu_custom_call.1} parent=5 // pred_check
        %p283 = pneg %p282
      $region30: #{tpu_custom_call.1} parent=5 // pred_check_branch
        %285 = sbr.rel (%p283) target = $region32
      $region31: #{tpu_custom_call.1} parent=5 // pred_region
        // Predicated region
        $region33: #{tpu_custom_call.1} parent=31 // pred_check
          %p286 = pneg %p56
        $region34: #{tpu_custom_call.1} parent=31 // pred_check_branch
          %288 = sbr.rel (%p286) target = $region36
        $region35: #{tpu_custom_call.1} parent=31 // pred_region
          %s289 = sand.u32 %s46, 1
          %s290 = scalar_lea.sflag [#allocation4], %s289
          %s291 = sand.u32 %s46, 1
          %s292 = smul.addr %s291, 32
          %s293 = scalar_lea.vmem [#allocation3], %s292
          %s294 = smul.u32 4, %s30
          %s296 = ssub.s32 512, 512
          %297 = vsyncadd %s290, %s296
          %s298 = sadd.s32 %s29, %s294
          %s299 = smul.addr %s298, 128
          %s300 = scalar_lea.hbm %s0, %s299
          %s301 = sshll.u32 %s293, 4
          %s302 = int_to_ptr.vmem [resolvable:$true] %s301
          %307 = dma.hbm_to_vmem [thread:$0]  %s300, 512, %s302, %s290, 128, 128, 8
        $region36: #{tpu_custom_call.1} parent=31 // pred_fallthru
          _
      $region32: #{tpu_custom_call.1} parent=5 // pred_fallthru
        _
      %p308 = scmp.le.s32.totalorder 1, %s22
      %p309 = scmp.lt.s32.totalorder %s22, 3
      %p310 = pnand %p308, %p309
      %p311 = pneg %p310
      // Predicated region
      $region37: #{tpu_custom_call.1} parent=5 // pred_check
        _
      $region38: #{tpu_custom_call.1} parent=5 // pred_check_branch
        %313 = sbr.rel (%p310) target = $region40
      $region39: #{tpu_custom_call.1} parent=5 // pred_region
        %s314 = ssub.s32 %s22, 1
        %s315 = sand.u32 %s49, 1
        %s316 = scalar_lea.sflag [#allocation4], %s315
        %s317 = sand.u32 %s49, 1
        %s318 = smul.addr %s317, 32
        %s319 = scalar_lea.vmem [#allocation3], %s318
        // Predicated region
        $region41: #{tpu_custom_call.1} parent=39 // pred_check
          %p320 = pneg %p62
        $region42: #{tpu_custom_call.1} parent=39 // pred_check_branch
          %322 = sbr.rel (%p320) target = $region44
        $region43: #{tpu_custom_call.1} parent=39 // pred_region
          %323 = dma.done %s316, 512
        $region44: #{tpu_custom_call.1} parent=39 // pred_fallthru
          _
        // Predicated region
        $region45: #{tpu_custom_call.1} parent=39 // pred_check
          %p324 = pneg %p83
        $region46: #{tpu_custom_call.1} parent=39 // pred_check_branch
          %326 = sbr.rel (%p324) target = $region48
        $region47: #{tpu_custom_call.1} parent=39 // pred_region
          %327 = dma.done [#allocation7], 2048
        $region48: #{tpu_custom_call.1} parent=39 // pred_fallthru
          _
        // Predicated region
        $region49: #{tpu_custom_call.1} parent=39 // pred_check
          %p328 = pneg %p104
        $region50: #{tpu_custom_call.1} parent=39 // pred_check_branch
          %330 = sbr.rel (%p328) target = $region52
        $region51: #{tpu_custom_call.1} parent=39 // pred_region
          %331 = dma.done [#allocation7], 8192
        $region52: #{tpu_custom_call.1} parent=39 // pred_fallthru
          _
        %s332 = sand.u32 %s49, 1
        %s333 = scalar_lea.sflag [#allocation4], %s332
        %s334 = sand.u32 %s49, 1
        %s335 = smul.addr %s334, 32
        %s336 = scalar_lea.vmem [#allocation3], %s335
        %p337 = pneg %p62
        %p338 = pneg %p59
        %p339 = pneg %p83
        %p340 = pneg %p80
        %p341 = pneg %p104
        %p342 = pneg %p101
        %p343 = pneg %p125
        %p344 = pneg %p122
        %p345 = scmp.lt.s32.totalorder %s31, 0
        %s346 = scalar_select %p345, %s31, 0
        %s347 = smul.addr %s346, 8
        %s348 = scalar_lea.vmem %s4, %s347
        %p349 = pneg %p151
        %p350 = pneg %p148
        %p351 = pneg %p179
        %p352 = pneg %p176
        %s353 = sand.u32 %s166, 1
        %s354 = scalar_lea.sflag [#allocation5], %s353
        %s355 = sand.u32 %s166, 1
        %s356 = smul.addr %s355, 32
        %s357 = scalar_lea.vmem [#allocation9], %s356
        %p358 = pneg %p205
        %p359 = pneg %p202
        %p360 = pneg %p231
        %p361 = pneg %p228
        %s362 = smul.u32 4, %s32
        %p363 = scmp.lt.s32.totalorder %s31, 0
        %s364 = scalar_select %p363, %s31, 0
        %s365 = smul.addr %s364, 8
        %s366 = scalar_lea.vmem %s4, %s365
        %s367 = smul.u32 4, %s32
        %p368 = scmp.eq.s32.totalorder %s32, 0
        // Predicated region
        $region53: #{tpu_custom_call.1} parent=39 // pred_check
          %p369 = pneg %p368
        $region54: #{tpu_custom_call.1} parent=39 // pred_check_branch
          %371 = sbr.rel (%p369) target = $region56
        $region55: #{tpu_custom_call.1} parent=39 // pred_region
          %372 = vst [vmem:[#allocation10] sm:$0xff] 0.0
          %373 = vst [vmem:[#allocation12] sm:$0xff] 0.0
        $region56: #{tpu_custom_call.1} parent=39 // pred_fallthru
          _
        %v374 = vld [vmem:[%s366] sm:$0xff]
        %v375 = vld [vmem:[#allocation8] sm:$0xff]
        %v376 = vld [vmem:[#allocation8 + $0x8] sm:$0xff]
        %v377 = vld [vmem:[#allocation8 + $0x10] sm:$0xff]
        %v378 = vld [vmem:[#allocation8 + $0x18] sm:$0xff]
        %v379 = vld [vmem:[#allocation8 + $0x20] sm:$0xff]
        %v380 = vld [vmem:[#allocation8 + $0x28] sm:$0xff]
        %v381 = vld [vmem:[#allocation8 + $0x30] sm:$0xff]
        %v382 = vld [vmem:[#allocation8 + $0x38] sm:$0xff]
        %v383 = vld [vmem:[#allocation8 + $0x40] sm:$0xff]
        %v384 = vld [vmem:[#allocation8 + $0x48] sm:$0xff]
        %v385 = vld [vmem:[#allocation8 + $0x50] sm:$0xff]
        %v386 = vld [vmem:[#allocation8 + $0x58] sm:$0xff]
        %v387 = vld [vmem:[#allocation8 + $0x60] sm:$0xff]
        %v388 = vld [vmem:[#allocation8 + $0x68] sm:$0xff]
        %v389 = vld [vmem:[#allocation8 + $0x70] sm:$0xff]
        %v390 = vld [vmem:[#allocation8 + $0x78] sm:$0xff]
        %v391 = vld [vmem:[#allocation8 + $0x80] sm:$0xff]
        %v392 = vld [vmem:[#allocation8 + $0x88] sm:$0xff]
        %v393 = vld [vmem:[#allocation8 + $0x90] sm:$0xff]
        %v394 = vld [vmem:[#allocation8 + $0x98] sm:$0xff]
        %v395 = vld [vmem:[#allocation8 + $0xa0] sm:$0xff]
        %v396 = vld [vmem:[#allocation8 + $0xa8] sm:$0xff]
        %v397 = vld [vmem:[#allocation8 + $0xb0] sm:$0xff]
        %v398 = vld [vmem:[#allocation8 + $0xb8] sm:$0xff]
        %v399 = vld [vmem:[#allocation8 + $0xc0] sm:$0xff]
        %v400 = vld [vmem:[#allocation8 + $0xc8] sm:$0xff]
        %v401 = vld [vmem:[#allocation8 + $0xd0] sm:$0xff]
        %v402 = vld [vmem:[#allocation8 + $0xd8] sm:$0xff]
        %v403 = vld [vmem:[#allocation8 + $0xe0] sm:$0xff]
        %v404 = vld [vmem:[#allocation8 + $0xe8] sm:$0xff]
        %v405 = vld [vmem:[#allocation8 + $0xf0] sm:$0xff]
        %v406 = vld [vmem:[#allocation8 + $0xf8] sm:$0xff]
        %v407 = vld [vmem:[#allocation8 + $0x100] sm:$0xff]
        %v408 = vld [vmem:[#allocation8 + $0x108] sm:$0xff]
        %v409 = vld [vmem:[#allocation8 + $0x110] sm:$0xff]
        %v410 = vld [vmem:[#allocation8 + $0x118] sm:$0xff]
        %v411 = vld [vmem:[#allocation8 + $0x120] sm:$0xff]
        %v412 = vld [vmem:[#allocation8 + $0x128] sm:$0xff]
        %v413 = vld [vmem:[#allocation8 + $0x130] sm:$0xff]
        %v414 = vld [vmem:[#allocation8 + $0x138] sm:$0xff]
        %v415 = vld [vmem:[#allocation8 + $0x140] sm:$0xff]
        %v416 = vld [vmem:[#allocation8 + $0x148] sm:$0xff]
        %v417 = vld [vmem:[#allocation8 + $0x150] sm:$0xff]
        %v418 = vld [vmem:[#allocation8 + $0x158] sm:$0xff]
        %v419 = vld [vmem:[#allocation8 + $0x160] sm:$0xff]
        %v420 = vld [vmem:[#allocation8 + $0x168] sm:$0xff]
        %v421 = vld [vmem:[#allocation8 + $0x170] sm:$0xff]
        %v422 = vld [vmem:[#allocation8 + $0x178] sm:$0xff]
        %v423 = vld [vmem:[#allocation8 + $0x180] sm:$0xff]
        %v424 = vld [vmem:[#allocation8 + $0x188] sm:$0xff]
        %v425 = vld [vmem:[#allocation8 + $0x190] sm:$0xff]
        %v426 = vld [vmem:[#allocation8 + $0x198] sm:$0xff]
        %v427 = vld [vmem:[#allocation8 + $0x1a0] sm:$0xff]
        %v428 = vld [vmem:[#allocation8 + $0x1a8] sm:$0xff]
        %v429 = vld [vmem:[#allocation8 + $0x1b0] sm:$0xff]
        %v430 = vld [vmem:[#allocation8 + $0x1b8] sm:$0xff]
        %v431 = vld [vmem:[#allocation8 + $0x1c0] sm:$0xff]
        %v432 = vld [vmem:[#allocation8 + $0x1c8] sm:$0xff]
        %v433 = vld [vmem:[#allocation8 + $0x1d0] sm:$0xff]
        %v434 = vld [vmem:[#allocation8 + $0x1d8] sm:$0xff]
        %v435 = vld [vmem:[#allocation8 + $0x1e0] sm:$0xff]
        %v436 = vld [vmem:[#allocation8 + $0x1e8] sm:$0xff]
        %v437 = vld [vmem:[#allocation8 + $0x1f0] sm:$0xff]
        %v438 = vld [vmem:[#allocation8 + $0x1f8] sm:$0xff]
        %v439 = vld [vmem:[%s319] sm:$0xff]
        %v440 = vld [vmem:[%s319 + $0x8] sm:$0xff]
        %v441 = vld [vmem:[%s319 + $0x10] sm:$0xff]
        %v442 = vld [vmem:[%s319 + $0x18] sm:$0xff]
        %v443 = vld [vmem:[#allocation6] sm:$0xff]
        %v444 = vld [vmem:[#allocation6 + $0x8] sm:$0xff]
        %v445 = vld [vmem:[#allocation6 + $0x10] sm:$0xff]
        %v446 = vld [vmem:[#allocation6 + $0x18] sm:$0xff]
        %v447 = vld [vmem:[#allocation6 + $0x20] sm:$0xff]
        %v448 = vld [vmem:[#allocation6 + $0x28] sm:$0xff]
        %v449 = vld [vmem:[#allocation6 + $0x30] sm:$0xff]
        %v450 = vld [vmem:[#allocation6 + $0x38] sm:$0xff]
        %v451 = vld [vmem:[#allocation6 + $0x40] sm:$0xff]
        %v452 = vld [vmem:[#allocation6 + $0x48] sm:$0xff]
        %v453 = vld [vmem:[#allocation6 + $0x50] sm:$0xff]
        %v454 = vld [vmem:[#allocation6 + $0x58] sm:$0xff]
        %v455 = vld [vmem:[#allocation6 + $0x60] sm:$0xff]
        %v456 = vld [vmem:[#allocation6 + $0x68] sm:$0xff]
        %v457 = vld [vmem:[#allocation6 + $0x70] sm:$0xff]
        %v458 = vld [vmem:[#allocation6 + $0x78] sm:$0xff]
        %v459 = vld [vmem:[%s3] sm:$0xf]
        %v461 = vlaneseq
        %v462 = vshrl.u32 %v461, 7
        %v463 = vsub.s32 0, %v462
        %v464 = vrot.slane %v459, %v463
        %v465 = vlaneseq
        %v466 = vshrl.u32 %v465, 7
        %v467 = vsub.s32 1, %v466
        %v468 = vrot.slane %v459, %v467
        %v469 = vlaneseq
        %v470 = vshrl.u32 %v469, 7
        %v471 = vsub.s32 2, %v470
        %v472 = vrot.slane %v459, %v471
        %v473 = vlaneseq
        %v474 = vshrl.u32 %v473, 7
        %v475 = vsub.s32 3, %v474
        %v476 = vrot.slane %v459, %v475
        %vm481 = vcmask 261120
        %v483 = vsel %vm481, %v439, 0
        %v486 = vsel %vm481, %v440, 0
        %v489 = vsel %vm481, %v441, 0
        %v492 = vsel %vm481, %v442, 0
        %494 = vmatprep.subr.mxu0 0.0
        %495 = vmatpush1.msra.mxu0 0.0
        %496 = vmatprep.subr.mxu0 0.0
        %497 = vmatpush1.msra.mxu0 0.0
        %498 = vmatprep.subr.mxu0 0.0
        %499 = vmatpush1.msra.mxu0 0.0
        %500 = vmatprep.subr.mxu0 0.0
        %501 = vmatpush1.msra.mxu0 0.0
        %502 = vmatprep.subr.mxu0 0.0
        %503 = vmatpush1.msra.mxu0 0.0
        %504 = vmatprep.subr.mxu0 0.0
        %505 = vmatpush1.msra.mxu0 0.0
        %506 = vmatprep.subr.mxu0 0.0
        %507 = vmatpush1.msra.mxu0 0.0
        %508 = vmatprep.subr.mxu0 0.0
        %509 = vmatpush1.msra.mxu0 0.0
        %510 = vmatprep.subr.mxu0 0.0
        %511 = vmatpush1.msra.mxu0 0.0
        %512 = vmatprep.subr.mxu0 0.0
        %513 = vmatpush1.msra.mxu0 0.0
        %514 = vmatprep.subr.mxu0 0.0
        %515 = vmatpush1.msra.mxu0 0.0
        %516 = vmatprep.subr.mxu0 0.0
        %517 = vmatpush1.msra.mxu0 0.0
        %518 = vmatprep.subr.mxu0 %v456
        %519 = vmatpush1.msra.mxu0 %v455
        %520 = vmatprep.subr.mxu0 %v452
        %521 = vmatpush1.msra.mxu0 %v451
        %522 = vmatprep.subr.mxu0 %v448
        %523 = vmatpush1.msra.mxu0 %v447
        %524 = vmatprep.subr.mxu0 %v444
        %525 = vmatpush1.msra.mxu0 %v443
        %526 = vmatprep.subr.mxu0 0.0
        %527 = vmatpush2.msra.mxu0 0.0
        %528 = vmatprep.subr.mxu0 0.0
        %529 = vmatpush2.msra.mxu0 0.0
        %530 = vmatprep.subr.mxu0 0.0
        %531 = vmatpush2.msra.mxu0 0.0
        %532 = vmatprep.subr.mxu0 0.0
        %533 = vmatpush2.msra.mxu0 0.0
        %534 = vmatprep.subr.mxu0 0.0
        %535 = vmatpush2.msra.mxu0 0.0
        %536 = vmatprep.subr.mxu0 0.0
        %537 = vmatpush2.msra.mxu0 0.0
        %538 = vmatprep.subr.mxu0 0.0
        %539 = vmatpush2.msra.mxu0 0.0
        %540 = vmatprep.subr.mxu0 0.0
        %541 = vmatpush2.msra.mxu0 0.0
        %542 = vmatprep.subr.mxu0 0.0
        %543 = vmatpush2.msra.mxu0 0.0
        %544 = vmatprep.subr.mxu0 0.0
        %545 = vmatpush2.msra.mxu0 0.0
        %546 = vmatprep.subr.mxu0 0.0
        %547 = vmatpush2.msra.mxu0 0.0
        %548 = vmatprep.subr.mxu0 0.0
        %549 = vmatpush2.msra.mxu0 0.0
        %550 = vmatprep.subr.mxu0 0.0
        %551 = vmatpush2.msra.mxu0 0.0
        %552 = vmatprep.subr.mxu0 0.0
        %553 = vmatpush2.msra.mxu0 0.0
        %554 = vmatprep.subr.mxu0 0.0
        %555 = vmatpush2.msra.mxu0 0.0
        %556 = vmatprep.subr.mxu0 0.0
        %557 = vmatpush2.msra.mxu0 0.0
        %558 = vmatprep.mubr.f32.mxu0 0.0
        %559 = vmatmul.mubr.f32.gmra.mxu0 %v483
        %v560 = vpop.f32.mrf.mxu0
        %v561 = vadd.f32 %v464, %v560
        %v562 = vpop.f32.mrf.mxu0
        %v563 = vadd.f32 %v468, %v562
        %564 = vmatprep.mubr.f32.mxu0 0.0
        %565 = vmatmul.mubr.f32.gmra.mxu0 %v486
        %v566 = vpop.f32.mrf.mxu0
        %v567 = vadd.f32 %v464, %v566
        %v568 = vpop.f32.mrf.mxu0
        %v569 = vadd.f32 %v468, %v568
        %570 = vmatprep.mubr.f32.mxu0 0.0
        %571 = vmatmul.mubr.f32.gmra.mxu0 %v489
        %v572 = vpop.f32.mrf.mxu0
        %v573 = vadd.f32 %v464, %v572
        %v574 = vpop.f32.mrf.mxu0
        %v575 = vadd.f32 %v468, %v574
        %576 = vmatprep.mubr.f32.mxu0 0.0
        %577 = vmatmul.mubr.f32.gmra.mxu0 %v492
        %v578 = vpop.f32.mrf.mxu0
        %v579 = vadd.f32 %v464, %v578
        %v580 = vpop.f32.mrf.mxu0
        %v581 = vadd.f32 %v468, %v580
        %582 = vdwg.mxu0
        %583 = vmatprep.subr.mxu0 0.0
        %584 = vmatpush1.msra.mxu0 0.0
        %585 = vmatprep.subr.mxu0 0.0
        %586 = vmatpush1.msra.mxu0 0.0
        %587 = vmatprep.subr.mxu0 0.0
        %588 = vmatpush1.msra.mxu0 0.0
        %589 = vmatprep.subr.mxu0 0.0
        %590 = vmatpush1.msra.mxu0 0.0
        %591 = vmatprep.subr.mxu0 0.0
        %592 = vmatpush1.msra.mxu0 0.0
        %593 = vmatprep.subr.mxu0 0.0
        %594 = vmatpush1.msra.mxu0 0.0
        %595 = vmatprep.subr.mxu0 0.0
        %596 = vmatpush1.msra.mxu0 0.0
        %597 = vmatprep.subr.mxu0 0.0
        %598 = vmatpush1.msra.mxu0 0.0
        %599 = vmatprep.subr.mxu0 0.0
        %600 = vmatpush1.msra.mxu0 0.0
        %601 = vmatprep.subr.mxu0 0.0
        %602 = vmatpush1.msra.mxu0 0.0
        %603 = vmatprep.subr.mxu0 0.0
        %604 = vmatpush1.msra.mxu0 0.0
        %605 = vmatprep.subr.mxu0 0.0
        %606 = vmatpush1.msra.mxu0 0.0
        %607 = vmatprep.subr.mxu0 %v458
        %608 = vmatpush1.msra.mxu0 %v457
        %609 = vmatprep.subr.mxu0 %v454
        %610 = vmatpush1.msra.mxu0 %v453
        %611 = vmatprep.subr.mxu0 %v450
        %612 = vmatpush1.msra.mxu0 %v449
        %613 = vmatprep.subr.mxu0 %v446
        %614 = vmatpush1.msra.mxu0 %v445
        %615 = vmatprep.subr.mxu0 0.0
        %616 = vmatpush2.msra.mxu0 0.0
        %617 = vmatprep.subr.mxu0 0.0
        %618 = vmatpush2.msra.mxu0 0.0
        %619 = vmatprep.subr.mxu0 0.0
        %620 = vmatpush2.msra.mxu0 0.0
        %621 = vmatprep.subr.mxu0 0.0
        %622 = vmatpush2.msra.mxu0 0.0
        %623 = vmatprep.subr.mxu0 0.0
        %624 = vmatpush2.msra.mxu0 0.0
        %625 = vmatprep.subr.mxu0 0.0
        %626 = vmatpush2.msra.mxu0 0.0
        %627 = vmatprep.subr.mxu0 0.0
        %628 = vmatpush2.msra.mxu0 0.0
        %629 = vmatprep.subr.mxu0 0.0
        %630 = vmatpush2.msra.mxu0 0.0
        %631 = vmatprep.subr.mxu0 0.0
        %632 = vmatpush2.msra.mxu0 0.0
        %633 = vmatprep.subr.mxu0 0.0
        %634 = vmatpush2.msra.mxu0 0.0
        %635 = vmatprep.subr.mxu0 0.0
        %636 = vmatpush2.msra.mxu0 0.0
        %637 = vmatprep.subr.mxu0 0.0
        %638 = vmatpush2.msra.mxu0 0.0
        %639 = vmatprep.subr.mxu0 0.0
        %640 = vmatpush2.msra.mxu0 0.0
        %641 = vmatprep.subr.mxu0 0.0
        %642 = vmatpush2.msra.mxu0 0.0
        %643 = vmatprep.subr.mxu0 0.0
        %644 = vmatpush2.msra.mxu0 0.0
        %645 = vmatprep.subr.mxu0 0.0
        %646 = vmatpush2.msra.mxu0 0.0
        %647 = vmatprep.mubr.f32.mxu0 0.0
        %648 = vmatmul.mubr.f32.gmra.mxu0 %v483
        %v649 = vpop.f32.mrf.mxu0
        %v650 = vadd.f32 %v472, %v649
        %v651 = vpop.f32.mrf.mxu0
        %v652 = vadd.f32 %v476, %v651
        %653 = vmatprep.mubr.f32.mxu0 0.0
        %654 = vmatmul.mubr.f32.gmra.mxu0 %v486
        %v655 = vpop.f32.mrf.mxu0
        %v656 = vadd.f32 %v472, %v655
        %v657 = vpop.f32.mrf.mxu0
        %v658 = vadd.f32 %v476, %v657
        %659 = vmatprep.mubr.f32.mxu0 0.0
        %660 = vmatmul.mubr.f32.gmra.mxu0 %v489
        %v661 = vpop.f32.mrf.mxu0
        %v662 = vadd.f32 %v472, %v661
        %v663 = vpop.f32.mrf.mxu0
        %v664 = vadd.f32 %v476, %v663
        %665 = vmatprep.mubr.f32.mxu0 0.0
        %666 = vmatmul.mubr.f32.gmra.mxu0 %v492
        %v667 = vpop.f32.mrf.mxu0
        %v668 = vadd.f32 %v472, %v667
        %v669 = vpop.f32.mrf.mxu0
        %v670 = vadd.f32 %v476, %v669
        %671 = vdwg.mxu0
        %672 = vst [vmem:[#allocation2] sm:$0xff] %v561
        %673 = vst [vmem:[#allocation2 + $0x8] sm:$0xff] %v563
        %674 = vst [vmem:[#allocation2 + $0x10] sm:$0xff] %v650
        %675 = vst [vmem:[#allocation2 + $0x18] sm:$0xff] %v652
        %676 = vst [vmem:[#allocation2 + $0x20] sm:$0xff] %v567
        %677 = vst [vmem:[#allocation2 + $0x28] sm:$0xff] %v569
        %678 = vst [vmem:[#allocation2 + $0x30] sm:$0xff] %v656
        %679 = vst [vmem:[#allocation2 + $0x38] sm:$0xff] %v658
        %680 = vst [vmem:[#allocation2 + $0x40] sm:$0xff] %v573
        %681 = vst [vmem:[#allocation2 + $0x48] sm:$0xff] %v575
        %682 = vst [vmem:[#allocation2 + $0x50] sm:$0xff] %v662
        %683 = vst [vmem:[#allocation2 + $0x58] sm:$0xff] %v664
        %684 = vst [vmem:[#allocation2 + $0x60] sm:$0xff] %v579
        %685 = vst [vmem:[#allocation2 + $0x68] sm:$0xff] %v581
        %686 = vst [vmem:[#allocation2 + $0x70] sm:$0xff] %v668
        %687 = vst [vmem:[#allocation2 + $0x78] sm:$0xff] %v670
        %s688 = smul.u32 %s32, 4
        %v689 = vld [vmem:[#allocation10] sm:$0xff]
        %v690 = vld [vmem:[#allocation12] sm:$0xff]
        %s691 = smul.u32 0, 4
        %s692 = smul.addr %s691, 8
        %s693 = scalar_lea.vmem [#allocation2], %s692
        %v694 = vld [vmem:[%s693] sm:$0xff]
        %v695 = vld [vmem:[%s693 + $0x8] sm:$0xff]
        %v696 = vld [vmem:[%s693 + $0x10] sm:$0xff]
        %v697 = vld [vmem:[%s693 + $0x18] sm:$0xff]
        %698 = vmatprep.subr.mxu0 %v436
        %699 = vmatpush1.msra.mxu0 %v435
        %700 = vmatprep.subr.mxu0 %v432
        %701 = vmatpush1.msra.mxu0 %v431
        %702 = vmatprep.subr.mxu0 %v428
        %703 = vmatpush1.msra.mxu0 %v427
        %704 = vmatprep.subr.mxu0 %v424
        %705 = vmatpush1.msra.mxu0 %v423
        %706 = vmatprep.subr.mxu0 %v420
        %707 = vmatpush1.msra.mxu0 %v419
        %708 = vmatprep.subr.mxu0 %v416
        %709 = vmatpush1.msra.mxu0 %v415
        %710 = vmatprep.subr.mxu0 %v412
        %711 = vmatpush1.msra.mxu0 %v411
        %712 = vmatprep.subr.mxu0 %v408
        %713 = vmatpush1.msra.mxu0 %v407
        %714 = vmatprep.subr.mxu0 %v404
        %715 = vmatpush1.msra.mxu0 %v403
        %716 = vmatprep.subr.mxu0 %v400
        %717 = vmatpush1.msra.mxu0 %v399
        %718 = vmatprep.subr.mxu0 %v396
        %719 = vmatpush1.msra.mxu0 %v395
        %720 = vmatprep.subr.mxu0 %v392
        %721 = vmatpush1.msra.mxu0 %v391
        %722 = vmatprep.subr.mxu0 %v388
        %723 = vmatpush1.msra.mxu0 %v387
        %724 = vmatprep.subr.mxu0 %v384
        %725 = vmatpush1.msra.mxu0 %v383
        %726 = vmatprep.subr.mxu0 %v380
        %727 = vmatpush1.msra.mxu0 %v379
        %728 = vmatprep.subr.mxu0 %v376
        %729 = vmatpush1.msra.mxu0 %v375
        %730 = vmatprep.subr.mxu0 0.0
        %731 = vmatpush2.msra.mxu0 0.0
        %732 = vmatprep.subr.mxu0 0.0
        %733 = vmatpush2.msra.mxu0 0.0
        %734 = vmatprep.subr.mxu0 0.0
        %735 = vmatpush2.msra.mxu0 0.0
        %736 = vmatprep.subr.mxu0 0.0
        %737 = vmatpush2.msra.mxu0 0.0
        %738 = vmatprep.subr.mxu0 0.0
        %739 = vmatpush2.msra.mxu0 0.0
        %740 = vmatprep.subr.mxu0 0.0
        %741 = vmatpush2.msra.mxu0 0.0
        %742 = vmatprep.subr.mxu0 0.0
        %743 = vmatpush2.msra.mxu0 0.0
        %744 = vmatprep.subr.mxu0 0.0
        %745 = vmatpush2.msra.mxu0 0.0
        %746 = vmatprep.subr.mxu0 0.0
        %747 = vmatpush2.msra.mxu0 0.0
        %748 = vmatprep.subr.mxu0 0.0
        %749 = vmatpush2.msra.mxu0 0.0
        %750 = vmatprep.subr.mxu0 0.0
        %751 = vmatpush2.msra.mxu0 0.0
        %752 = vmatprep.subr.mxu0 0.0
        %753 = vmatpush2.msra.mxu0 0.0
        %754 = vmatprep.subr.mxu0 0.0
        %755 = vmatpush2.msra.mxu0 0.0
        %756 = vmatprep.subr.mxu0 0.0
        %757 = vmatpush2.msra.mxu0 0.0
        %758 = vmatprep.subr.mxu0 0.0
        %759 = vmatpush2.msra.mxu0 0.0
        %760 = vmatprep.subr.mxu0 0.0
        %761 = vmatpush2.msra.mxu0 0.0
        %762 = vmatprep.mubr.f32.mxu0 0.0
        %763 = vmatmul.mubr.f32.gmra.mxu0 %v689
        %v764 = vpop.f32.mrf.mxu0
        %v765 = vadd.f32 0.0, %v764
        %v766 = vpop.f32.mrf.mxu0
        %v767 = vadd.f32 0.0, %v766
        %768 = vdwg.mxu0
        %769 = vmatprep.subr.mxu0 %v438
        %770 = vmatpush1.msra.mxu0 %v437
        %771 = vmatprep.subr.mxu0 %v434
        %772 = vmatpush1.msra.mxu0 %v433
        %773 = vmatprep.subr.mxu0 %v430
        %774 = vmatpush1.msra.mxu0 %v429
        %775 = vmatprep.subr.mxu0 %v426
        %776 = vmatpush1.msra.mxu0 %v425
        %777 = vmatprep.subr.mxu0 %v422
        %778 = vmatpush1.msra.mxu0 %v421
        %779 = vmatprep.subr.mxu0 %v418
        %780 = vmatpush1.msra.mxu0 %v417
        %781 = vmatprep.subr.mxu0 %v414
        %782 = vmatpush1.msra.mxu0 %v413
        %783 = vmatprep.subr.mxu0 %v410
        %784 = vmatpush1.msra.mxu0 %v409
        %785 = vmatprep.subr.mxu0 %v406
        %786 = vmatpush1.msra.mxu0 %v405
        %787 = vmatprep.subr.mxu0 %v402
        %788 = vmatpush1.msra.mxu0 %v401
        %789 = vmatprep.subr.mxu0 %v398
        %790 = vmatpush1.msra.mxu0 %v397
        %791 = vmatprep.subr.mxu0 %v394
        %792 = vmatpush1.msra.mxu0 %v393
        %793 = vmatprep.subr.mxu0 %v390
        %794 = vmatpush1.msra.mxu0 %v389
        %795 = vmatprep.subr.mxu0 %v386
        %796 = vmatpush1.msra.mxu0 %v385
        %797 = vmatprep.subr.mxu0 %v382
        %798 = vmatpush1.msra.mxu0 %v381
        %799 = vmatprep.subr.mxu0 %v378
        %800 = vmatpush1.msra.mxu0 %v377
        %801 = vmatprep.subr.mxu0 0.0
        %802 = vmatpush2.msra.mxu0 0.0
        %803 = vmatprep.subr.mxu0 0.0
        %804 = vmatpush2.msra.mxu0 0.0
        %805 = vmatprep.subr.mxu0 0.0
        %806 = vmatpush2.msra.mxu0 0.0
        %807 = vmatprep.subr.mxu0 0.0
        %808 = vmatpush2.msra.mxu0 0.0
        %809 = vmatprep.subr.mxu0 0.0
        %810 = vmatpush2.msra.mxu0 0.0
        %811 = vmatprep.subr.mxu0 0.0
        %812 = vmatpush2.msra.mxu0 0.0
        %813 = vmatprep.subr.mxu0 0.0
        %814 = vmatpush2.msra.mxu0 0.0
        %815 = vmatprep.subr.mxu0 0.0
        %816 = vmatpush2.msra.mxu0 0.0
        %817 = vmatprep.subr.mxu0 0.0
        %818 = vmatpush2.msra.mxu0 0.0
        %819 = vmatprep.subr.mxu0 0.0
        %820 = vmatpush2.msra.mxu0 0.0
        %821 = vmatprep.subr.mxu0 0.0
        %822 = vmatpush2.msra.mxu0 0.0
        %823 = vmatprep.subr.mxu0 0.0
        %824 = vmatpush2.msra.mxu0 0.0
        %825 = vmatprep.subr.mxu0 0.0
        %826 = vmatpush2.msra.mxu0 0.0
        %827 = vmatprep.subr.mxu0 0.0
        %828 = vmatpush2.msra.mxu0 0.0
        %829 = vmatprep.subr.mxu0 0.0
        %830 = vmatpush2.msra.mxu0 0.0
        %831 = vmatprep.subr.mxu0 0.0
        %832 = vmatpush2.msra.mxu0 0.0
        %833 = vmatprep.mubr.f32.mxu0 0.0
        %834 = vmatmul.mubr.f32.gmra.mxu0 %v689
        %v835 = vpop.f32.mrf.mxu0
        %v836 = vadd.f32 0.0, %v835
        %v837 = vpop.f32.mrf.mxu0
        %v838 = vadd.f32 0.0, %v837
        %839 = vdwg.mxu0
        %v840 = vadd.f32 %v694, %v765
        %v841 = vadd.f32 %v695, %v767
        %v842 = vadd.f32 %v696, %v836
        %v843 = vadd.f32 %v697, %v838
        %v844 = vxor.u32 %v840, 2147483648
        %v845 = vmul.f32 %v844, 1.442695
        %v846 = vpow.pop %v845
        %v847 = vadd.f32 %v846, 1.0
        %v848 = vrcp.pop %v847
        %v849 = vmul.f32 1.0, %v848
        %v850 = vxor.u32 %v841, 2147483648
        %v851 = vmul.f32 %v850, 1.442695
        %v852 = vpow.pop %v851
        %v853 = vadd.f32 %v852, 1.0
        %v854 = vrcp.pop %v853
        %v855 = vmul.f32 1.0, %v854
        %v856 = vtanh.pop %v842
        %v857 = vxor.u32 %v843, 2147483648
        %v858 = vmul.f32 %v857, 1.442695
        %v859 = vpow.pop %v858
        %v860 = vadd.f32 %v859, 1.0
        %v861 = vrcp.pop %v860
        %v862 = vmul.f32 1.0, %v861
        %v863 = vmul.f32 %v855, %v690
        %v864 = vmul.f32 %v849, %v856
        %v865 = vadd.f32 %v863, %v864
        %v866 = vtanh.pop %v865
        %v867 = vmul.f32 %v862, %v866
        %v868 = vstv %s688
        %vm869 = vcmp.lt.s32.totalorder %v868, %v374
        %v870 = vsel %vm869, 1, 0
        %871 = vset.pattern.permute.xlu0 0
        %872 = vperm.xlu0 %871, %v870
        %v873 = vpop.permute.xlu0 %872
        %vm874 = vcmp.eq.s32.totalorder %v873, 1
        %v875 = vsel %vm874, %v867, %v689
        %876 = vst [vmem:[#allocation10] sm:$0xff] %v875
        %v877 = vsel %vm874, %v865, %v690
        %878 = vst [vmem:[#allocation12] sm:$0xff] %v877
        %v879 = vsel %vm874, %v867, 0.0
        %880 = vst [vmem:[%s357] sm:$0xff] %v879
        %s881 = sadd.s32 %s688, 1
        %v882 = vld [vmem:[#allocation10] sm:$0xff]
        %v883 = vld [vmem:[#allocation12] sm:$0xff]
        %s884 = smul.u32 1, 4
        %s885 = smul.addr %s884, 8
        %s886 = scalar_lea.vmem [#allocation2], %s885
        %v887 = vld [vmem:[%s886] sm:$0xff]
        %v888 = vld [vmem:[%s886 + $0x8] sm:$0xff]
        %v889 = vld [vmem:[%s886 + $0x10] sm:$0xff]
        %v890 = vld [vmem:[%s886 + $0x18] sm:$0xff]
        %891 = vmatprep.subr.mxu0 %v436
        %892 = vmatpush1.msra.mxu0 %v435
        %893 = vmatprep.subr.mxu0 %v432
        %894 = vmatpush1.msra.mxu0 %v431
        %895 = vmatprep.subr.mxu0 %v428
        %896 = vmatpush1.msra.mxu0 %v427
        %897 = vmatprep.subr.mxu0 %v424
        %898 = vmatpush1.msra.mxu0 %v423
        %899 = vmatprep.subr.mxu0 %v420
        %900 = vmatpush1.msra.mxu0 %v419
        %901 = vmatprep.subr.mxu0 %v416
        %902 = vmatpush1.msra.mxu0 %v415
        %903 = vmatprep.subr.mxu0 %v412
        %904 = vmatpush1.msra.mxu0 %v411
        %905 = vmatprep.subr.mxu0 %v408
        %906 = vmatpush1.msra.mxu0 %v407
        %907 = vmatprep.subr.mxu0 %v404
        %908 = vmatpush1.msra.mxu0 %v403
        %909 = vmatprep.subr.mxu0 %v400
        %910 = vmatpush1.msra.mxu0 %v399
        %911 = vmatprep.subr.mxu0 %v396
        %912 = vmatpush1.msra.mxu0 %v395
        %913 = vmatprep.subr.mxu0 %v392
        %914 = vmatpush1.msra.mxu0 %v391
        %915 = vmatprep.subr.mxu0 %v388
        %916 = vmatpush1.msra.mxu0 %v387
        %917 = vmatprep.subr.mxu0 %v384
        %918 = vmatpush1.msra.mxu0 %v383
        %919 = vmatprep.subr.mxu0 %v380
        %920 = vmatpush1.msra.mxu0 %v379
        %921 = vmatprep.subr.mxu0 %v376
        %922 = vmatpush1.msra.mxu0 %v375
        %923 = vmatprep.subr.mxu0 0.0
        %924 = vmatpush2.msra.mxu0 0.0
        %925 = vmatprep.subr.mxu0 0.0
        %926 = vmatpush2.msra.mxu0 0.0
        %927 = vmatprep.subr.mxu0 0.0
        %928 = vmatpush2.msra.mxu0 0.0
        %929 = vmatprep.subr.mxu0 0.0
        %930 = vmatpush2.msra.mxu0 0.0
        %931 = vmatprep.subr.mxu0 0.0
        %932 = vmatpush2.msra.mxu0 0.0
        %933 = vmatprep.subr.mxu0 0.0
        %934 = vmatpush2.msra.mxu0 0.0
        %935 = vmatprep.subr.mxu0 0.0
        %936 = vmatpush2.msra.mxu0 0.0
        %937 = vmatprep.subr.mxu0 0.0
        %938 = vmatpush2.msra.mxu0 0.0
        %939 = vmatprep.subr.mxu0 0.0
        %940 = vmatpush2.msra.mxu0 0.0
        %941 = vmatprep.subr.mxu0 0.0
        %942 = vmatpush2.msra.mxu0 0.0
        %943 = vmatprep.subr.mxu0 0.0
        %944 = vmatpush2.msra.mxu0 0.0
        %945 = vmatprep.subr.mxu0 0.0
        %946 = vmatpush2.msra.mxu0 0.0
        %947 = vmatprep.subr.mxu0 0.0
        %948 = vmatpush2.msra.mxu0 0.0
        %949 = vmatprep.subr.mxu0 0.0
        %950 = vmatpush2.msra.mxu0 0.0
        %951 = vmatprep.subr.mxu0 0.0
        %952 = vmatpush2.msra.mxu0 0.0
        %953 = vmatprep.subr.mxu0 0.0
        %954 = vmatpush2.msra.mxu0 0.0
        %955 = vmatprep.mubr.f32.mxu0 0.0
        %956 = vmatmul.mubr.f32.gmra.mxu0 %v882
        %v957 = vpop.f32.mrf.mxu0
        %v958 = vadd.f32 0.0, %v957
        %v959 = vpop.f32.mrf.mxu0
        %v960 = vadd.f32 0.0, %v959
        %961 = vdwg.mxu0
        %962 = vmatprep.subr.mxu0 %v438
        %963 = vmatpush1.msra.mxu0 %v437
        %964 = vmatprep.subr.mxu0 %v434
        %965 = vmatpush1.msra.mxu0 %v433
        %966 = vmatprep.subr.mxu0 %v430
        %967 = vmatpush1.msra.mxu0 %v429
        %968 = vmatprep.subr.mxu0 %v426
        %969 = vmatpush1.msra.mxu0 %v425
        %970 = vmatprep.subr.mxu0 %v422
        %971 = vmatpush1.msra.mxu0 %v421
        %972 = vmatprep.subr.mxu0 %v418
        %973 = vmatpush1.msra.mxu0 %v417
        %974 = vmatprep.subr.mxu0 %v414
        %975 = vmatpush1.msra.mxu0 %v413
        %976 = vmatprep.subr.mxu0 %v410
        %977 = vmatpush1.msra.mxu0 %v409
        %978 = vmatprep.subr.mxu0 %v406
        %979 = vmatpush1.msra.mxu0 %v405
        %980 = vmatprep.subr.mxu0 %v402
        %981 = vmatpush1.msra.mxu0 %v401
        %982 = vmatprep.subr.mxu0 %v398
        %983 = vmatpush1.msra.mxu0 %v397
        %984 = vmatprep.subr.mxu0 %v394
        %985 = vmatpush1.msra.mxu0 %v393
        %986 = vmatprep.subr.mxu0 %v390
        %987 = vmatpush1.msra.mxu0 %v389
        %988 = vmatprep.subr.mxu0 %v386
        %989 = vmatpush1.msra.mxu0 %v385
        %990 = vmatprep.subr.mxu0 %v382
        %991 = vmatpush1.msra.mxu0 %v381
        %992 = vmatprep.subr.mxu0 %v378
        %993 = vmatpush1.msra.mxu0 %v377
        %994 = vmatprep.subr.mxu0 0.0
        %995 = vmatpush2.msra.mxu0 0.0
        %996 = vmatprep.subr.mxu0 0.0
        %997 = vmatpush2.msra.mxu0 0.0
        %998 = vmatprep.subr.mxu0 0.0
        %999 = vmatpush2.msra.mxu0 0.0
        %1000 = vmatprep.subr.mxu0 0.0
        %1001 = vmatpush2.msra.mxu0 0.0
        %1002 = vmatprep.subr.mxu0 0.0
        %1003 = vmatpush2.msra.mxu0 0.0
        %1004 = vmatprep.subr.mxu0 0.0
        %1005 = vmatpush2.msra.mxu0 0.0
        %1006 = vmatprep.subr.mxu0 0.0
        %1007 = vmatpush2.msra.mxu0 0.0
        %1008 = vmatprep.subr.mxu0 0.0
        %1009 = vmatpush2.msra.mxu0 0.0
        %1010 = vmatprep.subr.mxu0 0.0
        %1011 = vmatpush2.msra.mxu0 0.0
        %1012 = vmatprep.subr.mxu0 0.0
        %1013 = vmatpush2.msra.mxu0 0.0
        %1014 = vmatprep.subr.mxu0 0.0
        %1015 = vmatpush2.msra.mxu0 0.0
        %1016 = vmatprep.subr.mxu0 0.0
        %1017 = vmatpush2.msra.mxu0 0.0
        %1018 = vmatprep.subr.mxu0 0.0
        %1019 = vmatpush2.msra.mxu0 0.0
        %1020 = vmatprep.subr.mxu0 0.0
        %1021 = vmatpush2.msra.mxu0 0.0
        %1022 = vmatprep.subr.mxu0 0.0
        %1023 = vmatpush2.msra.mxu0 0.0
        %1024 = vmatprep.subr.mxu0 0.0
        %1025 = vmatpush2.msra.mxu0 0.0
        %1026 = vmatprep.mubr.f32.mxu0 0.0
        %1027 = vmatmul.mubr.f32.gmra.mxu0 %v882
        %v1028 = vpop.f32.mrf.mxu0
        %v1029 = vadd.f32 0.0, %v1028
        %v1030 = vpop.f32.mrf.mxu0
        %v1031 = vadd.f32 0.0, %v1030
        %1032 = vdwg.mxu0
        %v1033 = vadd.f32 %v887, %v958
        %v1034 = vadd.f32 %v888, %v960
        %v1035 = vadd.f32 %v889, %v1029
        %v1036 = vadd.f32 %v890, %v1031
        %v1037 = vxor.u32 %v1033, 2147483648
        %v1038 = vmul.f32 %v1037, 1.442695
        %v1039 = vpow.pop %v1038
        %v1040 = vadd.f32 %v1039, 1.0
        %v1041 = vrcp.pop %v1040
        %v1042 = vmul.f32 1.0, %v1041
        %v1043 = vxor.u32 %v1034, 2147483648
        %v1044 = vmul.f32 %v1043, 1.442695
        %v1045 = vpow.pop %v1044
        %v1046 = vadd.f32 %v1045, 1.0
        %v1047 = vrcp.pop %v1046
        %v1048 = vmul.f32 1.0, %v1047
        %v1049 = vtanh.pop %v1035
        %v1050 = vxor.u32 %v1036, 2147483648
        %v1051 = vmul.f32 %v1050, 1.442695
        %v1052 = vpow.pop %v1051
        %v1053 = vadd.f32 %v1052, 1.0
        %v1054 = vrcp.pop %v1053
        %v1055 = vmul.f32 1.0, %v1054
        %v1056 = vmul.f32 %v1048, %v883
        %v1057 = vmul.f32 %v1042, %v1049
        %v1058 = vadd.f32 %v1056, %v1057
        %v1059 = vtanh.pop %v1058
        %v1060 = vmul.f32 %v1055, %v1059
        %v1061 = vstv %s881
        %vm1062 = vcmp.lt.s32.totalorder %v1061, %v374
        %v1063 = vsel %vm1062, 1, 0
        %1064 = vset.pattern.permute.xlu0 0
        %1065 = vperm.xlu0 %1064, %v1063
        %v1066 = vpop.permute.xlu0 %1065
        %vm1067 = vcmp.eq.s32.totalorder %v1066, 1
        %v1068 = vsel %vm1067, %v1060, %v882
        %1069 = vst [vmem:[#allocation10] sm:$0xff] %v1068
        %v1070 = vsel %vm1067, %v1058, %v883
        %1071 = vst [vmem:[#allocation12] sm:$0xff] %v1070
        %v1072 = vsel %vm1067, %v1060, 0.0
        %s1073 = scalar_lea.vmem %s357, 8 [#allocation9]
        %1074 = vst [vmem:[%s1073] sm:$0xff] %v1072
        %s1075 = sadd.s32 %s688, 2
        %v1076 = vld [vmem:[#allocation10] sm:$0xff]
        %v1077 = vld [vmem:[#allocation12] sm:$0xff]
        %s1078 = smul.u32 2, 4
        %s1079 = smul.addr %s1078, 8
        %s1080 = scalar_lea.vmem [#allocation2], %s1079
        %v1081 = vld [vmem:[%s1080] sm:$0xff]
        %v1082 = vld [vmem:[%s1080 + $0x8] sm:$0xff]
        %v1083 = vld [vmem:[%s1080 + $0x10] sm:$0xff]
        %v1084 = vld [vmem:[%s1080 + $0x18] sm:$0xff]
        %1085 = vmatprep.subr.mxu0 %v436
        %1086 = vmatpush1.msra.mxu0 %v435
        %1087 = vmatprep.subr.mxu0 %v432
        %1088 = vmatpush1.msra.mxu0 %v431
        %1089 = vmatprep.subr.mxu0 %v428
        %1090 = vmatpush1.msra.mxu0 %v427
        %1091 = vmatprep.subr.mxu0 %v424
        %1092 = vmatpush1.msra.mxu0 %v423
        %1093 = vmatprep.subr.mxu0 %v420
        %1094 = vmatpush1.msra.mxu0 %v419
        %1095 = vmatprep.subr.mxu0 %v416
        %1096 = vmatpush1.msra.mxu0 %v415
        %1097 = vmatprep.subr.mxu0 %v412
        %1098 = vmatpush1.msra.mxu0 %v411
        %1099 = vmatprep.subr.mxu0 %v408
        %1100 = vmatpush1.msra.mxu0 %v407
        %1101 = vmatprep.subr.mxu0 %v404
        %1102 = vmatpush1.msra.mxu0 %v403
        %1103 = vmatprep.subr.mxu0 %v400
        %1104 = vmatpush1.msra.mxu0 %v399
        %1105 = vmatprep.subr.mxu0 %v396
        %1106 = vmatpush1.msra.mxu0 %v395
        %1107 = vmatprep.subr.mxu0 %v392
        %1108 = vmatpush1.msra.mxu0 %v391
        %1109 = vmatprep.subr.mxu0 %v388
        %1110 = vmatpush1.msra.mxu0 %v387
        %1111 = vmatprep.subr.mxu0 %v384
        %1112 = vmatpush1.msra.mxu0 %v383
        %1113 = vmatprep.subr.mxu0 %v380
        %1114 = vmatpush1.msra.mxu0 %v379
        %1115 = vmatprep.subr.mxu0 %v376
        %1116 = vmatpush1.msra.mxu0 %v375
        %1117 = vmatprep.subr.mxu0 0.0
        %1118 = vmatpush2.msra.mxu0 0.0
        %1119 = vmatprep.subr.mxu0 0.0
        %1120 = vmatpush2.msra.mxu0 0.0
        %1121 = vmatprep.subr.mxu0 0.0
        %1122 = vmatpush2.msra.mxu0 0.0
        %1123 = vmatprep.subr.mxu0 0.0
        %1124 = vmatpush2.msra.mxu0 0.0
        %1125 = vmatprep.subr.mxu0 0.0
        %1126 = vmatpush2.msra.mxu0 0.0
        %1127 = vmatprep.subr.mxu0 0.0
        %1128 = vmatpush2.msra.mxu0 0.0
        %1129 = vmatprep.subr.mxu0 0.0
        %1130 = vmatpush2.msra.mxu0 0.0
        %1131 = vmatprep.subr.mxu0 0.0
        %1132 = vmatpush2.msra.mxu0 0.0
        %1133 = vmatprep.subr.mxu0 0.0
        %1134 = vmatpush2.msra.mxu0 0.0
        %1135 = vmatprep.subr.mxu0 0.0
        %1136 = vmatpush2.msra.mxu0 0.0
        %1137 = vmatprep.subr.mxu0 0.0
        %1138 = vmatpush2.msra.mxu0 0.0
        %1139 = vmatprep.subr.mxu0 0.0
        %1140 = vmatpush2.msra.mxu0 0.0
        %1141 = vmatprep.subr.mxu0 0.0
        %1142 = vmatpush2.msra.mxu0 0.0
        %1143 = vmatprep.subr.mxu0 0.0
        %1144 = vmatpush2.msra.mxu0 0.0
        %1145 = vmatprep.subr.mxu0 0.0
        %1146 = vmatpush2.msra.mxu0 0.0
        %1147 = vmatprep.subr.mxu0 0.0
        %1148 = vmatpush2.msra.mxu0 0.0
        %1149 = vmatprep.mubr.f32.mxu0 0.0
        %1150 = vmatmul.mubr.f32.gmra.mxu0 %v1076
        %v1151 = vpop.f32.mrf.mxu0
        %v1152 = vadd.f32 0.0, %v1151
        %v1153 = vpop.f32.mrf.mxu0
        %v1154 = vadd.f32 0.0, %v1153
        %1155 = vdwg.mxu0
        %1156 = vmatprep.subr.mxu0 %v438
        %1157 = vmatpush1.msra.mxu0 %v437
        %1158 = vmatprep.subr.mxu0 %v434
        %1159 = vmatpush1.msra.mxu0 %v433
        %1160 = vmatprep.subr.mxu0 %v430
        %1161 = vmatpush1.msra.mxu0 %v429
        %1162 = vmatprep.subr.mxu0 %v426
        %1163 = vmatpush1.msra.mxu0 %v425
        %1164 = vmatprep.subr.mxu0 %v422
        %1165 = vmatpush1.msra.mxu0 %v421
        %1166 = vmatprep.subr.mxu0 %v418
        %1167 = vmatpush1.msra.mxu0 %v417
        %1168 = vmatprep.subr.mxu0 %v414
        %1169 = vmatpush1.msra.mxu0 %v413
        %1170 = vmatprep.subr.mxu0 %v410
        %1171 = vmatpush1.msra.mxu0 %v409
        %1172 = vmatprep.subr.mxu0 %v406
        %1173 = vmatpush1.msra.mxu0 %v405
        %1174 = vmatprep.subr.mxu0 %v402
        %1175 = vmatpush1.msra.mxu0 %v401
        %1176 = vmatprep.subr.mxu0 %v398
        %1177 = vmatpush1.msra.mxu0 %v397
        %1178 = vmatprep.subr.mxu0 %v394
        %1179 = vmatpush1.msra.mxu0 %v393
        %1180 = vmatprep.subr.mxu0 %v390
        %1181 = vmatpush1.msra.mxu0 %v389
        %1182 = vmatprep.subr.mxu0 %v386
        %1183 = vmatpush1.msra.mxu0 %v385
        %1184 = vmatprep.subr.mxu0 %v382
        %1185 = vmatpush1.msra.mxu0 %v381
        %1186 = vmatprep.subr.mxu0 %v378
        %1187 = vmatpush1.msra.mxu0 %v377
        %1188 = vmatprep.subr.mxu0 0.0
        %1189 = vmatpush2.msra.mxu0 0.0
        %1190 = vmatprep.subr.mxu0 0.0
        %1191 = vmatpush2.msra.mxu0 0.0
        %1192 = vmatprep.subr.mxu0 0.0
        %1193 = vmatpush2.msra.mxu0 0.0
        %1194 = vmatprep.subr.mxu0 0.0
        %1195 = vmatpush2.msra.mxu0 0.0
        %1196 = vmatprep.subr.mxu0 0.0
        %1197 = vmatpush2.msra.mxu0 0.0
        %1198 = vmatprep.subr.mxu0 0.0
        %1199 = vmatpush2.msra.mxu0 0.0
        %1200 = vmatprep.subr.mxu0 0.0
        %1201 = vmatpush2.msra.mxu0 0.0
        %1202 = vmatprep.subr.mxu0 0.0
        %1203 = vmatpush2.msra.mxu0 0.0
        %1204 = vmatprep.subr.mxu0 0.0
        %1205 = vmatpush2.msra.mxu0 0.0
        %1206 = vmatprep.subr.mxu0 0.0
        %1207 = vmatpush2.msra.mxu0 0.0
        %1208 = vmatprep.subr.mxu0 0.0
        %1209 = vmatpush2.msra.mxu0 0.0
        %1210 = vmatprep.subr.mxu0 0.0
        %1211 = vmatpush2.msra.mxu0 0.0
        %1212 = vmatprep.subr.mxu0 0.0
        %1213 = vmatpush2.msra.mxu0 0.0
        %1214 = vmatprep.subr.mxu0 0.0
        %1215 = vmatpush2.msra.mxu0 0.0
        %1216 = vmatprep.subr.mxu0 0.0
        %1217 = vmatpush2.msra.mxu0 0.0
        %1218 = vmatprep.subr.mxu0 0.0
        %1219 = vmatpush2.msra.mxu0 0.0
        %1220 = vmatprep.mubr.f32.mxu0 0.0
        %1221 = vmatmul.mubr.f32.gmra.mxu0 %v1076
        %v1222 = vpop.f32.mrf.mxu0
        %v1223 = vadd.f32 0.0, %v1222
        %v1224 = vpop.f32.mrf.mxu0
        %v1225 = vadd.f32 0.0, %v1224
        %1226 = vdwg.mxu0
        %v1227 = vadd.f32 %v1081, %v1152
        %v1228 = vadd.f32 %v1082, %v1154
        %v1229 = vadd.f32 %v1083, %v1223
        %v1230 = vadd.f32 %v1084, %v1225
        %v1231 = vxor.u32 %v1227, 2147483648
        %v1232 = vmul.f32 %v1231, 1.442695
        %v1233 = vpow.pop %v1232
        %v1234 = vadd.f32 %v1233, 1.0
        %v1235 = vrcp.pop %v1234
        %v1236 = vmul.f32 1.0, %v1235
        %v1237 = vxor.u32 %v1228, 2147483648
        %v1238 = vmul.f32 %v1237, 1.442695
        %v1239 = vpow.pop %v1238
        %v1240 = vadd.f32 %v1239, 1.0
        %v1241 = vrcp.pop %v1240
        %v1242 = vmul.f32 1.0, %v1241
        %v1243 = vtanh.pop %v1229
        %v1244 = vxor.u32 %v1230, 2147483648
        %v1245 = vmul.f32 %v1244, 1.442695
        %v1246 = vpow.pop %v1245
        %v1247 = vadd.f32 %v1246, 1.0
        %v1248 = vrcp.pop %v1247
        %v1249 = vmul.f32 1.0, %v1248
        %v1250 = vmul.f32 %v1242, %v1077
        %v1251 = vmul.f32 %v1236, %v1243
        %v1252 = vadd.f32 %v1250, %v1251
        %v1253 = vtanh.pop %v1252
        %v1254 = vmul.f32 %v1249, %v1253
        %v1255 = vstv %s1075
        %vm1256 = vcmp.lt.s32.totalorder %v1255, %v374
        %v1257 = vsel %vm1256, 1, 0
        %1258 = vset.pattern.permute.xlu0 0
        %1259 = vperm.xlu0 %1258, %v1257
        %v1260 = vpop.permute.xlu0 %1259
        %vm1261 = vcmp.eq.s32.totalorder %v1260, 1
        %v1262 = vsel %vm1261, %v1254, %v1076
        %1263 = vst [vmem:[#allocation10] sm:$0xff] %v1262
        %v1264 = vsel %vm1261, %v1252, %v1077
        %1265 = vst [vmem:[#allocation12] sm:$0xff] %v1264
        %v1266 = vsel %vm1261, %v1254, 0.0
        %s1267 = scalar_lea.vmem %s357, 16 [#allocation9]
        %1268 = vst [vmem:[%s1267] sm:$0xff] %v1266
        %s1269 = sadd.s32 %s688, 3
        %v1270 = vld [vmem:[#allocation10] sm:$0xff]
        %v1271 = vld [vmem:[#allocation12] sm:$0xff]
        %s1272 = smul.u32 3, 4
        %s1273 = smul.addr %s1272, 8
        %s1274 = scalar_lea.vmem [#allocation2], %s1273
        %v1275 = vld [vmem:[%s1274] sm:$0xff]
        %v1276 = vld [vmem:[%s1274 + $0x8] sm:$0xff]
        %v1277 = vld [vmem:[%s1274 + $0x10] sm:$0xff]
        %v1278 = vld [vmem:[%s1274 + $0x18] sm:$0xff]
        %1279 = vmatprep.subr.mxu0 %v436
        %1280 = vmatpush1.msra.mxu0 %v435
        %1281 = vmatprep.subr.mxu0 %v432
        %1282 = vmatpush1.msra.mxu0 %v431
        %1283 = vmatprep.subr.mxu0 %v428
        %1284 = vmatpush1.msra.mxu0 %v427
        %1285 = vmatprep.subr.mxu0 %v424
        %1286 = vmatpush1.msra.mxu0 %v423
        %1287 = vmatprep.subr.mxu0 %v420
        %1288 = vmatpush1.msra.mxu0 %v419
        %1289 = vmatprep.subr.mxu0 %v416
        %1290 = vmatpush1.msra.mxu0 %v415
        %1291 = vmatprep.subr.mxu0 %v412
        %1292 = vmatpush1.msra.mxu0 %v411
        %1293 = vmatprep.subr.mxu0 %v408
        %1294 = vmatpush1.msra.mxu0 %v407
        %1295 = vmatprep.subr.mxu0 %v404
        %1296 = vmatpush1.msra.mxu0 %v403
        %1297 = vmatprep.subr.mxu0 %v400
        %1298 = vmatpush1.msra.mxu0 %v399
        %1299 = vmatprep.subr.mxu0 %v396
        %1300 = vmatpush1.msra.mxu0 %v395
        %1301 = vmatprep.subr.mxu0 %v392
        %1302 = vmatpush1.msra.mxu0 %v391
        %1303 = vmatprep.subr.mxu0 %v388
        %1304 = vmatpush1.msra.mxu0 %v387
        %1305 = vmatprep.subr.mxu0 %v384
        %1306 = vmatpush1.msra.mxu0 %v383
        %1307 = vmatprep.subr.mxu0 %v380
        %1308 = vmatpush1.msra.mxu0 %v379
        %1309 = vmatprep.subr.mxu0 %v376
        %1310 = vmatpush1.msra.mxu0 %v375
        %1311 = vmatprep.subr.mxu0 0.0
        %1312 = vmatpush2.msra.mxu0 0.0
        %1313 = vmatprep.subr.mxu0 0.0
        %1314 = vmatpush2.msra.mxu0 0.0
        %1315 = vmatprep.subr.mxu0 0.0
        %1316 = vmatpush2.msra.mxu0 0.0
        %1317 = vmatprep.subr.mxu0 0.0
        %1318 = vmatpush2.msra.mxu0 0.0
        %1319 = vmatprep.subr.mxu0 0.0
        %1320 = vmatpush2.msra.mxu0 0.0
        %1321 = vmatprep.subr.mxu0 0.0
        %1322 = vmatpush2.msra.mxu0 0.0
        %1323 = vmatprep.subr.mxu0 0.0
        %1324 = vmatpush2.msra.mxu0 0.0
        %1325 = vmatprep.subr.mxu0 0.0
        %1326 = vmatpush2.msra.mxu0 0.0
        %1327 = vmatprep.subr.mxu0 0.0
        %1328 = vmatpush2.msra.mxu0 0.0
        %1329 = vmatprep.subr.mxu0 0.0
        %1330 = vmatpush2.msra.mxu0 0.0
        %1331 = vmatprep.subr.mxu0 0.0
        %1332 = vmatpush2.msra.mxu0 0.0
        %1333 = vmatprep.subr.mxu0 0.0
        %1334 = vmatpush2.msra.mxu0 0.0
        %1335 = vmatprep.subr.mxu0 0.0
        %1336 = vmatpush2.msra.mxu0 0.0
        %1337 = vmatprep.subr.mxu0 0.0
        %1338 = vmatpush2.msra.mxu0 0.0
        %1339 = vmatprep.subr.mxu0 0.0
        %1340 = vmatpush2.msra.mxu0 0.0
        %1341 = vmatprep.subr.mxu0 0.0
        %1342 = vmatpush2.msra.mxu0 0.0
        %1343 = vmatprep.mubr.f32.mxu0 0.0
        %1344 = vmatmul.mubr.f32.gmra.mxu0 %v1270
        %v1345 = vpop.f32.mrf.mxu0
        %v1346 = vadd.f32 0.0, %v1345
        %v1347 = vpop.f32.mrf.mxu0
        %v1348 = vadd.f32 0.0, %v1347
        %1349 = vdwg.mxu0
        %1350 = vmatprep.subr.mxu0 %v438
        %1351 = vmatpush1.msra.mxu0 %v437
        %1352 = vmatprep.subr.mxu0 %v434
        %1353 = vmatpush1.msra.mxu0 %v433
        %1354 = vmatprep.subr.mxu0 %v430
        %1355 = vmatpush1.msra.mxu0 %v429
        %1356 = vmatprep.subr.mxu0 %v426
        %1357 = vmatpush1.msra.mxu0 %v425
        %1358 = vmatprep.subr.mxu0 %v422
        %1359 = vmatpush1.msra.mxu0 %v421
        %1360 = vmatprep.subr.mxu0 %v418
        %1361 = vmatpush1.msra.mxu0 %v417
        %1362 = vmatprep.subr.mxu0 %v414
        %1363 = vmatpush1.msra.mxu0 %v413
        %1364 = vmatprep.subr.mxu0 %v410
        %1365 = vmatpush1.msra.mxu0 %v409
        %1366 = vmatprep.subr.mxu0 %v406
        %1367 = vmatpush1.msra.mxu0 %v405
        %1368 = vmatprep.subr.mxu0 %v402
        %1369 = vmatpush1.msra.mxu0 %v401
        %1370 = vmatprep.subr.mxu0 %v398
        %1371 = vmatpush1.msra.mxu0 %v397
        %1372 = vmatprep.subr.mxu0 %v394
        %1373 = vmatpush1.msra.mxu0 %v393
        %1374 = vmatprep.subr.mxu0 %v390
        %1375 = vmatpush1.msra.mxu0 %v389
        %1376 = vmatprep.subr.mxu0 %v386
        %1377 = vmatpush1.msra.mxu0 %v385
        %1378 = vmatprep.subr.mxu0 %v382
        %1379 = vmatpush1.msra.mxu0 %v381
        %1380 = vmatprep.subr.mxu0 %v378
        %1381 = vmatpush1.msra.mxu0 %v377
        %1382 = vmatprep.subr.mxu0 0.0
        %1383 = vmatpush2.msra.mxu0 0.0
        %1384 = vmatprep.subr.mxu0 0.0
        %1385 = vmatpush2.msra.mxu0 0.0
        %1386 = vmatprep.subr.mxu0 0.0
        %1387 = vmatpush2.msra.mxu0 0.0
        %1388 = vmatprep.subr.mxu0 0.0
        %1389 = vmatpush2.msra.mxu0 0.0
        %1390 = vmatprep.subr.mxu0 0.0
        %1391 = vmatpush2.msra.mxu0 0.0
        %1392 = vmatprep.subr.mxu0 0.0
        %1393 = vmatpush2.msra.mxu0 0.0
        %1394 = vmatprep.subr.mxu0 0.0
        %1395 = vmatpush2.msra.mxu0 0.0
        %1396 = vmatprep.subr.mxu0 0.0
        %1397 = vmatpush2.msra.mxu0 0.0
        %1398 = vmatprep.subr.mxu0 0.0
        %1399 = vmatpush2.msra.mxu0 0.0
        %1400 = vmatprep.subr.mxu0 0.0
        %1401 = vmatpush2.msra.mxu0 0.0
        %1402 = vmatprep.subr.mxu0 0.0
        %1403 = vmatpush2.msra.mxu0 0.0
        %1404 = vmatprep.subr.mxu0 0.0
        %1405 = vmatpush2.msra.mxu0 0.0
        %1406 = vmatprep.subr.mxu0 0.0
        %1407 = vmatpush2.msra.mxu0 0.0
        %1408 = vmatprep.subr.mxu0 0.0
        %1409 = vmatpush2.msra.mxu0 0.0
        %1410 = vmatprep.subr.mxu0 0.0
        %1411 = vmatpush2.msra.mxu0 0.0
        %1412 = vmatprep.subr.mxu0 0.0
        %1413 = vmatpush2.msra.mxu0 0.0
        %1414 = vmatprep.mubr.f32.mxu0 0.0
        %1415 = vmatmul.mubr.f32.gmra.mxu0 %v1270
        %v1416 = vpop.f32.mrf.mxu0
        %v1417 = vadd.f32 0.0, %v1416
        %v1418 = vpop.f32.mrf.mxu0
        %v1419 = vadd.f32 0.0, %v1418
        %1420 = vdwg.mxu0
        %v1421 = vadd.f32 %v1275, %v1346
        %v1422 = vadd.f32 %v1276, %v1348
        %v1423 = vadd.f32 %v1277, %v1417
        %v1424 = vadd.f32 %v1278, %v1419
        %v1425 = vxor.u32 %v1421, 2147483648
        %v1426 = vmul.f32 %v1425, 1.442695
        %v1427 = vpow.pop %v1426
        %v1428 = vadd.f32 %v1427, 1.0
        %v1429 = vrcp.pop %v1428
        %v1430 = vmul.f32 1.0, %v1429
        %v1431 = vxor.u32 %v1422, 2147483648
        %v1432 = vmul.f32 %v1431, 1.442695
        %v1433 = vpow.pop %v1432
        %v1434 = vadd.f32 %v1433, 1.0
        %v1435 = vrcp.pop %v1434
        %v1436 = vmul.f32 1.0, %v1435
        %v1437 = vtanh.pop %v1423
        %v1438 = vxor.u32 %v1424, 2147483648
        %v1439 = vmul.f32 %v1438, 1.442695
        %v1440 = vpow.pop %v1439
        %v1441 = vadd.f32 %v1440, 1.0
        %v1442 = vrcp.pop %v1441
        %v1443 = vmul.f32 1.0, %v1442
        %v1444 = vmul.f32 %v1436, %v1271
        %v1445 = vmul.f32 %v1430, %v1437
        %v1446 = vadd.f32 %v1444, %v1445
        %v1447 = vtanh.pop %v1446
        %v1448 = vmul.f32 %v1443, %v1447
        %v1449 = vstv %s1269
        %vm1450 = vcmp.lt.s32.totalorder %v1449, %v374
        %v1451 = vsel %vm1450, 1, 0
        %1452 = vset.pattern.permute.xlu0 0
        %1453 = vperm.xlu0 %1452, %v1451
        %v1454 = vpop.permute.xlu0 %1453
        %vm1455 = vcmp.eq.s32.totalorder %v1454, 1
        %v1456 = vsel %vm1455, %v1448, %v1270
        %1457 = vst [vmem:[#allocation10] sm:$0xff] %v1456
        %v1458 = vsel %vm1455, %v1446, %v1271
        %1459 = vst [vmem:[#allocation12] sm:$0xff] %v1458
        %v1460 = vsel %vm1455, %v1448, 0.0
        %s1461 = scalar_lea.vmem %s357, 24 [#allocation9]
        %1462 = vst [vmem:[%s1461] sm:$0xff] %v1460
        %s1463 = sand.u32 %s166, 1
        %s1464 = scalar_lea.sflag [#allocation5], %s1463
        %s1465 = sand.u32 %s166, 1
        %s1466 = smul.addr %s1465, 32
        %s1467 = scalar_lea.vmem [#allocation9], %s1466
        // Predicated region
        $region57: #{tpu_custom_call.1} parent=39 // pred_check
          %p1468 = pneg %p176
        $region58: #{tpu_custom_call.1} parent=39 // pred_check_branch
          %1470 = sbr.rel (%p1468) target = $region60
        $region59: #{tpu_custom_call.1} parent=39 // pred_region
          %s1471 = smul.u32 4, %s32
          %s1473 = ssub.s32 512, 512
          %1474 = vsyncadd %s1464, %s1473
          %s1475 = sadd.s32 %s31, %s1471
          %s1476 = smul.addr %s1475, 128
          %s1477 = scalar_lea.hbm %s5, %s1476
          %s1478 = sshll.u32 %s1467, 4
          %s1479 = int_to_ptr.vmem [resolvable:$true] %s1478
          %1484 = dma.vmem_to_hbm [thread:$0]  %s1479, 512, %s1477, %s1464, 128, 128, 8
        $region60: #{tpu_custom_call.1} parent=39 // pred_fallthru
          _
        // Predicated region
        $region61: #{tpu_custom_call.1} parent=39 // pred_check
          %p1485 = pneg %p202
        $region62: #{tpu_custom_call.1} parent=39 // pred_check_branch
          %1487 = sbr.rel (%p1485) target = $region64
        $region63: #{tpu_custom_call.1} parent=39 // pred_region
          %s1489 = ssub.s32 128, 128
          %1490 = vsyncadd [#allocation11], %s1489
          %s1491 = smul.addr %s31, 128
          %s1492 = scalar_lea.hbm %s6, %s1491
          %s1494 = sshll.u32 [#allocation10], 4
          %s1495 = int_to_ptr.vmem [resolvable:$true] %s1494
          %1497 = dma.vmem_to_hbm [thread:$0]  %s1495, 128, %s1492, [#allocation11]
        $region64: #{tpu_custom_call.1} parent=39 // pred_fallthru
          _
        // Predicated region
        $region65: #{tpu_custom_call.1} parent=39 // pred_check
          %p1498 = pneg %p228
        $region66: #{tpu_custom_call.1} parent=39 // pred_check_branch
          %1500 = sbr.rel (%p1498) target = $region68
        $region67: #{tpu_custom_call.1} parent=39 // pred_region
          %s1502 = ssub.s32 128, 128
          %1503 = vsyncadd [#allocation11], %s1502
          %s1504 = smul.addr %s31, 128
          %s1505 = scalar_lea.hbm %s7, %s1504
          %s1507 = sshll.u32 [#allocation12], 4
          %s1508 = int_to_ptr.vmem [resolvable:$true] %s1507
          %1510 = dma.vmem_to_hbm [thread:$0]  %s1508, 128, %s1505, [#allocation11]
        $region68: #{tpu_custom_call.1} parent=39 // pred_fallthru
          _
        // Predicated region
        $region69: #{tpu_custom_call.1} parent=39 // pred_check
          %p1511 = pneg %p202
        $region70: #{tpu_custom_call.1} parent=39 // pred_check_branch
          %1513 = sbr.rel (%p1511) target = $region72
        $region71: #{tpu_custom_call.1} parent=39 // pred_region
          %1514 = dma.done [#allocation11], 128
        $region72: #{tpu_custom_call.1} parent=39 // pred_fallthru
          _
        // Predicated region
        $region73: #{tpu_custom_call.1} parent=39 // pred_check
          %p1515 = pneg %p228
        $region74: #{tpu_custom_call.1} parent=39 // pred_check_branch
          %1517 = sbr.rel (%p1515) target = $region76
        $region75: #{tpu_custom_call.1} parent=39 // pred_region
          %1518 = dma.done [#allocation11], 128
        $region76: #{tpu_custom_call.1} parent=39 // pred_fallthru
          _
      $region40: #{tpu_custom_call.1} parent=5 // pred_fallthru
        _
      %p1519 = scmp.le.s32.totalorder 2, %s22
      // Predicated region
      $region77: #{tpu_custom_call.1} parent=5 // pred_check
        %p1520 = pneg %p1519
      $region78: #{tpu_custom_call.1} parent=5 // pred_check_branch
        %1522 = sbr.rel (%p1520) target = $region80
      $region79: #{tpu_custom_call.1} parent=5 // pred_region
        %s1523 = ssub.s32 %s22, 2
        // Predicated region
        $region81: #{tpu_custom_call.1} parent=79 // pred_check
          %p1524 = pneg %p182
        $region82: #{tpu_custom_call.1} parent=79 // pred_check_branch
          %1526 = sbr.rel (%p1524) target = $region84
        $region83: #{tpu_custom_call.1} parent=79 // pred_region
          %s1527 = sand.u32 %s167, 1
          %s1528 = scalar_lea.sflag [#allocation5], %s1527
          %s1529 = sand.u32 %s167, 1
          %s1530 = smul.addr %s1529, 32
          %s1531 = scalar_lea.vmem [#allocation9], %s1530
          %1532 = dma.done %s1528, 512
        $region84: #{tpu_custom_call.1} parent=79 // pred_fallthru
          _
      $region80: #{tpu_custom_call.1} parent=5 // pred_fallthru
        _
    $region6: #{tpu_custom_call.1} parent=1 // loop_footer
      %s26 = sadd.s32 1, %s22
    $region7: #{tpu_custom_call.1} parent=1 // loop_footer_branch
      %21 = sbr.rel target = $region3
    $region8: #{tpu_custom_call.1} parent=1 // loop_exit
      _
    %1533 = vsyncpa [#allocation4], 1
    %s1534 = scalar_lea.sflag [#allocation4], 1
    %1535 = vsyncpa %s1534, 1
    %1536 = vsyncpa [#allocation7], 1
    %1537 = vsyncpa [#allocation5], 1
    %s1538 = scalar_lea.sflag [#allocation5], 1
    %1539 = vsyncpa %s1538, 1
    %1540 = vsyncpa [#allocation11], 1

// kernel: tpu_custom_call.1
$region0: #{tpu_custom_call.1}
  #allocation0 [shape = 'u32[]', space=smem, size = 0x4, offset = 0x4, fixed_abs, tag = 'smem constant byte address 0x4 - core index']
  #allocation1 [shape = 'u32[144,128]{1,0:T(1,128)}', space=vmem, size = 0x12000, scoped, tag = 'internal scratch']
  #allocation2 [shape = 'f32[32,512]{1,0:T(8,128)}', space=vmem, size = 0x10000, scoped, tag = 'scratch operand']
  %s0 = inlined_call_operand.hbm [shape: f32[8,8,32], index: 0, kind: input, shape index: {}]
  %s1 = inlined_call_operand.hbm [shape: f32[32,512], index: 1, kind: input, shape index: {}]
  %s2 = inlined_call_operand.hbm [shape: f32[128,512], index: 2, kind: input, shape index: {}]
  %s3 = inlined_call_operand.vmem [shape: f32[1,512], index: 3, kind: input, shape index: {}]
  %s4 = inlined_call_operand.vmem [shape: s32[8,1], index: 4, kind: input, shape index: {}]
  %s5 = inlined_call_operand.hbm [shape: f32[8,8,128], index: 5, kind: output, shape index: {0}]
  %s6 = inlined_call_operand.hbm [shape: f32[8,128], index: 6, kind: output, shape index: {1}]
  %s7 = inlined_call_operand.hbm [shape: f32[8,128], index: 7, kind: output, shape index: {2}]
  %8 = xla_tuple %s5, %s6, %s7
  %s9 = sld [smem:[#allocation0]]
  $region85: #{tpu_custom_call.1} parent=0
    _
  %s11 = ssub.s32 1, %s9
  %s12 = scalar_select 0, %s11, %s9
  $region1: #{tpu_custom_call.1} parent=0
    #allocation3 [shape = 'u8[32768]{0}', space=vmem, size = 0x8000, scoped, tag = 'input window, operand 0']
    #allocation4 [shape = 's32[2]{0}', space=sflag, size = 0x8, scoped, tag = 'scoped memory for tpu_custom_call.1']
    #allocation5 [shape = 's32[2]{0}', space=sflag, size = 0x8, scoped, tag = 'scoped memory for tpu_custom_call.1']
    #allocation6 [shape = 'u8[65536]{0}', space=vmem, size = 0x10000, scoped, tag = 'input window, operand 1, single buffered']
    #allocation7 [shape = 's32[1]{0}', space=sflag, size = 0x4, scoped, tag = 'scoped memory for tpu_custom_call.1']
    #allocation8 [shape = 'u8[262144]{0}', space=vmem, size = 0x40000, scoped, tag = 'input window, operand 2, single buffered']
    #allocation9 [shape = 'u8[32768]{0}', space=vmem, size = 0x8000, scoped, tag = 'output window, operand 0']
    #allocation10 [shape = 'u8[4096]{0}', space=vmem, size = 0x1000, scoped, tag = 'output window, operand 1, single buffered']
    #allocation11 [shape = 's32[1]{0}', space=sflag, size = 0x4, scoped, tag = 'scoped memory for tpu_custom_call.1']
    #allocation12 [shape = 'u8[4096]{0}', space=vmem, size = 0x1000, scoped, tag = 'output window, operand 2, single buffered']
    %13 = vsyncpa [#allocation4], 0
    %s14 = scalar_lea.sflag [#allocation4], 1
    %15 = vsyncpa %s14, 0
    %16 = vsyncpa [#allocation7], 0
    %17 = vsyncpa [#allocation5], 0
    %s18 = scalar_lea.sflag [#allocation5], 1
    %19 = vsyncpa %s18, 0
    %20 = vsyncpa [#allocation11], 0
    loop: start=0, step=1, limit=4
    $region2: #{tpu_custom_call.1} parent=1 // loop_pre_header
      _
    $region3: #{tpu_custom_call.1} parent=1 // loop_header
      %s22 = sphi 0, %s26
      %p23 = scmp.ge.s32.totalorder %s22, 4
      %s29 = sphi 0, %s41
      %s30 = sphi 0, %s37
      %s31 = sphi 0, %s29
      %s32 = sphi 0, %s30
      %s33 = sphi 0, %s31
      %s34 = sphi 0, %s32
      %s46 = sphi 0, %s48
      %s49 = sphi 0, %s46
      %s50 = sphi 0, %s49
      %s66 = sphi 0, %s50
      %s70 = sphi 0, %s70
      %s72 = sphi 0, %s70
      %s73 = sphi 0, %s72
      %s87 = sphi 0, %s73
      %s91 = sphi 0, %s91
      %s93 = sphi 0, %s91
      %s94 = sphi 0, %s93
      %s108 = sphi 0, %s94
      %s112 = sphi 0, %s112
      %s114 = sphi 0, %s112
      %s115 = sphi 0, %s114
      %s129 = sphi 0, %s115
      %s135 = sphi 0, %s137
      %s138 = sphi 0, %s135
      %s139 = sphi 0, %s138
      %s155 = sphi 0, %s139
      %s163 = sphi 0, %s165
      %s166 = sphi 0, %s163
      %s167 = sphi 0, %s166
      %s183 = sphi 0, %s167
      %s189 = sphi 0, %s191
      %s192 = sphi 0, %s189
      %s193 = sphi 0, %s192
      %s209 = sphi 0, %s193
      %s215 = sphi 0, %s217
      %s218 = sphi 0, %s215
      %s219 = sphi 0, %s218
      %s235 = sphi 0, %s219
    $region4: #{tpu_custom_call.1} parent=1 // loop_header_branch
      %25 = sbr.rel (%p23) target = $region8
    $region5: #{tpu_custom_call.1} parent=1 // loop_body
      %s27 = ssub.s32 %s22, 1
      %s28 = ssub.s32 %s22, 2
      %s35 = sadd.s32 1, %s30
      %p36 = scmp.ge.s32.totalorder %s35, 2
      %s37 = scalar_select %p36, 0, %s35
      %s38 = sadd.s32 1, %s29
      %s39 = scalar_select %p36, %s38, %s29
      %p40 = scmp.ge.s32.totalorder %s39, 1
      %s41 = scalar_select %p40, 0, %s39
      %s42 = ssub.s32 %s30, %s37
      %s43 = ssub.s32 %s29, %s41
      %s44 = sor.u32 %s42, %s43
      %p45 = scmp.eq.s32.totalorder %s44, 0
      %s47 = sadd.s32 %s46, 1
      %s48 = scalar_select %p45, %s46, %s47
      %p51 = pneg %p45
      %p52 = scmp.eq.s32.totalorder %s22, 1
      %p53 = por %p51, %p52
      %p54 = scmp.ne.s32.totalorder %s46, %s49
      %p55 = scmp.eq.s32.totalorder %s22, 0
      %p56 = por %p54, %p55
      %p57 = scmp.ne.s32.totalorder %s46, %s49
      %p58 = scmp.eq.s32.totalorder %s27, 1
      %p59 = por %p57, %p58
      %p60 = scmp.ne.s32.totalorder %s49, %s50
      %p61 = scmp.eq.s32.totalorder %s27, 0
      %p62 = por %p60, %p61
      %p63 = scmp.ne.s32.totalorder %s49, %s50
      %p64 = scmp.eq.s32.totalorder %s28, 1
      %p65 = por %p63, %p64
      %p67 = scmp.ne.s32.totalorder %s50, %s66
      %p68 = scmp.eq.s32.totalorder %s28, 0
      %p69 = por %p67, %p68
      %s71 = sadd.s32 %s70, 1
      %p74 = scmp.eq.s32.totalorder %s22, 1
      %p75 = scmp.ne.s32.totalorder %s70, %s72
      %p76 = scmp.eq.s32.totalorder %s22, 0
      %p77 = por %p75, %p76
      %p78 = scmp.ne.s32.totalorder %s70, %s72
      %p79 = scmp.eq.s32.totalorder %s27, 1
      %p80 = por %p78, %p79
      %p81 = scmp.ne.s32.totalorder %s72, %s73
      %p82 = scmp.eq.s32.totalorder %s27, 0
      %p83 = por %p81, %p82
      %p84 = scmp.ne.s32.totalorder %s72, %s73
      %p85 = scmp.eq.s32.totalorder %s28, 1
      %p86 = por %p84, %p85
      %p88 = scmp.ne.s32.totalorder %s73, %s87
      %p89 = scmp.eq.s32.totalorder %s28, 0
      %p90 = por %p88, %p89
      %s92 = sadd.s32 %s91, 1
      %p95 = scmp.eq.s32.totalorder %s22, 1
      %p96 = scmp.ne.s32.totalorder %s91, %s93
      %p97 = scmp.eq.s32.totalorder %s22, 0
      %p98 = por %p96, %p97
      %p99 = scmp.ne.s32.totalorder %s91, %s93
      %p100 = scmp.eq.s32.totalorder %s27, 1
      %p101 = por %p99, %p100
      %p102 = scmp.ne.s32.totalorder %s93, %s94
      %p103 = scmp.eq.s32.totalorder %s27, 0
      %p104 = por %p102, %p103
      %p105 = scmp.ne.s32.totalorder %s93, %s94
      %p106 = scmp.eq.s32.totalorder %s28, 1
      %p107 = por %p105, %p106
      %p109 = scmp.ne.s32.totalorder %s94, %s108
      %p110 = scmp.eq.s32.totalorder %s28, 0
      %p111 = por %p109, %p110
      %s113 = sadd.s32 %s112, 1
      %p116 = scmp.eq.s32.totalorder %s22, 1
      %p117 = scmp.ne.s32.totalorder %s112, %s114
      %p118 = scmp.eq.s32.totalorder %s22, 0
      %p119 = por %p117, %p118
      %p120 = scmp.ne.s32.totalorder %s112, %s114
      %p121 = scmp.eq.s32.totalorder %s27, 1
      %p122 = por %p120, %p121
      %p123 = scmp.ne.s32.totalorder %s114, %s115
      %p124 = scmp.eq.s32.totalorder %s27, 0
      %p125 = por %p123, %p124
      %p126 = scmp.ne.s32.totalorder %s114, %s115
      %p127 = scmp.eq.s32.totalorder %s28, 1
      %p128 = por %p126, %p127
      %p130 = scmp.ne.s32.totalorder %s115, %s129
      %p131 = scmp.eq.s32.totalorder %s28, 0
      %p132 = por %p130, %p131
      %s133 = ssub.s32 %s29, %s41
      %p134 = scmp.eq.s32.totalorder %s133, 0
      %s136 = sadd.s32 %s135, 1
      %s137 = scalar_select %p134, %s135, %s136
      %p140 = pneg %p134
      %p141 = scmp.eq.s32.totalorder %s22, 1
      %p142 = por %p140, %p141
      %p143 = scmp.ne.s32.totalorder %s135, %s138
      %p144 = scmp.eq.s32.totalorder %s22, 0
      %p145 = por %p143, %p144
      %p146 = scmp.ne.s32.totalorder %s135, %s138
      %p147 = scmp.eq.s32.totalorder %s27, 1
      %p148 = por %p146, %p147
      %p149 = scmp.ne.s32.totalorder %s138, %s139
      %p150 = scmp.eq.s32.totalorder %s27, 0
      %p151 = por %p149, %p150
      %p152 = scmp.ne.s32.totalorder %s138, %s139
      %p153 = scmp.eq.s32.totalorder %s28, 1
      %p154 = por %p152, %p153
      %p156 = scmp.ne.s32.totalorder %s139, %s155
      %p157 = scmp.eq.s32.totalorder %s28, 0
      %p158 = por %p156, %p157
      %s159 = ssub.s32 %s30, %s37
      %s160 = ssub.s32 %s29, %s41
      %s161 = sor.u32 %s159, %s160
      %p162 = scmp.eq.s32.totalorder %s161, 0
      %s164 = sadd.s32 %s163, 1
      %s165 = scalar_select %p162, %s163, %s164
      %p168 = pneg %p162
      %p169 = scmp.eq.s32.totalorder %s22, 1
      %p170 = por %p168, %p169
      %p171 = scmp.ne.s32.totalorder %s163, %s166
      %p172 = scmp.eq.s32.totalorder %s22, 0
      %p173 = por %p171, %p172
      %p174 = scmp.ne.s32.totalorder %s163, %s166
      %p175 = scmp.eq.s32.totalorder %s27, 1
      %p176 = por %p174, %p175
      %p177 = scmp.ne.s32.totalorder %s166, %s167
      %p178 = scmp.eq.s32.totalorder %s27, 0
      %p179 = por %p177, %p178
      %p180 = scmp.ne.s32.totalorder %s166, %s167
      %p181 = scmp.eq.s32.totalorder %s28, 1
      %p182 = por %p180, %p181
      %p184 = scmp.ne.s32.totalorder %s167, %s183
      %p185 = scmp.eq.s32.totalorder %s28, 0
      %p186 = por %p184, %p185
      %s187 = ssub.s32 %s29, %s41
      %p188 = scmp.eq.s32.totalorder %s187, 0
      %s190 = sadd.s32 %s189, 1
      %s191 = scalar_select %p188, %s189, %s190
      %p194 = pneg %p188
      %p195 = scmp.eq.s32.totalorder %s22, 1
      %p196 = por %p194, %p195
      %p197 = scmp.ne.s32.totalorder %s189, %s192
      %p198 = scmp.eq.s32.totalorder %s22, 0
      %p199 = por %p197, %p198
      %p200 = scmp.ne.s32.totalorder %s189, %s192
      %p201 = scmp.eq.s32.totalorder %s27, 1
      %p202 = por %p200, %p201
      %p203 = scmp.ne.s32.totalorder %s192, %s193
      %p204 = scmp.eq.s32.totalorder %s27, 0
      %p205 = por %p203, %p204
      %p206 = scmp.ne.s32.totalorder %s192, %s193
      %p207 = scmp.eq.s32.totalorder %s28, 1
      %p208 = por %p206, %p207
      %p210 = scmp.ne.s32.totalorder %s193, %s209
      %p211 = scmp.eq.s32.totalorder %s28, 0
      %p212 = por %p210, %p211
      %s213 = ssub.s32 %s29, %s41
      %p214 = scmp.eq.s32.totalorder %s213, 0
      %s216 = sadd.s32 %s215, 1
      %s217 = scalar_select %p214, %s215, %s216
      %p220 = pneg %p214
      %p221 = scmp.eq.s32.totalorder %s22, 1
      %p222 = por %p220, %p221
      %p223 = scmp.ne.s32.totalorder %s215, %s218
      %p224 = scmp.eq.s32.totalorder %s22, 0
      %p225 = por %p223, %p224
      %p226 = scmp.ne.s32.totalorder %s215, %s218
      %p227 = scmp.eq.s32.totalorder %s27, 1
      %p228 = por %p226, %p227
      %p229 = scmp.ne.s32.totalorder %s218, %s219
      %p230 = scmp.eq.s32.totalorder %s27, 0
      %p231 = por %p229, %p230
      %p232 = scmp.ne.s32.totalorder %s218, %s219
      %p233 = scmp.eq.s32.totalorder %s28, 1
      %p234 = por %p232, %p233
      %p236 = scmp.ne.s32.totalorder %s219, %s235
      %p237 = scmp.eq.s32.totalorder %s28, 0
      %p238 = por %p236, %p237
      %p239 = scmp.le.s32.totalorder 1, %s22
      %p240 = scmp.lt.s32.totalorder %s22, 3
      %p241 = pnand %p239, %p240
      %p242 = pneg %p241
      // Predicated region
      $region9: #{tpu_custom_call.1} parent=5 // pred_check
        _
      $region10: #{tpu_custom_call.1} parent=5 // pred_check_branch
        %244 = sbr.rel (%p241) target = $region12
      $region11: #{tpu_custom_call.1} parent=5 // pred_region
        %s245 = ssub.s32 %s22, 1
        // Predicated region
        $region13: #{tpu_custom_call.1} parent=11 // pred_check
          %p246 = pneg %p83
        $region14: #{tpu_custom_call.1} parent=11 // pred_check_branch
          %248 = sbr.rel (%p246) target = $region16
        $region15: #{tpu_custom_call.1} parent=11 // pred_region
          %s250 = ssub.s32 2048, 2048
          %251 = vsyncadd [#allocation7], %s250
          %s252 = sshll.u32 [#allocation6], 4
          %s253 = int_to_ptr.vmem [resolvable:$true] %s252
          %258 = dma.hbm_to_vmem [thread:$0]  %s1, 2048, %s253, [#allocation7], 512, 512, 32
        $region16: #{tpu_custom_call.1} parent=11 // pred_fallthru
          _
        // Predicated region
        $region17: #{tpu_custom_call.1} parent=11 // pred_check
          %p259 = pneg %p104
        $region18: #{tpu_custom_call.1} parent=11 // pred_check_branch
          %261 = sbr.rel (%p259) target = $region20
        $region19: #{tpu_custom_call.1} parent=11 // pred_region
          %s263 = ssub.s32 8192, 8192
          %264 = vsyncadd [#allocation7], %s263
          %s265 = sshll.u32 [#allocation8], 4
          %s266 = int_to_ptr.vmem [resolvable:$true] %s265
          %271 = dma.hbm_to_vmem [thread:$0]  %s2, 8192, %s266, [#allocation7], 512, 512, 32
        $region20: #{tpu_custom_call.1} parent=11 // pred_fallthru
          _
        // Predicated region
        $region21: #{tpu_custom_call.1} parent=11 // pred_check
          %p272 = pneg %p125
        $region22: #{tpu_custom_call.1} parent=11 // pred_check_branch
          %274 = sbr.rel (%p272) target = $region24
        $region23: #{tpu_custom_call.1} parent=11 // pred_region
          _
        $region24: #{tpu_custom_call.1} parent=11 // pred_fallthru
          _
        // Predicated region
        $region25: #{tpu_custom_call.1} parent=11 // pred_check
          %p275 = pneg %p151
        $region26: #{tpu_custom_call.1} parent=11 // pred_check_branch
          %277 = sbr.rel (%p275) target = $region28
        $region27: #{tpu_custom_call.1} parent=11 // pred_region
          %p278 = scmp.lt.s32.totalorder %s31, 0
          %s279 = scalar_select %p278, %s31, 0
          %s280 = smul.addr %s279, 8
          %s281 = scalar_lea.vmem %s4, %s280
        $region28: #{tpu_custom_call.1} parent=11 // pred_fallthru
          _
      $region12: #{tpu_custom_call.1} parent=5 // pred_fallthru
        _
      %p282 = scmp.lt.s32.totalorder %s22, 2
      // Predicated region
      $region29: #{tpu_custom_call.1} parent=5 // pred_check
        %p283 = pneg %p282
      $region30: #{tpu_custom_call.1} parent=5 // pred_check_branch
        %285 = sbr.rel (%p283) target = $region32
      $region31: #{tpu_custom_call.1} parent=5 // pred_region
        // Predicated region
        $region33: #{tpu_custom_call.1} parent=31 // pred_check
          %p286 = pneg %p56
        $region34: #{tpu_custom_call.1} parent=31 // pred_check_branch
          %288 = sbr.rel (%p286) target = $region36
        $region35: #{tpu_custom_call.1} parent=31 // pred_region
          %s289 = sand.u32 %s46, 1
          %s290 = scalar_lea.sflag [#allocation4], %s289
          %s291 = sand.u32 %s46, 1
          %s292 = smul.addr %s291, 32
          %s293 = scalar_lea.vmem [#allocation3], %s292
          %s294 = smul.u32 4, %s30
          %s296 = ssub.s32 512, 512
          %297 = vsyncadd %s290, %s296
          %s298 = sadd.s32 %s29, %s294
          %s299 = smul.addr %s298, 128
          %s300 = scalar_lea.hbm %s0, %s299
          %s301 = sshll.u32 %s293, 4
          %s302 = int_to_ptr.vmem [resolvable:$true] %s301
          %307 = dma.hbm_to_vmem [thread:$0]  %s300, 512, %s302, %s290, 128, 128, 8
        $region36: #{tpu_custom_call.1} parent=31 // pred_fallthru
          _
      $region32: #{tpu_custom_call.1} parent=5 // pred_fallthru
        _
      %p308 = scmp.le.s32.totalorder 1, %s22
      %p309 = scmp.lt.s32.totalorder %s22, 3
      %p310 = pnand %p308, %p309
      %p311 = pneg %p310
      // Predicated region
      $region37: #{tpu_custom_call.1} parent=5 // pred_check
        _
      $region38: #{tpu_custom_call.1} parent=5 // pred_check_branch
        %313 = sbr.rel (%p310) target = $region40
      $region39: #{tpu_custom_call.1} parent=5 // pred_region
        %s314 = ssub.s32 %s22, 1
        %s315 = sand.u32 %s49, 1
        %s316 = scalar_lea.sflag [#allocation4], %s315
        %s317 = sand.u32 %s49, 1
        %s318 = smul.addr %s317, 32
        %s319 = scalar_lea.vmem [#allocation3], %s318
        // Predicated region
        $region41: #{tpu_custom_call.1} parent=39 // pred_check
          %p320 = pneg %p62
        $region42: #{tpu_custom_call.1} parent=39 // pred_check_branch
          %322 = sbr.rel (%p320) target = $region44
        $region43: #{tpu_custom_call.1} parent=39 // pred_region
          %323 = dma.done %s316, 512
        $region44: #{tpu_custom_call.1} parent=39 // pred_fallthru
          _
        // Predicated region
        $region45: #{tpu_custom_call.1} parent=39 // pred_check
          %p324 = pneg %p83
        $region46: #{tpu_custom_call.1} parent=39 // pred_check_branch
          %326 = sbr.rel (%p324) target = $region48
        $region47: #{tpu_custom_call.1} parent=39 // pred_region
          %327 = dma.done [#allocation7], 2048
        $region48: #{tpu_custom_call.1} parent=39 // pred_fallthru
          _
        // Predicated region
        $region49: #{tpu_custom_call.1} parent=39 // pred_check
          %p328 = pneg %p104
        $region50: #{tpu_custom_call.1} parent=39 // pred_check_branch
          %330 = sbr.rel (%p328) target = $region52
        $region51: #{tpu_custom_call.1} parent=39 // pred_region
          %331 = dma.done [#allocation7], 8192
        $region52: #{tpu_custom_call.1} parent=39 // pred_fallthru
          _
        %s332 = sand.u32 %s49, 1
        %s333 = scalar_lea.sflag [#allocation4], %s332
        %s334 = sand.u32 %s49, 1
        %s335 = smul.addr %s334, 32
        %s336 = scalar_lea.vmem [#allocation3], %s335
        %p337 = pneg %p62
        %p338 = pneg %p59
        %p339 = pneg %p83
        %p340 = pneg %p80
        %p341 = pneg %p104
        %p342 = pneg %p101
        %p343 = pneg %p125
        %p344 = pneg %p122
        %p345 = scmp.lt.s32.totalorder %s31, 0
        %s346 = scalar_select %p345, %s31, 0
        %s347 = smul.addr %s346, 8
        %s348 = scalar_lea.vmem %s4, %s347
        %p349 = pneg %p151
        %p350 = pneg %p148
        %p351 = pneg %p179
        %p352 = pneg %p176
        %s353 = sand.u32 %s166, 1
        %s354 = scalar_lea.sflag [#allocation5], %s353
        %s355 = sand.u32 %s166, 1
        %s356 = smul.addr %s355, 32
        %s357 = scalar_lea.vmem [#allocation9], %s356
        %p358 = pneg %p205
        %p359 = pneg %p202
        %p360 = pneg %p231
        %p361 = pneg %p228
        %s362 = smul.u32 4, %s32
        %p363 = scmp.lt.s32.totalorder %s31, 0
        %s364 = scalar_select %p363, %s31, 0
        %s365 = smul.addr %s364, 8
        %s366 = scalar_lea.vmem %s4, %s365
        %s367 = smul.u32 4, %s32
        %p368 = scmp.eq.s32.totalorder %s32, 0
        // Predicated region
        $region53: #{tpu_custom_call.1} parent=39 // pred_check
          %p369 = pneg %p368
        $region54: #{tpu_custom_call.1} parent=39 // pred_check_branch
          %371 = sbr.rel (%p369) target = $region56
        $region55: #{tpu_custom_call.1} parent=39 // pred_region
          %372 = vst [vmem:[#allocation10] sm:$0xff] 0.0
          %373 = vst [vmem:[#allocation12] sm:$0xff] 0.0
        $region56: #{tpu_custom_call.1} parent=39 // pred_fallthru
          _
        %v374 = vld [vmem:[%s366] sm:$0xff]
        %v375 = vld [vmem:[#allocation8] sm:$0xff]
        %v376 = vld [vmem:[#allocation8 + $0x8] sm:$0xff]
        %v377 = vld [vmem:[#allocation8 + $0x10] sm:$0xff]
        %v378 = vld [vmem:[#allocation8 + $0x18] sm:$0xff]
        %v379 = vld [vmem:[#allocation8 + $0x20] sm:$0xff]
        %v380 = vld [vmem:[#allocation8 + $0x28] sm:$0xff]
        %v381 = vld [vmem:[#allocation8 + $0x30] sm:$0xff]
        %v382 = vld [vmem:[#allocation8 + $0x38] sm:$0xff]
        %v383 = vld [vmem:[#allocation8 + $0x40] sm:$0xff]
        %v384 = vld [vmem:[#allocation8 + $0x48] sm:$0xff]
        %v385 = vld [vmem:[#allocation8 + $0x50] sm:$0xff]
        %v386 = vld [vmem:[#allocation8 + $0x58] sm:$0xff]
        %v387 = vld [vmem:[#allocation8 + $0x60] sm:$0xff]
        %v388 = vld [vmem:[#allocation8 + $0x68] sm:$0xff]
        %v389 = vld [vmem:[#allocation8 + $0x70] sm:$0xff]
        %v390 = vld [vmem:[#allocation8 + $0x78] sm:$0xff]
        %v391 = vld [vmem:[#allocation8 + $0x80] sm:$0xff]
        %v392 = vld [vmem:[#allocation8 + $0x88] sm:$0xff]
        %v393 = vld [vmem:[#allocation8 + $0x90] sm:$0xff]
        %v394 = vld [vmem:[#allocation8 + $0x98] sm:$0xff]
        %v395 = vld [vmem:[#allocation8 + $0xa0] sm:$0xff]
        %v396 = vld [vmem:[#allocation8 + $0xa8] sm:$0xff]
        %v397 = vld [vmem:[#allocation8 + $0xb0] sm:$0xff]
        %v398 = vld [vmem:[#allocation8 + $0xb8] sm:$0xff]
        %v399 = vld [vmem:[#allocation8 + $0xc0] sm:$0xff]
        %v400 = vld [vmem:[#allocation8 + $0xc8] sm:$0xff]
        %v401 = vld [vmem:[#allocation8 + $0xd0] sm:$0xff]
        %v402 = vld [vmem:[#allocation8 + $0xd8] sm:$0xff]
        %v403 = vld [vmem:[#allocation8 + $0xe0] sm:$0xff]
        %v404 = vld [vmem:[#allocation8 + $0xe8] sm:$0xff]
        %v405 = vld [vmem:[#allocation8 + $0xf0] sm:$0xff]
        %v406 = vld [vmem:[#allocation8 + $0xf8] sm:$0xff]
        %v407 = vld [vmem:[#allocation8 + $0x100] sm:$0xff]
        %v408 = vld [vmem:[#allocation8 + $0x108] sm:$0xff]
        %v409 = vld [vmem:[#allocation8 + $0x110] sm:$0xff]
        %v410 = vld [vmem:[#allocation8 + $0x118] sm:$0xff]
        %v411 = vld [vmem:[#allocation8 + $0x120] sm:$0xff]
        %v412 = vld [vmem:[#allocation8 + $0x128] sm:$0xff]
        %v413 = vld [vmem:[#allocation8 + $0x130] sm:$0xff]
        %v414 = vld [vmem:[#allocation8 + $0x138] sm:$0xff]
        %v415 = vld [vmem:[#allocation8 + $0x140] sm:$0xff]
        %v416 = vld [vmem:[#allocation8 + $0x148] sm:$0xff]
        %v417 = vld [vmem:[#allocation8 + $0x150] sm:$0xff]
        %v418 = vld [vmem:[#allocation8 + $0x158] sm:$0xff]
        %v419 = vld [vmem:[#allocation8 + $0x160] sm:$0xff]
        %v420 = vld [vmem:[#allocation8 + $0x168] sm:$0xff]
        %v421 = vld [vmem:[#allocation8 + $0x170] sm:$0xff]
        %v422 = vld [vmem:[#allocation8 + $0x178] sm:$0xff]
        %v423 = vld [vmem:[#allocation8 + $0x180] sm:$0xff]
        %v424 = vld [vmem:[#allocation8 + $0x188] sm:$0xff]
        %v425 = vld [vmem:[#allocation8 + $0x190] sm:$0xff]
        %v426 = vld [vmem:[#allocation8 + $0x198] sm:$0xff]
        %v427 = vld [vmem:[#allocation8 + $0x1a0] sm:$0xff]
        %v428 = vld [vmem:[#allocation8 + $0x1a8] sm:$0xff]
        %v429 = vld [vmem:[#allocation8 + $0x1b0] sm:$0xff]
        %v430 = vld [vmem:[#allocation8 + $0x1b8] sm:$0xff]
        %v431 = vld [vmem:[#allocation8 + $0x1c0] sm:$0xff]
        %v432 = vld [vmem:[#allocation8 + $0x1c8] sm:$0xff]
        %v433 = vld [vmem:[#allocation8 + $0x1d0] sm:$0xff]
        %v434 = vld [vmem:[#allocation8 + $0x1d8] sm:$0xff]
        %v435 = vld [vmem:[#allocation8 + $0x1e0] sm:$0xff]
        %v436 = vld [vmem:[#allocation8 + $0x1e8] sm:$0xff]
        %v437 = vld [vmem:[#allocation8 + $0x1f0] sm:$0xff]
        %v438 = vld [vmem:[#allocation8 + $0x1f8] sm:$0xff]
        %v439 = vld [vmem:[%s319] sm:$0xff]
        %v440 = vld [vmem:[%s319 + $0x8] sm:$0xff]
        %v441 = vld [vmem:[%s319 + $0x10] sm:$0xff]
        %v442 = vld [vmem:[%s319 + $0x18] sm:$0xff]
        %v443 = vld [vmem:[#allocation6] sm:$0xff]
        %v444 = vld [vmem:[#allocation6 + $0x8] sm:$0xff]
        %v445 = vld [vmem:[#allocation6 + $0x10] sm:$0xff]
        %v446 = vld [vmem:[#allocation6 + $0x18] sm:$0xff]
        %v447 = vld [vmem:[#allocation6 + $0x20] sm:$0xff]
        %v448 = vld [vmem:[#allocation6 + $0x28] sm:$0xff]
        %v449 = vld [vmem:[#allocation6 + $0x30] sm:$0xff]
        %v450 = vld [vmem:[#allocation6 + $0x38] sm:$0xff]
        %v451 = vld [vmem:[#allocation6 + $0x40] sm:$0xff]
        %v452 = vld [vmem:[#allocation6 + $0x48] sm:$0xff]
        %v453 = vld [vmem:[#allocation6 + $0x50] sm:$0xff]
        %v454 = vld [vmem:[#allocation6 + $0x58] sm:$0xff]
        %v455 = vld [vmem:[#allocation6 + $0x60] sm:$0xff]
        %v456 = vld [vmem:[#allocation6 + $0x68] sm:$0xff]
        %v457 = vld [vmem:[#allocation6 + $0x70] sm:$0xff]
        %v458 = vld [vmem:[#allocation6 + $0x78] sm:$0xff]
        %v459 = vld [vmem:[%s3] sm:$0xf]
        %v461 = vlaneseq
        %v462 = vshrl.u32 %v461, 7
        %v463 = vsub.s32 0, %v462
        %v464 = vrot.slane %v459, %v463
        %v465 = vlaneseq
        %v466 = vshrl.u32 %v465, 7
        %v467 = vsub.s32 1, %v466
        %v468 = vrot.slane %v459, %v467
        %v469 = vlaneseq
        %v470 = vshrl.u32 %v469, 7
        %v471 = vsub.s32 2, %v470
        %v472 = vrot.slane %v459, %v471
        %v473 = vlaneseq
        %v474 = vshrl.u32 %v473, 7
        %v475 = vsub.s32 3, %v474
        %v476 = vrot.slane %v459, %v475
        %vm481 = vcmask 261120
        %v483 = vsel %vm481, %v439, 0
        %v486 = vsel %vm481, %v440, 0
        %v489 = vsel %vm481, %v441, 0
        %v492 = vsel %vm481, %v442, 0
        %494 = vmatprep.subr.mxu0 0.0
        %495 = vmatpush1.msra.mxu0 0.0
        %496 = vmatprep.subr.mxu0 0.0
        %497 = vmatpush1.msra.mxu0 0.0
        %498 = vmatprep.subr.mxu0 0.0
        %499 = vmatpush1.msra.mxu0 0.0
        %500 = vmatprep.subr.mxu0 0.0
        %501 = vmatpush1.msra.mxu0 0.0
        %502 = vmatprep.subr.mxu0 0.0
        %503 = vmatpush1.msra.mxu0 0.0
        %504 = vmatprep.subr.mxu0 0.0
        %505 = vmatpush1.msra.mxu0 0.0
        %506 = vmatprep.subr.mxu0 0.0
        %507 = vmatpush1.msra.mxu0 0.0
        %508 = vmatprep.subr.mxu0 0.0
        %509 = vmatpush1.msra.mxu0 0.0
        %510 = vmatprep.subr.mxu0 0.0
        %511 = vmatpush1.msra.mxu0 0.0
        %512 = vmatprep.subr.mxu0 0.0
        %513 = vmatpush1.msra.mxu0 0.0
        %514 = vmatprep.subr.mxu0 0.0
        %515 = vmatpush1.msra.mxu0 0.0
        %516 = vmatprep.subr.mxu0 0.0
        %517 = vmatpush1.msra.mxu0 0.0
        %518 = vmatprep.subr.mxu0 %v456
        %519 = vmatpush1.msra.mxu0 %v455
        %520 = vmatprep.subr.mxu0 %v452
        %521 = vmatpush1.msra.mxu0 %v451
        %522 = vmatprep.subr.mxu0 %v448
        %523 = vmatpush1.msra.mxu0 %v447
        %524 = vmatprep.subr.mxu0 %v444
        %525 = vmatpush1.msra.mxu0 %v443
        %526 = vmatprep.subr.mxu0 0.0
        %527 = vmatpush2.msra.mxu0 0.0
        %528 = vmatprep.subr.mxu0 0.0
        %529 = vmatpush2.msra.mxu0 0.0
        %530 = vmatprep.subr.mxu0 0.0
        %531 = vmatpush2.msra.mxu0 0.0
        %532 = vmatprep.subr.mxu0 0.0
        %533 = vmatpush2.msra.mxu0 0.0
        %534 = vmatprep.subr.mxu0 0.0
        %535 = vmatpush2.msra.mxu0 0.0
        %536 = vmatprep.subr.mxu0 0.0
        %537 = vmatpush2.msra.mxu0 0.0
        %538 = vmatprep.subr.mxu0 0.0
        %539 = vmatpush2.msra.mxu0 0.0
        %540 = vmatprep.subr.mxu0 0.0
        %541 = vmatpush2.msra.mxu0 0.0
        %542 = vmatprep.subr.mxu0 0.0
        %543 = vmatpush2.msra.mxu0 0.0
        %544 = vmatprep.subr.mxu0 0.0
        %545 = vmatpush2.msra.mxu0 0.0
        %546 = vmatprep.subr.mxu0 0.0
        %547 = vmatpush2.msra.mxu0 0.0
        %548 = vmatprep.subr.mxu0 0.0
        %549 = vmatpush2.msra.mxu0 0.0
        %550 = vmatprep.subr.mxu0 0.0
        %551 = vmatpush2.msra.mxu0 0.0
        %552 = vmatprep.subr.mxu0 0.0
        %553 = vmatpush2.msra.mxu0 0.0
        %554 = vmatprep.subr.mxu0 0.0
        %555 = vmatpush2.msra.mxu0 0.0
        %556 = vmatprep.subr.mxu0 0.0
        %557 = vmatpush2.msra.mxu0 0.0
        %558 = vmatprep.mubr.f32.mxu0 0.0
        %559 = vmatmul.mubr.f32.gmra.mxu0 %v483
        %v560 = vpop.f32.mrf.mxu0
        %v561 = vadd.f32 %v464, %v560
        %v562 = vpop.f32.mrf.mxu0
        %v563 = vadd.f32 %v468, %v562
        %564 = vmatprep.mubr.f32.mxu0 0.0
        %565 = vmatmul.mubr.f32.gmra.mxu0 %v486
        %v566 = vpop.f32.mrf.mxu0
        %v567 = vadd.f32 %v464, %v566
        %v568 = vpop.f32.mrf.mxu0
        %v569 = vadd.f32 %v468, %v568
        %570 = vmatprep.mubr.f32.mxu0 0.0
        %571 = vmatmul.mubr.f32.gmra.mxu0 %v489
        %v572 = vpop.f32.mrf.mxu0
        %v573 = vadd.f32 %v464, %v572
        %v574 = vpop.f32.mrf.mxu0
        %v575 = vadd.f32 %v468, %v574
        %576 = vmatprep.mubr.f32.mxu0 0.0
        %577 = vmatmul.mubr.f32.gmra.mxu0 %v492
        %v578 = vpop.f32.mrf.mxu0
        %v579 = vadd.f32 %v464, %v578
        %v580 = vpop.f32.mrf.mxu0
        %v581 = vadd.f32 %v468, %v580
        %582 = vdwg.mxu0
        %583 = vmatprep.subr.mxu0 0.0
        %584 = vmatpush1.msra.mxu0 0.0
        %585 = vmatprep.subr.mxu0 0.0
        %586 = vmatpush1.msra.mxu0 0.0
        %587 = vmatprep.subr.mxu0 0.0
        %588 = vmatpush1.msra.mxu0 0.0
        %589 = vmatprep.subr.mxu0 0.0
        %590 = vmatpush1.msra.mxu0 0.0
        %591 = vmatprep.subr.mxu0 0.0
        %592 = vmatpush1.msra.mxu0 0.0
        %593 = vmatprep.subr.mxu0 0.0
        %594 = vmatpush1.msra.mxu0 0.0
        %595 = vmatprep.subr.mxu0 0.0
        %596 = vmatpush1.msra.mxu0 0.0
        %597 = vmatprep.subr.mxu0 0.0
        %598 = vmatpush1.msra.mxu0 0.0
        %599 = vmatprep.subr.mxu0 0.0
        %600 = vmatpush1.msra.mxu0 0.0
        %601 = vmatprep.subr.mxu0 0.0
        %602 = vmatpush1.msra.mxu0 0.0
        %603 = vmatprep.subr.mxu0 0.0
        %604 = vmatpush1.msra.mxu0 0.0
        %605 = vmatprep.subr.mxu0 0.0
        %606 = vmatpush1.msra.mxu0 0.0
        %607 = vmatprep.subr.mxu0 %v458
        %608 = vmatpush1.msra.mxu0 %v457
        %609 = vmatprep.subr.mxu0 %v454
        %610 = vmatpush1.msra.mxu0 %v453
        %611 = vmatprep.subr.mxu0 %v450
        %612 = vmatpush1.msra.mxu0 %v449
        %613 = vmatprep.subr.mxu0 %v446
        %614 = vmatpush1.msra.mxu0 %v445
        %615 = vmatprep.subr.mxu0 0.0
        %616 = vmatpush2.msra.mxu0 0.0
        %617 = vmatprep.subr.mxu0 0.0
        %618 = vmatpush2.msra.mxu0 0.0
        %619 = vmatprep.subr.mxu0 0.0
        %620 = vmatpush2.msra.mxu0 0.0
        %621 = vmatprep.subr.mxu0 0.0
        %622 = vmatpush2.msra.mxu0 0.0
        %623 = vmatprep.subr.mxu0 0.0
        %624 = vmatpush2.msra.mxu0 0.0
        %625 = vmatprep.subr.mxu0 0.0
        %626 = vmatpush2.msra.mxu0 0.0
        %627 = vmatprep.subr.mxu0 0.0
        %628 = vmatpush2.msra.mxu0 0.0
        %629 = vmatprep.subr.mxu0 0.0
        %630 = vmatpush2.msra.mxu0 0.0
        %631 = vmatprep.subr.mxu0 0.0
        %632 = vmatpush2.msra.mxu0 0.0
        %633 = vmatprep.subr.mxu0 0.0
        %634 = vmatpush2.msra.mxu0 0.0
        %635 = vmatprep.subr.mxu0 0.0
        %636 = vmatpush2.msra.mxu0 0.0
        %637 = vmatprep.subr.mxu0 0.0
        %638 = vmatpush2.msra.mxu0 0.0
        %639 = vmatprep.subr.mxu0 0.0
        %640 = vmatpush2.msra.mxu0 0.0
        %641 = vmatprep.subr.mxu0 0.0
        %642 = vmatpush2.msra.mxu0 0.0
        %643 = vmatprep.subr.mxu0 0.0
        %644 = vmatpush2.msra.mxu0 0.0
        %645 = vmatprep.subr.mxu0 0.0
        %646 = vmatpush2.msra.mxu0 0.0
        %647 = vmatprep.mubr.f32.mxu0 0.0
        %648 = vmatmul.mubr.f32.gmra.mxu0 %v483
        %v649 = vpop.f32.mrf.mxu0
        %v650 = vadd.f32 %v472, %v649
        %v651 = vpop.f32.mrf.mxu0
        %v652 = vadd.f32 %v476, %v651
        %653 = vmatprep.mubr.f32.mxu0 0.0
        %654 = vmatmul.mubr.f32.gmra.mxu0 %v486
        %v655 = vpop.f32.mrf.mxu0
        %v656 = vadd.f32 %v472, %v655
        %v657 = vpop.f32.mrf.mxu0
        %v658 = vadd.f32 %v476, %v657
        %659 = vmatprep.mubr.f32.mxu0 0.0
        %660 = vmatmul.mubr.f32.gmra.mxu0 %v489
        %v661 = vpop.f32.mrf.mxu0
        %v662 = vadd.f32 %v472, %v661
        %v663 = vpop.f32.mrf.mxu0
        %v664 = vadd.f32 %v476, %v663
        %665 = vmatprep.mubr.f32.mxu0 0.0
        %666 = vmatmul.mubr.f32.gmra.mxu0 %v492
        %v667 = vpop.f32.mrf.mxu0
        %v668 = vadd.f32 %v472, %v667
        %v669 = vpop.f32.mrf.mxu0
        %v670 = vadd.f32 %v476, %v669
        %671 = vdwg.mxu0
        %672 = vst [vmem:[#allocation2] sm:$0xff] %v561
        %673 = vst [vmem:[#allocation2 + $0x8] sm:$0xff] %v563
        %674 = vst [vmem:[#allocation2 + $0x10] sm:$0xff] %v650
        %675 = vst [vmem:[#allocation2 + $0x18] sm:$0xff] %v652
        %676 = vst [vmem:[#allocation2 + $0x20] sm:$0xff] %v567
        %677 = vst [vmem:[#allocation2 + $0x28] sm:$0xff] %v569
        %678 = vst [vmem:[#allocation2 + $0x30] sm:$0xff] %v656
        %679 = vst [vmem:[#allocation2 + $0x38] sm:$0xff] %v658
        %680 = vst [vmem:[#allocation2 + $0x40] sm:$0xff] %v573
        %681 = vst [vmem:[#allocation2 + $0x48] sm:$0xff] %v575
        %682 = vst [vmem:[#allocation2 + $0x50] sm:$0xff] %v662
        %683 = vst [vmem:[#allocation2 + $0x58] sm:$0xff] %v664
        %684 = vst [vmem:[#allocation2 + $0x60] sm:$0xff] %v579
        %685 = vst [vmem:[#allocation2 + $0x68] sm:$0xff] %v581
        %686 = vst [vmem:[#allocation2 + $0x70] sm:$0xff] %v668
        %687 = vst [vmem:[#allocation2 + $0x78] sm:$0xff] %v670
        %s688 = smul.u32 %s32, 4
        %v689 = vld [vmem:[#allocation10] sm:$0xff]
        %v690 = vld [vmem:[#allocation12] sm:$0xff]
        %s691 = smul.u32 0, 4
        %s692 = smul.addr %s691, 8
        %s693 = scalar_lea.vmem [#allocation2], %s692
        %v694 = vld [vmem:[%s693] sm:$0xff]
        %v695 = vld [vmem:[%s693 + $0x8] sm:$0xff]
        %v696 = vld [vmem:[%s693 + $0x10] sm:$0xff]
        %v697 = vld [vmem:[%s693 + $0x18] sm:$0xff]
        %698 = vmatprep.subr.mxu0 %v436
        %699 = vmatpush1.msra.mxu0 %v435
        %700 = vmatprep.subr.mxu0 %v432
        %701 = vmatpush1.msra.mxu0 %v431
        %702 = vmatprep.subr.mxu0 %v428
        %703 = vmatpush1.msra.mxu0 %v427
        %704 = vmatprep.subr.mxu0 %v424
        %705 = vmatpush1.msra.mxu0 %v423
        %706 = vmatprep.subr.mxu0 %v420
        %707 = vmatpush1.msra.mxu0 %v419
        %708 = vmatprep.subr.mxu0 %v416
        %709 = vmatpush1.msra.mxu0 %v415
        %710 = vmatprep.subr.mxu0 %v412
        %711 = vmatpush1.msra.mxu0 %v411
        %712 = vmatprep.subr.mxu0 %v408
        %713 = vmatpush1.msra.mxu0 %v407
        %714 = vmatprep.subr.mxu0 %v404
        %715 = vmatpush1.msra.mxu0 %v403
        %716 = vmatprep.subr.mxu0 %v400
        %717 = vmatpush1.msra.mxu0 %v399
        %718 = vmatprep.subr.mxu0 %v396
        %719 = vmatpush1.msra.mxu0 %v395
        %720 = vmatprep.subr.mxu0 %v392
        %721 = vmatpush1.msra.mxu0 %v391
        %722 = vmatprep.subr.mxu0 %v388
        %723 = vmatpush1.msra.mxu0 %v387
        %724 = vmatprep.subr.mxu0 %v384
        %725 = vmatpush1.msra.mxu0 %v383
        %726 = vmatprep.subr.mxu0 %v380
        %727 = vmatpush1.msra.mxu0 %v379
        %728 = vmatprep.subr.mxu0 %v376
        %729 = vmatpush1.msra.mxu0 %v375
        %730 = vmatprep.subr.mxu0 0.0
        %731 = vmatpush2.msra.mxu0 0.0
        %732 = vmatprep.subr.mxu0 0.0
        %733 = vmatpush2.msra.mxu0 0.0
        %734 = vmatprep.subr.mxu0 0.0
        %735 = vmatpush2.msra.mxu0 0.0
        %736 = vmatprep.subr.mxu0 0.0
        %737 = vmatpush2.msra.mxu0 0.0
        %738 = vmatprep.subr.mxu0 0.0
        %739 = vmatpush2.msra.mxu0 0.0
        %740 = vmatprep.subr.mxu0 0.0
        %741 = vmatpush2.msra.mxu0 0.0
        %742 = vmatprep.subr.mxu0 0.0
        %743 = vmatpush2.msra.mxu0 0.0
        %744 = vmatprep.subr.mxu0 0.0
        %745 = vmatpush2.msra.mxu0 0.0
        %746 = vmatprep.subr.mxu0 0.0
        %747 = vmatpush2.msra.mxu0 0.0
        %748 = vmatprep.subr.mxu0 0.0
        %749 = vmatpush2.msra.mxu0 0.0
        %750 = vmatprep.subr.mxu0 0.0
        %751 = vmatpush2.msra.mxu0 0.0
        %752 = vmatprep.subr.mxu0 0.0
        %753 = vmatpush2.msra.mxu0 0.0
        %754 = vmatprep.subr.mxu0 0.0
        %755 = vmatpush2.msra.mxu0 0.0
        %756 = vmatprep.subr.mxu0 0.0
        %757 = vmatpush2.msra.mxu0 0.0
        %758 = vmatprep.subr.mxu0 0.0
        %759 = vmatpush2.msra.mxu0 0.0
        %760 = vmatprep.subr.mxu0 0.0
        %761 = vmatpush2.msra.mxu0 0.0
        %762 = vmatprep.mubr.f32.mxu0 0.0
        %763 = vmatmul.mubr.f32.gmra.mxu0 %v689
        %v764 = vpop.f32.mrf.mxu0
        %v765 = vadd.f32 0.0, %v764
        %v766 = vpop.f32.mrf.mxu0
        %v767 = vadd.f32 0.0, %v766
        %768 = vdwg.mxu0
        %769 = vmatprep.subr.mxu0 %v438
        %770 = vmatpush1.msra.mxu0 %v437
        %771 = vmatprep.subr.mxu0 %v434
        %772 = vmatpush1.msra.mxu0 %v433
        %773 = vmatprep.subr.mxu0 %v430
        %774 = vmatpush1.msra.mxu0 %v429
        %775 = vmatprep.subr.mxu0 %v426
        %776 = vmatpush1.msra.mxu0 %v425
        %777 = vmatprep.subr.mxu0 %v422
        %778 = vmatpush1.msra.mxu0 %v421
        %779 = vmatprep.subr.mxu0 %v418
        %780 = vmatpush1.msra.mxu0 %v417
        %781 = vmatprep.subr.mxu0 %v414
        %782 = vmatpush1.msra.mxu0 %v413
        %783 = vmatprep.subr.mxu0 %v410
        %784 = vmatpush1.msra.mxu0 %v409
        %785 = vmatprep.subr.mxu0 %v406
        %786 = vmatpush1.msra.mxu0 %v405
        %787 = vmatprep.subr.mxu0 %v402
        %788 = vmatpush1.msra.mxu0 %v401
        %789 = vmatprep.subr.mxu0 %v398
        %790 = vmatpush1.msra.mxu0 %v397
        %791 = vmatprep.subr.mxu0 %v394
        %792 = vmatpush1.msra.mxu0 %v393
        %793 = vmatprep.subr.mxu0 %v390
        %794 = vmatpush1.msra.mxu0 %v389
        %795 = vmatprep.subr.mxu0 %v386
        %796 = vmatpush1.msra.mxu0 %v385
        %797 = vmatprep.subr.mxu0 %v382
        %798 = vmatpush1.msra.mxu0 %v381
        %799 = vmatprep.subr.mxu0 %v378
        %800 = vmatpush1.msra.mxu0 %v377
        %801 = vmatprep.subr.mxu0 0.0
        %802 = vmatpush2.msra.mxu0 0.0
        %803 = vmatprep.subr.mxu0 0.0
        %804 = vmatpush2.msra.mxu0 0.0
        %805 = vmatprep.subr.mxu0 0.0
        %806 = vmatpush2.msra.mxu0 0.0
        %807 = vmatprep.subr.mxu0 0.0
        %808 = vmatpush2.msra.mxu0 0.0
        %809 = vmatprep.subr.mxu0 0.0
        %810 = vmatpush2.msra.mxu0 0.0
        %811 = vmatprep.subr.mxu0 0.0
        %812 = vmatpush2.msra.mxu0 0.0
        %813 = vmatprep.subr.mxu0 0.0
        %814 = vmatpush2.msra.mxu0 0.0
        %815 = vmatprep.subr.mxu0 0.0
        %816 = vmatpush2.msra.mxu0 0.0
        %817 = vmatprep.subr.mxu0 0.0
        %818 = vmatpush2.msra.mxu0 0.0
        %819 = vmatprep.subr.mxu0 0.0
        %820 = vmatpush2.msra.mxu0 0.0
        %821 = vmatprep.subr.mxu0 0.0
        %822 = vmatpush2.msra.mxu0 0.0
        %823 = vmatprep.subr.mxu0 0.0
        %824 = vmatpush2.msra.mxu0 0.0
        %825 = vmatprep.subr.mxu0 0.0
        %826 = vmatpush2.msra.mxu0 0.0
        %827 = vmatprep.subr.mxu0 0.0
        %828 = vmatpush2.msra.mxu0 0.0
        %829 = vmatprep.subr.mxu0 0.0
        %830 = vmatpush2.msra.mxu0 0.0
        %831 = vmatprep.subr.mxu0 0.0
        %832 = vmatpush2.msra.mxu0 0.0
        %833 = vmatprep.mubr.f32.mxu0 0.0
        %834 = vmatmul.mubr.f32.gmra.mxu0 %v689
        %v835 = vpop.f32.mrf.mxu0
        %v836 = vadd.f32 0.0, %v835
        %v837 = vpop.f32.mrf.mxu0
        %v838 = vadd.f32 0.0, %v837
        %839 = vdwg.mxu0
        %v840 = vadd.f32 %v694, %v765
        %v841 = vadd.f32 %v695, %v767
        %v842 = vadd.f32 %v696, %v836
        %v843 = vadd.f32 %v697, %v838
        %v844 = vxor.u32 %v840, 2147483648
        %v845 = vmul.f32 %v844, 1.442695
        %v846 = vpow.pop %v845
        %v847 = vadd.f32 %v846, 1.0
        %v848 = vrcp.pop %v847
        %v849 = vmul.f32 1.0, %v848
        %v850 = vxor.u32 %v841, 2147483648
        %v851 = vmul.f32 %v850, 1.442695
        %v852 = vpow.pop %v851
        %v853 = vadd.f32 %v852, 1.0
        %v854 = vrcp.pop %v853
        %v855 = vmul.f32 1.0, %v854
        %v856 = vtanh.pop %v842
        %v857 = vxor.u32 %v843, 2147483648
        %v858 = vmul.f32 %v857, 1.442695
        %v859 = vpow.pop %v858
        %v860 = vadd.f32 %v859, 1.0
        %v861 = vrcp.pop %v860
        %v862 = vmul.f32 1.0, %v861
        %v863 = vmul.f32 %v855, %v690
        %v864 = vmul.f32 %v849, %v856
        %v865 = vadd.f32 %v863, %v864
        %v866 = vtanh.pop %v865
        %v867 = vmul.f32 %v862, %v866
        %v868 = vstv %s688
        %vm869 = vcmp.lt.s32.totalorder %v868, %v374
        %v870 = vsel %vm869, 1, 0
        %871 = vset.pattern.permute.xlu0 0
        %872 = vperm.xlu0 %871, %v870
        %v873 = vpop.permute.xlu0 %872
        %vm874 = vcmp.eq.s32.totalorder %v873, 1
        %v875 = vsel %vm874, %v867, %v689
        %876 = vst [vmem:[#allocation10] sm:$0xff] %v875
        %v877 = vsel %vm874, %v865, %v690
        %878 = vst [vmem:[#allocation12] sm:$0xff] %v877
        %v879 = vsel %vm874, %v867, 0.0
        %880 = vst [vmem:[%s357] sm:$0xff] %v879
        %s881 = sadd.s32 %s688, 1
        %v882 = vld [vmem:[#allocation10] sm:$0xff]
        %v883 = vld [vmem:[#allocation12] sm:$0xff]
        %s884 = smul.u32 1, 4
        %s885 = smul.addr %s884, 8
        %s886 = scalar_lea.vmem [#allocation2], %s885
        %v887 = vld [vmem:[%s886] sm:$0xff]
        %v888 = vld [vmem:[%s886 + $0x8] sm:$0xff]
        %v889 = vld [vmem:[%s886 + $0x10] sm:$0xff]
        %v890 = vld [vmem:[%s886 + $0x18] sm:$0xff]
        %891 = vmatprep.subr.mxu0 %v436
        %892 = vmatpush1.msra.mxu0 %v435
        %893 = vmatprep.subr.mxu0 %v432
        %894 = vmatpush1.msra.mxu0 %v431
        %895 = vmatprep.subr.mxu0 %v428
        %896 = vmatpush1.msra.mxu0 %v427
        %897 = vmatprep.subr.mxu0 %v424
        %898 = vmatpush1.msra.mxu0 %v423
        %899 = vmatprep.subr.mxu0 %v420
        %900 = vmatpush1.msra.mxu0 %v419
        %901 = vmatprep.subr.mxu0 %v416
        %902 = vmatpush1.msra.mxu0 %v415
        %903 = vmatprep.subr.mxu0 %v412
        %904 = vmatpush1.msra.mxu0 %v411
        %905 = vmatprep.subr.mxu0 %v408
        %906 = vmatpush1.msra.mxu0 %v407
        %907 = vmatprep.subr.mxu0 %v404
        %908 = vmatpush1.msra.mxu0 %v403
        %909 = vmatprep.subr.mxu0 %v400
        %910 = vmatpush1.msra.mxu0 %v399
        %911 = vmatprep.subr.mxu0 %v396
        %912 = vmatpush1.msra.mxu0 %v395
        %913 = vmatprep.subr.mxu0 %v392
        %914 = vmatpush1.msra.mxu0 %v391
        %915 = vmatprep.subr.mxu0 %v388
        %916 = vmatpush1.msra.mxu0 %v387
        %917 = vmatprep.subr.mxu0 %v384
        %918 = vmatpush1.msra.mxu0 %v383
        %919 = vmatprep.subr.mxu0 %v380
        %920 = vmatpush1.msra.mxu0 %v379
        %921 = vmatprep.subr.mxu0 %v376
        %922 = vmatpush1.msra.mxu0 %v375
        %923 = vmatprep.subr.mxu0 0.0
        %924 = vmatpush2.msra.mxu0 0.0
        %925 = vmatprep.subr.mxu0 0.0
        %926 = vmatpush2.msra.mxu0 0.0
        %927 = vmatprep.subr.mxu0 0.0
        %928 = vmatpush2.msra.mxu0 0.0
        %929 = vmatprep.subr.mxu0 0.0
        %930 = vmatpush2.msra.mxu0 0.0
        %931 = vmatprep.subr.mxu0 0.0
        %932 = vmatpush2.msra.mxu0 0.0
        %933 = vmatprep.subr.mxu0 0.0
        %934 = vmatpush2.msra.mxu0 0.0
        %935 = vmatprep.subr.mxu0 0.0
        %936 = vmatpush2.msra.mxu0 0.0
        %937 = vmatprep.subr.mxu0 0.0
        %938 = vmatpush2.msra.mxu0 0.0
        %939 = vmatprep.subr.mxu0 0.0
        %940 = vmatpush2.msra.mxu0 0.0
        %941 = vmatprep.subr.mxu0 0.0
        %942 = vmatpush2.msra.mxu0 0.0
        %943 = vmatprep.subr.mxu0 0.0
        %944 = vmatpush2.msra.mxu0 0.0
        %945 = vmatprep.subr.mxu0 0.0
        %946 = vmatpush2.msra.mxu0 0.0
        %947 = vmatprep.subr.mxu0 0.0
        %948 = vmatpush2.msra.mxu0 0.0
        %949 = vmatprep.subr.mxu0 0.0
        %950 = vmatpush2.msra.mxu0 0.0
        %951 = vmatprep.subr.mxu0 0.0
        %952 = vmatpush2.msra.mxu0 0.0
        %953 = vmatprep.subr.mxu0 0.0
        %954 = vmatpush2.msra.mxu0 0.0
        %955 = vmatprep.mubr.f32.mxu0 0.0
        %956 = vmatmul.mubr.f32.gmra.mxu0 %v882
        %v957 = vpop.f32.mrf.mxu0
        %v958 = vadd.f32 0.0, %v957
        %v959 = vpop.f32.mrf.mxu0
        %v960 = vadd.f32 0.0, %v959
        %961 = vdwg.mxu0
        %962 = vmatprep.subr.mxu0 %v438
        %963 = vmatpush1.msra.mxu0 %v437
        %964 = vmatprep.subr.mxu0 %v434
        %965 = vmatpush1.msra.mxu0 %v433
        %966 = vmatprep.subr.mxu0 %v430
        %967 = vmatpush1.msra.mxu0 %v429
        %968 = vmatprep.subr.mxu0 %v426
        %969 = vmatpush1.msra.mxu0 %v425
        %970 = vmatprep.subr.mxu0 %v422
        %971 = vmatpush1.msra.mxu0 %v421
        %972 = vmatprep.subr.mxu0 %v418
        %973 = vmatpush1.msra.mxu0 %v417
        %974 = vmatprep.subr.mxu0 %v414
        %975 = vmatpush1.msra.mxu0 %v413
        %976 = vmatprep.subr.mxu0 %v410
        %977 = vmatpush1.msra.mxu0 %v409
        %978 = vmatprep.subr.mxu0 %v406
        %979 = vmatpush1.msra.mxu0 %v405
        %980 = vmatprep.subr.mxu0 %v402
        %981 = vmatpush1.msra.mxu0 %v401
        %982 = vmatprep.subr.mxu0 %v398
        %983 = vmatpush1.msra.mxu0 %v397
        %984 = vmatprep.subr.mxu0 %v394
        %985 = vmatpush1.msra.mxu0 %v393
        %986 = vmatprep.subr.mxu0 %v390
        %987 = vmatpush1.msra.mxu0 %v389
        %988 = vmatprep.subr.mxu0 %v386
        %989 = vmatpush1.msra.mxu0 %v385
        %990 = vmatprep.subr.mxu0 %v382
        %991 = vmatpush1.msra.mxu0 %v381
        %992 = vmatprep.subr.mxu0 %v378
        %993 = vmatpush1.msra.mxu0 %v377
        %994 = vmatprep.subr.mxu0 0.0
        %995 = vmatpush2.msra.mxu0 0.0
        %996 = vmatprep.subr.mxu0 0.0
        %997 = vmatpush2.msra.mxu0 0.0
        %998 = vmatprep.subr.mxu0 0.0
        %999 = vmatpush2.msra.mxu0 0.0
        %1000 = vmatprep.subr.mxu0 0.0
        %1001 = vmatpush2.msra.mxu0 0.0
        %1002 = vmatprep.subr.mxu0 0.0
        %1003 = vmatpush2.msra.mxu0 0.0
        %1004 = vmatprep.subr.mxu0 0.0
        %1005 = vmatpush2.msra.mxu0 0.0
        %1006 = vmatprep.subr.mxu0 0.0
        %1007 = vmatpush2.msra.mxu0 0.0
        %1008 = vmatprep.subr.mxu0 0.0
        %1009 = vmatpush2.msra.mxu0 0.0
        %1010 = vmatprep.subr.mxu0 0.0
        %1011 = vmatpush2.msra.mxu0 0.0
        %1012 = vmatprep.subr.mxu0 0.0
        %1013 = vmatpush2.msra.mxu0 0.0
        %1014 = vmatprep.subr.mxu0 0.0
        %1015 = vmatpush2.msra.mxu0 0.0
        %1016 = vmatprep.subr.mxu0 0.0
        %1017 = vmatpush2.msra.mxu0 0.0
        %1018 = vmatprep.subr.mxu0 0.0
        %1019 = vmatpush2.msra.mxu0 0.0
        %1020 = vmatprep.subr.mxu0 0.0
        %1021 = vmatpush2.msra.mxu0 0.0
        %1022 = vmatprep.subr.mxu0 0.0
        %1023 = vmatpush2.msra.mxu0 0.0
        %1024 = vmatprep.subr.mxu0 0.0
        %1025 = vmatpush2.msra.mxu0 0.0
        %1026 = vmatprep.mubr.f32.mxu0 0.0
        %1027 = vmatmul.mubr.f32.gmra.mxu0 %v882
        %v1028 = vpop.f32.mrf.mxu0
        %v1029 = vadd.f32 0.0, %v1028
        %v1030 = vpop.f32.mrf.mxu0
        %v1031 = vadd.f32 0.0, %v1030
        %1032 = vdwg.mxu0
        %v1033 = vadd.f32 %v887, %v958
        %v1034 = vadd.f32 %v888, %v960
        %v1035 = vadd.f32 %v889, %v1029
        %v1036 = vadd.f32 %v890, %v1031
        %v1037 = vxor.u32 %v1033, 2147483648
        %v1038 = vmul.f32 %v1037, 1.442695
        %v1039 = vpow.pop %v1038
        %v1040 = vadd.f32 %v1039, 1.0
        %v1041 = vrcp.pop %v1040
        %v1042 = vmul.f32 1.0, %v1041
        %v1043 = vxor.u32 %v1034, 2147483648
        %v1044 = vmul.f32 %v1043, 1.442695
        %v1045 = vpow.pop %v1044
        %v1046 = vadd.f32 %v1045, 1.0
        %v1047 = vrcp.pop %v1046
        %v1048 = vmul.f32 1.0, %v1047
        %v1049 = vtanh.pop %v1035
        %v1050 = vxor.u32 %v1036, 2147483648
        %v1051 = vmul.f32 %v1050, 1.442695
        %v1052 = vpow.pop %v1051
        %v1053 = vadd.f32 %v1052, 1.0
        %v1054 = vrcp.pop %v1053
        %v1055 = vmul.f32 1.0, %v1054
        %v1056 = vmul.f32 %v1048, %v883
        %v1057 = vmul.f32 %v1042, %v1049
        %v1058 = vadd.f32 %v1056, %v1057
        %v1059 = vtanh.pop %v1058
        %v1060 = vmul.f32 %v1055, %v1059
        %v1061 = vstv %s881
        %vm1062 = vcmp.lt.s32.totalorder %v1061, %v374
        %v1063 = vsel %vm1062, 1, 0
        %1064 = vset.pattern.permute.xlu0 0
        %1065 = vperm.xlu0 %1064, %v1063
        %v1066 = vpop.permute.xlu0 %1065
        %vm1067 = vcmp.eq.s32.totalorder %v1066, 1
        %v1068 = vsel %vm1067, %v1060, %v882
        %1069 = vst [vmem:[#allocation10] sm:$0xff] %v1068
        %v1070 = vsel %vm1067, %v1058, %v883
        %1071 = vst [vmem:[#allocation12] sm:$0xff] %v1070
        %v1072 = vsel %vm1067, %v1060, 0.0
        %s1073 = scalar_lea.vmem %s357, 8 [#allocation9]
        %1074 = vst [vmem:[%s1073] sm:$0xff] %v1072
        %s1075 = sadd.s32 %s688, 2
        %v1076 = vld [vmem:[#allocation10] sm:$0xff]
        %v1077 = vld [vmem:[#allocation12] sm:$0xff]
        %s1078 = smul.u32 2, 4
        %s1079 = smul.addr %s1078, 8
        %s1080 = scalar_lea.vmem [#allocation2], %s1079
        %v1081 = vld [vmem:[%s1080] sm:$0xff]
        %v1082 = vld [vmem:[%s1080 + $0x8] sm:$0xff]
        %v1083 = vld [vmem:[%s1080 + $0x10] sm:$0xff]
        %v1084 = vld [vmem:[%s1080 + $0x18] sm:$0xff]
        %1085 = vmatprep.subr.mxu0 %v436
        %1086 = vmatpush1.msra.mxu0 %v435
        %1087 = vmatprep.subr.mxu0 %v432
        %1088 = vmatpush1.msra.mxu0 %v431
        %1089 = vmatprep.subr.mxu0 %v428
        %1090 = vmatpush1.msra.mxu0 %v427
        %1091 = vmatprep.subr.mxu0 %v424
        %1092 = vmatpush1.msra.mxu0 %v423
        %1093 = vmatprep.subr.mxu0 %v420
        %1094 = vmatpush1.msra.mxu0 %v419
        %1095 = vmatprep.subr.mxu0 %v416
        %1096 = vmatpush1.msra.mxu0 %v415
        %1097 = vmatprep.subr.mxu0 %v412
        %1098 = vmatpush1.msra.mxu0 %v411
        %1099 = vmatprep.subr.mxu0 %v408
        %1100 = vmatpush1.msra.mxu0 %v407
        %1101 = vmatprep.subr.mxu0 %v404
        %1102 = vmatpush1.msra.mxu0 %v403
        %1103 = vmatprep.subr.mxu0 %v400
        %1104 = vmatpush1.msra.mxu0 %v399
        %1105 = vmatprep.subr.mxu0 %v396
        %1106 = vmatpush1.msra.mxu0 %v395
        %1107 = vmatprep.subr.mxu0 %v392
        %1108 = vmatpush1.msra.mxu0 %v391
        %1109 = vmatprep.subr.mxu0 %v388
        %1110 = vmatpush1.msra.mxu0 %v387
        %1111 = vmatprep.subr.mxu0 %v384
        %1112 = vmatpush1.msra.mxu0 %v383
        %1113 = vmatprep.subr.mxu0 %v380
        %1114 = vmatpush1.msra.mxu0 %v379
        %1115 = vmatprep.subr.mxu0 %v376
        %1116 = vmatpush1.msra.mxu0 %v375
        %1117 = vmatprep.subr.mxu0 0.0
        %1118 = vmatpush2.msra.mxu0 0.0
        %1119 = vmatprep.subr.mxu0 0.0
        %1120 = vmatpush2.msra.mxu0 0.0
        %1121 = vmatprep.subr.mxu0 0.0
        %1122 = vmatpush2.msra.mxu0 0.0
        %1123 = vmatprep.subr.mxu0 0.0
        %1124 = vmatpush2.msra.mxu0 0.0
        %1125 = vmatprep.subr.mxu0 0.0
        %1126 = vmatpush2.msra.mxu0 0.0
        %1127 = vmatprep.subr.mxu0 0.0
        %1128 = vmatpush2.msra.mxu0 0.0
        %1129 = vmatprep.subr.mxu0 0.0
        %1130 = vmatpush2.msra.mxu0 0.0
        %1131 = vmatprep.subr.mxu0 0.0
        %1132 = vmatpush2.msra.mxu0 0.0
        %1133 = vmatprep.subr.mxu0 0.0
        %1134 = vmatpush2.msra.mxu0 0.0
        %1135 = vmatprep.subr.mxu0 0.0
        %1136 = vmatpush2.msra.mxu0 0.0
        %1137 = vmatprep.subr.mxu0 0.0
        %1138 = vmatpush2.msra.mxu0 0.0
        %1139 = vmatprep.subr.mxu0 0.0
        %1140 = vmatpush2.msra.mxu0 0.0
        %1141 = vmatprep.subr.mxu0 0.0
        %1142 = vmatpush2.msra.mxu0 0.0
        %1143 = vmatprep.subr.mxu0 0.0
        %1144 = vmatpush2.msra.mxu0 0.0
        %1145 = vmatprep.subr.mxu0 0.0
        %1146 = vmatpush2.msra.mxu0 0.0
        %1147 = vmatprep.subr.mxu0 0.0
        %1148 = vmatpush2.msra.mxu0 0.0
        %1149 = vmatprep.mubr.f32.mxu0 0.0
        %1150 = vmatmul.mubr.f32.gmra.mxu0 %v1076
        %v1151 = vpop.f32.mrf.mxu0
        %v1152 = vadd.f32 0.0, %v1151
        %v1153 = vpop.f32.mrf.mxu0
        %v1154 = vadd.f32 0.0, %v1153
        %1155 = vdwg.mxu0
        %1156 = vmatprep.subr.mxu0 %v438
        %1157 = vmatpush1.msra.mxu0 %v437
        %1158 = vmatprep.subr.mxu0 %v434
        %1159 = vmatpush1.msra.mxu0 %v433
        %1160 = vmatprep.subr.mxu0 %v430
        %1161 = vmatpush1.msra.mxu0 %v429
        %1162 = vmatprep.subr.mxu0 %v426
        %1163 = vmatpush1.msra.mxu0 %v425
        %1164 = vmatprep.subr.mxu0 %v422
        %1165 = vmatpush1.msra.mxu0 %v421
        %1166 = vmatprep.subr.mxu0 %v418
        %1167 = vmatpush1.msra.mxu0 %v417
        %1168 = vmatprep.subr.mxu0 %v414
        %1169 = vmatpush1.msra.mxu0 %v413
        %1170 = vmatprep.subr.mxu0 %v410
        %1171 = vmatpush1.msra.mxu0 %v409
        %1172 = vmatprep.subr.mxu0 %v406
        %1173 = vmatpush1.msra.mxu0 %v405
        %1174 = vmatprep.subr.mxu0 %v402
        %1175 = vmatpush1.msra.mxu0 %v401
        %1176 = vmatprep.subr.mxu0 %v398
        %1177 = vmatpush1.msra.mxu0 %v397
        %1178 = vmatprep.subr.mxu0 %v394
        %1179 = vmatpush1.msra.mxu0 %v393
        %1180 = vmatprep.subr.mxu0 %v390
        %1181 = vmatpush1.msra.mxu0 %v389
        %1182 = vmatprep.subr.mxu0 %v386
        %1183 = vmatpush1.msra.mxu0 %v385
        %1184 = vmatprep.subr.mxu0 %v382
        %1185 = vmatpush1.msra.mxu0 %v381
        %1186 = vmatprep.subr.mxu0 %v378
        %1187 = vmatpush1.msra.mxu0 %v377
        %1188 = vmatprep.subr.mxu0 0.0
        %1189 = vmatpush2.msra.mxu0 0.0
        %1190 = vmatprep.subr.mxu0 0.0
        %1191 = vmatpush2.msra.mxu0 0.0
        %1192 = vmatprep.subr.mxu0 0.0
        %1193 = vmatpush2.msra.mxu0 0.0
        %1194 = vmatprep.subr.mxu0 0.0
        %1195 = vmatpush2.msra.mxu0 0.0
        %1196 = vmatprep.subr.mxu0 0.0
        %1197 = vmatpush2.msra.mxu0 0.0
        %1198 = vmatprep.subr.mxu0 0.0
        %1199 = vmatpush2.msra.mxu0 0.0
        %1200 = vmatprep.subr.mxu0 0.0
        %1201 = vmatpush2.msra.mxu0 0.0
        %1202 = vmatprep.subr.mxu0 0.0
        %1203 = vmatpush2.msra.mxu0 0.0
        %1204 = vmatprep.subr.mxu0 0.0
        %1205 = vmatpush2.msra.mxu0 0.0
        %1206 = vmatprep.subr.mxu0 0.0
        %1207 = vmatpush2.msra.mxu0 0.0
        %1208 = vmatprep.subr.mxu0 0.0
        %1209 = vmatpush2.msra.mxu0 0.0
        %1210 = vmatprep.subr.mxu0 0.0
        %1211 = vmatpush2.msra.mxu0 0.0
        %1212 = vmatprep.subr.mxu0 0.0
        %1213 = vmatpush2.msra.mxu0 0.0
        %1214 = vmatprep.subr.mxu0 0.0
        %1215 = vmatpush2.msra.mxu0 0.0
        %1216 = vmatprep.subr.mxu0 0.0
        %1217 = vmatpush2.msra.mxu0 0.0
        %1218 = vmatprep.subr.mxu0 0.0
        %1219 = vmatpush2.msra.mxu0 0.0
        %1220 = vmatprep.mubr.f32.mxu0 0.0
        %1221 = vmatmul.mubr.f32.gmra.mxu0 %v1076
        %v1222 = vpop.f32.mrf.mxu0
        %v1223 = vadd.f32 0.0, %v1222
        %v1224 = vpop.f32.mrf.mxu0
        %v1225 = vadd.f32 0.0, %v1224
        %1226 = vdwg.mxu0
        %v1227 = vadd.f32 %v1081, %v1152
        %v1228 = vadd.f32 %v1082, %v1154
        %v1229 = vadd.f32 %v1083, %v1223
        %v1230 = vadd.f32 %v1084, %v1225
        %v1231 = vxor.u32 %v1227, 2147483648
        %v1232 = vmul.f32 %v1231, 1.442695
        %v1233 = vpow.pop %v1232
        %v1234 = vadd.f32 %v1233, 1.0
        %v1235 = vrcp.pop %v1234
        %v1236 = vmul.f32 1.0, %v1235
        %v1237 = vxor.u32 %v1228, 2147483648
        %v1238 = vmul.f32 %v1237, 1.442695
        %v1239 = vpow.pop %v1238
        %v1240 = vadd.f32 %v1239, 1.0
        %v1241 = vrcp.pop %v1240
        %v1242 = vmul.f32 1.0, %v1241
        %v1243 = vtanh.pop %v1229
        %v1244 = vxor.u32 %v1230, 2147483648
        %v1245 = vmul.f32 %v1244, 1.442695
        %v1246 = vpow.pop %v1245
        %v1247 = vadd.f32 %v1246, 1.0
        %v1248 = vrcp.pop %v1247
        %v1249 = vmul.f32 1.0, %v1248
        %v1250 = vmul.f32 %v1242, %v1077
        %v1251 = vmul.f32 %v1236, %v1243
        %v1252 = vadd.f32 %v1250, %v1251
        %v1253 = vtanh.pop %v1252
        %v1254 = vmul.f32 %v1249, %v1253
        %v1255 = vstv %s1075
        %vm1256 = vcmp.lt.s32.totalorder %v1255, %v374
        %v1257 = vsel %vm1256, 1, 0
        %1258 = vset.pattern.permute.xlu0 0
        %1259 = vperm.xlu0 %1258, %v1257
        %v1260 = vpop.permute.xlu0 %1259
        %vm1261 = vcmp.eq.s32.totalorder %v1260, 1
        %v1262 = vsel %vm1261, %v1254, %v1076
        %1263 = vst [vmem:[#allocation10] sm:$0xff] %v1262
        %v1264 = vsel %vm1261, %v1252, %v1077
        %1265 = vst [vmem:[#allocation12] sm:$0xff] %v1264
        %v1266 = vsel %vm1261, %v1254, 0.0
        %s1267 = scalar_lea.vmem %s357, 16 [#allocation9]
        %1268 = vst [vmem:[%s1267] sm:$0xff] %v1266
        %s1269 = sadd.s32 %s688, 3
        %v1270 = vld [vmem:[#allocation10] sm:$0xff]
        %v1271 = vld [vmem:[#allocation12] sm:$0xff]
        %s1272 = smul.u32 3, 4
        %s1273 = smul.addr %s1272, 8
        %s1274 = scalar_lea.vmem [#allocation2], %s1273
        %v1275 = vld [vmem:[%s1274] sm:$0xff]
        %v1276 = vld [vmem:[%s1274 + $0x8] sm:$0xff]
        %v1277 = vld [vmem:[%s1274 + $0x10] sm:$0xff]
        %v1278 = vld [vmem:[%s1274 + $0x18] sm:$0xff]
        %1279 = vmatprep.subr.mxu0 %v436
        %1280 = vmatpush1.msra.mxu0 %v435
        %1281 = vmatprep.subr.mxu0 %v432
        %1282 = vmatpush1.msra.mxu0 %v431
        %1283 = vmatprep.subr.mxu0 %v428
        %1284 = vmatpush1.msra.mxu0 %v427
        %1285 = vmatprep.subr.mxu0 %v424
        %1286 = vmatpush1.msra.mxu0 %v423
        %1287 = vmatprep.subr.mxu0 %v420
        %1288 = vmatpush1.msra.mxu0 %v419
        %1289 = vmatprep.subr.mxu0 %v416
        %1290 = vmatpush1.msra.mxu0 %v415
        %1291 = vmatprep.subr.mxu0 %v412
        %1292 = vmatpush1.msra.mxu0 %v411
        %1293 = vmatprep.subr.mxu0 %v408
        %1294 = vmatpush1.msra.mxu0 %v407
        %1295 = vmatprep.subr.mxu0 %v404
        %1296 = vmatpush1.msra.mxu0 %v403
        %1297 = vmatprep.subr.mxu0 %v400
        %1298 = vmatpush1.msra.mxu0 %v399
        %1299 = vmatprep.subr.mxu0 %v396
        %1300 = vmatpush1.msra.mxu0 %v395
        %1301 = vmatprep.subr.mxu0 %v392
        %1302 = vmatpush1.msra.mxu0 %v391
        %1303 = vmatprep.subr.mxu0 %v388
        %1304 = vmatpush1.msra.mxu0 %v387
        %1305 = vmatprep.subr.mxu0 %v384
        %1306 = vmatpush1.msra.mxu0 %v383
        %1307 = vmatprep.subr.mxu0 %v380
        %1308 = vmatpush1.msra.mxu0 %v379
        %1309 = vmatprep.subr.mxu0 %v376
        %1310 = vmatpush1.msra.mxu0 %v375
        %1311 = vmatprep.subr.mxu0 0.0
        %1312 = vmatpush2.msra.mxu0 0.0
        %1313 = vmatprep.subr.mxu0 0.0
        %1314 = vmatpush2.msra.mxu0 0.0
        %1315 = vmatprep.subr.mxu0 0.0
        %1316 = vmatpush2.msra.mxu0 0.0
        %1317 = vmatprep.subr.mxu0 0.0
        %1318 = vmatpush2.msra.mxu0 0.0
        %1319 = vmatprep.subr.mxu0 0.0
        %1320 = vmatpush2.msra.mxu0 0.0
        %1321 = vmatprep.subr.mxu0 0.0
        %1322 = vmatpush2.msra.mxu0 0.0
        %1323 = vmatprep.subr.mxu0 0.0
        %1324 = vmatpush2.msra.mxu0 0.0
        %1325 = vmatprep.subr.mxu0 0.0
        %1326 = vmatpush2.msra.mxu0 0.0
        %1327 = vmatprep.subr.mxu0 0.0
        %1328 = vmatpush2.msra.mxu0 0.0
        %1329 = vmatprep.subr.mxu0 0.0
        %1330 = vmatpush2.msra.mxu0 0.0
        %1331 = vmatprep.subr.mxu0 0.0
        %1332 = vmatpush2.msra.mxu0 0.0
        %1333 = vmatprep.subr.mxu0 0.0
        %1334 = vmatpush2.msra.mxu0 0.0
        %1335 = vmatprep.subr.mxu0 0.0
        %1336 = vmatpush2.msra.mxu0 0.0
        %1337 = vmatprep.subr.mxu0 0.0
        %1338 = vmatpush2.msra.mxu0 0.0
        %1339 = vmatprep.subr.mxu0 0.0
        %1340 = vmatpush2.msra.mxu0 0.0
        %1341 = vmatprep.subr.mxu0 0.0
        %1342 = vmatpush2.msra.mxu0 0.0
        %1343 = vmatprep.mubr.f32.mxu0 0.0
        %1344 = vmatmul.mubr.f32.gmra.mxu0 %v1270
        %v1345 = vpop.f32.mrf.mxu0
        %v1346 = vadd.f32 0.0, %v1345
        %v1347 = vpop.f32.mrf.mxu0
        %v1348 = vadd.f32 0.0, %v1347
        %1349 = vdwg.mxu0
        %1350 = vmatprep.subr.mxu0 %v438
        %1351 = vmatpush1.msra.mxu0 %v437
        %1352 = vmatprep.subr.mxu0 %v434
        %1353 = vmatpush1.msra.mxu0 %v433
        %1354 = vmatprep.subr.mxu0 %v430
        %1355 = vmatpush1.msra.mxu0 %v429
        %1356 = vmatprep.subr.mxu0 %v426
        %1357 = vmatpush1.msra.mxu0 %v425
        %1358 = vmatprep.subr.mxu0 %v422
        %1359 = vmatpush1.msra.mxu0 %v421
        %1360 = vmatprep.subr.mxu0 %v418
        %1361 = vmatpush1.msra.mxu0 %v417
        %1362 = vmatprep.subr.mxu0 %v414
        %1363 = vmatpush1.msra.mxu0 %v413
        %1364 = vmatprep.subr.mxu0 %v410
        %1365 = vmatpush1.msra.mxu0 %v409
        %1366 = vmatprep.subr.mxu0 %v406
        %1367 = vmatpush1.msra.mxu0 %v405
        %1368 = vmatprep.subr.mxu0 %v402
        %1369 = vmatpush1.msra.mxu0 %v401
        %1370 = vmatprep.subr.mxu0 %v398
        %1371 = vmatpush1.msra.mxu0 %v397
        %1372 = vmatprep.subr.mxu0 %v394
        %1373 = vmatpush1.msra.mxu0 %v393
        %1374 = vmatprep.subr.mxu0 %v390
        %1375 = vmatpush1.msra.mxu0 %v389
        %1376 = vmatprep.subr.mxu0 %v386
        %1377 = vmatpush1.msra.mxu0 %v385
        %1378 = vmatprep.subr.mxu0 %v382
        %1379 = vmatpush1.msra.mxu0 %v381
        %1380 = vmatprep.subr.mxu0 %v378
        %1381 = vmatpush1.msra.mxu0 %v377
        %1382 = vmatprep.subr.mxu0 0.0
        %1383 = vmatpush2.msra.mxu0 0.0
        %1384 = vmatprep.subr.mxu0 0.0
        %1385 = vmatpush2.msra.mxu0 0.0
        %1386 = vmatprep.subr.mxu0 0.0
        %1387 = vmatpush2.msra.mxu0 0.0
        %1388 = vmatprep.subr.mxu0 0.0
        %1389 = vmatpush2.msra.mxu0 0.0
        %1390 = vmatprep.subr.mxu0 0.0
        %1391 = vmatpush2.msra.mxu0 0.0
        %1392 = vmatprep.subr.mxu0 0.0
        %1393 = vmatpush2.msra.mxu0 0.0
        %1394 = vmatprep.subr.mxu0 0.0
        %1395 = vmatpush2.msra.mxu0 0.0
        %1396 = vmatprep.subr.mxu0 0.0
        %1397 = vmatpush2.msra.mxu0 0.0
        %1398 = vmatprep.subr.mxu0 0.0
        %1399 = vmatpush2.msra.mxu0 0.0
        %1400 = vmatprep.subr.mxu0 0.0
        %1401 = vmatpush2.msra.mxu0 0.0
        %1402 = vmatprep.subr.mxu0 0.0
        %1403 = vmatpush2.msra.mxu0 0.0
        %1404 = vmatprep.subr.mxu0 0.0
        %1405 = vmatpush2.msra.mxu0 0.0
        %1406 = vmatprep.subr.mxu0 0.0
        %1407 = vmatpush2.msra.mxu0 0.0
        %1408 = vmatprep.subr.mxu0 0.0
        %1409 = vmatpush2.msra.mxu0 0.0
        %1410 = vmatprep.subr.mxu0 0.0
        %1411 = vmatpush2.msra.mxu0 0.0
        %1412 = vmatprep.subr.mxu0 0.0
        %1413 = vmatpush2.msra.mxu0 0.0
        %1414 = vmatprep.mubr.f32.mxu0 0.0
        %1415 = vmatmul.mubr.f32.gmra.mxu0 %v1270
        %v1416 = vpop.f32.mrf.mxu0
        %v1417 = vadd.f32 0.0, %v1416
        %v1418 = vpop.f32.mrf.mxu0
        %v1419 = vadd.f32 0.0, %v1418
        %1420 = vdwg.mxu0
        %v1421 = vadd.f32 %v1275, %v1346
        %v1422 = vadd.f32 %v1276, %v1348
        %v1423 = vadd.f32 %v1277, %v1417
        %v1424 = vadd.f32 %v1278, %v1419
        %v1425 = vxor.u32 %v1421, 2147483648
        %v1426 = vmul.f32 %v1425, 1.442695
        %v1427 = vpow.pop %v1426
        %v1428 = vadd.f32 %v1427, 1.0
        %v1429 = vrcp.pop %v1428
        %v1430 = vmul.f32 1.0, %v1429
        %v1431 = vxor.u32 %v1422, 2147483648
        %v1432 = vmul.f32 %v1431, 1.442695
        %v1433 = vpow.pop %v1432
        %v1434 = vadd.f32 %v1433, 1.0
        %v1435 = vrcp.pop %v1434
        %v1436 = vmul.f32 1.0, %v1435
        %v1437 = vtanh.pop %v1423
        %v1438 = vxor.u32 %v1424, 2147483648
        %v1439 = vmul.f32 %v1438, 1.442695
        %v1440 = vpow.pop %v1439
        %v1441 = vadd.f32 %v1440, 1.0
        %v1442 = vrcp.pop %v1441
        %v1443 = vmul.f32 1.0, %v1442
        %v1444 = vmul.f32 %v1436, %v1271
        %v1445 = vmul.f32 %v1430, %v1437
        %v1446 = vadd.f32 %v1444, %v1445
        %v1447 = vtanh.pop %v1446
        %v1448 = vmul.f32 %v1443, %v1447
        %v1449 = vstv %s1269
        %vm1450 = vcmp.lt.s32.totalorder %v1449, %v374
        %v1451 = vsel %vm1450, 1, 0
        %1452 = vset.pattern.permute.xlu0 0
        %1453 = vperm.xlu0 %1452, %v1451
        %v1454 = vpop.permute.xlu0 %1453
        %vm1455 = vcmp.eq.s32.totalorder %v1454, 1
        %v1456 = vsel %vm1455, %v1448, %v1270
        %1457 = vst [vmem:[#allocation10] sm:$0xff] %v1456
        %v1458 = vsel %vm1455, %v1446, %v1271
        %1459 = vst [vmem:[#allocation12] sm:$0xff] %v1458
        %v1460 = vsel %vm1455, %v1448, 0.0
        %s1461 = scalar_lea.vmem %s357, 24 [#allocation9]
        %1462 = vst [vmem:[%s1461] sm:$0xff] %v1460
        %s1463 = sand.u32 %s166, 1
        %s1464 = scalar_lea.sflag [#allocation5], %s1463
        %s1465 = sand.u32 %s166, 1
        %s1466 = smul.addr %s1465, 32
        %s1467 = scalar_lea.vmem [#allocation9], %s1466
        // Predicated region
        $region57: #{tpu_custom_call.1} parent=39 // pred_check
          %p1468 = pneg %p176
        $region58: #{tpu_custom_call.1} parent=39 // pred_check_branch
          %1470 = sbr.rel (%p1468) target = $region60
        $region59: #{tpu_custom_call.1} parent=39 // pred_region
          %s1471 = smul.u32 4, %s32
          %s1473 = ssub.s32 512, 512
          %1474 = vsyncadd %s1464, %s1473
          %s1475 = sadd.s32 %s31, %s1471
          %s1476 = smul.addr %s1475, 128
          %s1477 = scalar_lea.hbm %s5, %s1476
          %s1478 = sshll.u32 %s1467, 4
          %s1479 = int_to_ptr.vmem [resolvable:$true] %s1478
          %1484 = dma.vmem_to_hbm [thread:$0]  %s1479, 512, %s1477, %s1464, 128, 128, 8
        $region60: #{tpu_custom_call.1} parent=39 // pred_fallthru
          _
        // Predicated region
        $region61: #{tpu_custom_call.1} parent=39 // pred_check
          %p1485 = pneg %p202
        $region62: #{tpu_custom_call.1} parent=39 // pred_check_branch
          %1487 = sbr.rel (%p1485) target = $region64
        $region63: #{tpu_custom_call.1} parent=39 // pred_region
          %s1489 = ssub.s32 128, 128
          %1490 = vsyncadd [#allocation11], %s1489
          %s1491 = smul.addr %s31, 128
          %s1492 = scalar_lea.hbm %s6, %s1491
          %s1494 = sshll.u32 [#allocation10], 4
          %s1495 = int_to_ptr.vmem [resolvable:$true] %s1494
          %1497 = dma.vmem_to_hbm [thread:$0]  %s1495, 128, %s1492, [#allocation11]
        $region64: #{tpu_custom_call.1} parent=39 // pred_fallthru
          _
        // Predicated region
        $region65: #{tpu_custom_call.1} parent=39 // pred_check
          %p1498 = pneg %p228
        $region66: #{tpu_custom_call.1} parent=39 // pred_check_branch
          %1500 = sbr.rel (%p1498) target = $region68
        $region67: #{tpu_custom_call.1} parent=39 // pred_region
          %s1502 = ssub.s32 128, 128
          %1503 = vsyncadd [#allocation11], %s1502
          %s1504 = smul.addr %s31, 128
          %s1505 = scalar_lea.hbm %s7, %s1504
          %s1507 = sshll.u32 [#allocation12], 4
          %s1508 = int_to_ptr.vmem [resolvable:$true] %s1507
          %1510 = dma.vmem_to_hbm [thread:$0]  %s1508, 128, %s1505, [#allocation11]
        $region68: #{tpu_custom_call.1} parent=39 // pred_fallthru
          _
        // Predicated region
        $region69: #{tpu_custom_call.1} parent=39 // pred_check
          %p1511 = pneg %p202
        $region70: #{tpu_custom_call.1} parent=39 // pred_check_branch
          %1513 = sbr.rel (%p1511) target = $region72
        $region71: #{tpu_custom_call.1} parent=39 // pred_region
          %1514 = dma.done [#allocation11], 128
        $region72: #{tpu_custom_call.1} parent=39 // pred_fallthru
          _
        // Predicated region
        $region73: #{tpu_custom_call.1} parent=39 // pred_check
          %p1515 = pneg %p228
        $region74: #{tpu_custom_call.1} parent=39 // pred_check_branch
          %1517 = sbr.rel (%p1515) target = $region76
        $region75: #{tpu_custom_call.1} parent=39 // pred_region
          %1518 = dma.done [#allocation11], 128
        $region76: #{tpu_custom_call.1} parent=39 // pred_fallthru
          _
      $region40: #{tpu_custom_call.1} parent=5 // pred_fallthru
        _
      %p1519 = scmp.le.s32.totalorder 2, %s22
      // Predicated region
      $region77: #{tpu_custom_call.1} parent=5 // pred_check
        %p1520 = pneg %p1519
      $region78: #{tpu_custom_call.1} parent=5 // pred_check_branch
        %1522 = sbr.rel (%p1520) target = $region80
      $region79: #{tpu_custom_call.1} parent=5 // pred_region
        %s1523 = ssub.s32 %s22, 2
        // Predicated region
        $region81: #{tpu_custom_call.1} parent=79 // pred_check
          %p1524 = pneg %p182
        $region82: #{tpu_custom_call.1} parent=79 // pred_check_branch
          %1526 = sbr.rel (%p1524) target = $region84
        $region83: #{tpu_custom_call.1} parent=79 // pred_region
          %s1527 = sand.u32 %s167, 1
          %s1528 = scalar_lea.sflag [#allocation5], %s1527
          %s1529 = sand.u32 %s167, 1
          %s1530 = smul.addr %s1529, 32
          %s1531 = scalar_lea.vmem [#allocation9], %s1530
          %1532 = dma.done %s1528, 512
        $region84: #{tpu_custom_call.1} parent=79 // pred_fallthru
          _
      $region80: #{tpu_custom_call.1} parent=5 // pred_fallthru
        _
    $region6: #{tpu_custom_call.1} parent=1 // loop_footer
      %s26 = sadd.s32 1, %s22
    $region7: #{tpu_custom_call.1} parent=1 // loop_footer_branch
      %21 = sbr.rel target = $region3
    $region8: #{tpu_custom_call.1} parent=1 // loop_exit
      _
    %1533 = vsyncpa [#allocation4], 1
    %s1534 = scalar_lea.sflag [#allocation4], 1
    %1535 = vsyncpa %s1534, 1
    %1536 = vsyncpa [#allocation7], 1
    %1537 = vsyncpa [#allocation5], 1
    %s1538 = scalar_lea.sflag [#allocation5], 1
    %1539 = vsyncpa %s1538, 1
    %1540 = vsyncpa [#allocation11], 1

</llo_original>
